<compile_context>
chip_gen: v7x
topology: tpu7x:2x2x1
jax: 0.10.0
libtpu: 0.0.40
codegen_flags: <defaults>
</compile_context>

<pallas_src>
import functools

import jax
import jax.numpy as jnp
from jax.experimental import pallas as pl
from jax.experimental.pallas import tpu as pltpu

# Parameter-table row layout (per Gaussian, float32, (P_DIM, N_pad) in SMEM):
#  0: u     1: v                         (2D mean)
#  2: -0.5*i00   3: -0.5*(i01+i10)   4: -0.5*i11   (folded inverse-covariance coeffs)
#  5: opacity * (depth > 0)
#  6: r     7: g     8: b
#  9: xmin  10: xmax  11: ymin  12: ymax  (clamped integer bbox, as floats)
P_DIM = 13


def _render_kernel(params_ref, img_ref, *, th, tw, gpb):
    """params_ref: (P_DIM, N_pad) f32 in SMEM; img_ref: (3, th, tw) f32 VMEM accumulator."""
    i = pl.program_id(0)   # tile row
    j = pl.program_id(1)   # tile col
    b = pl.program_id(2)   # Gaussian block (innermost, sequential, far -> near)

    @pl.when(b == 0)
    def _():
        img_ref[...] = jnp.zeros_like(img_ref)

    # Tile pixel coordinates: computed once per grid step (hoisted out of the
    # per-Gaussian loop) from tile-local iota + scalar tile offsets.
    ty0 = (i * th).astype(jnp.float32)
    tx0 = (j * tw).astype(jnp.float32)
    ty1 = ty0 + float(th)
    tx1 = tx0 + float(tw)
    py = ty0 + jax.lax.broadcasted_iota(jnp.int32, (th, tw), 0).astype(jnp.float32)
    px = tx0 + jax.lax.broadcasted_iota(jnp.int32, (th, tw), 1).astype(jnp.float32)

    base = b * gpb

    def body(g, carry):
        n = base + g
        xmin = params_ref[9, n]
        xmax = params_ref[10, n]
        ymin = params_ref[11, n]
        ymax = params_ref[12, n]

        # Scalar cull: only do vector work if this Gaussian has a non-empty bbox that
        # overlaps the current tile.  Behind-camera (depth<=0) and padding Gaussians
        # have a collapsed bbox, so they are skipped for free.
        hit = ((xmax > xmin) & (ymax > ymin)
               & (xmin < tx1) & (xmax > tx0)
               & (ymin < ty1) & (ymax > ty0))

        @pl.when(hit)
        def _():
            u = params_ref[0, n]
            v = params_ref[1, n]
            a00 = params_ref[2, n]
            axy = params_ref[3, n]
            a11 = params_ref[4, n]
            op = params_ref[5, n]
            cr = params_ref[6, n]
            cg = params_ref[7, n]
            cb = params_ref[8, n]

            dx = px - u
            dy = py - v
            # exp(-0.5 * d^T Sigma^{-1} d); the -0.5 is folded into a00/axy/a11.
            w = jnp.exp((a00 * dx) * dx + (axy * dx) * dy + (a11 * dy) * dy)
            in_bbox = (px >= xmin) & (px < xmax) & (py >= ymin) & (py < ymax)
            alpha = jnp.where(in_bbox, w * op, 0.0)
            om = 1.0 - alpha

            # "over" compositing (back-to-front): one whole-ref read, one whole-ref
            # write with all three channels fused.
            img = img_ref[...]
            img_ref[...] = jnp.stack(
                [cr * alpha + img[0] * om,
                 cg * alpha + img[1] * om,
                 cb * alpha + img[2] * om],
                axis=0,
            )

        return carry

    # G Gaussians per grid step amortizes the ~0.35us/step overhead; unrolled so the
    # scheduler sees one straight-line region.
    jax.lax.fori_loop(0, gpb, body, 0, unroll=True)


def _prepare_params(means, covs, colors, opacities, cam, gpb):
    """Plain-JAX glue: project Gaussians, build the (P_DIM, N_pad) parameter table,
    depth-sort (far -> near) and pad N up to a multiple of gpb."""
    R = jnp.asarray(cam["R"], jnp.float32)
    t = jnp.asarray(cam["t"], jnp.float32)
    fx = jnp.float32(cam["fx"])
    fy = jnp.float32(cam["fy"])
    cx = jnp.float32(cam["cx"])
    cy = jnp.float32(cam["cy"])
    Wimg = int(cam["width"])
    Himg = int(cam["height"])

    means = means.astype(jnp.float32)
    covs = covs.astype(jnp.float32)
    colors = colors.astype(jnp.float32)
    opacities = opacities.astype(jnp.float32).reshape(-1)

    # means_cam = (R @ means.T).T + t
    means_cam = means @ R.T + t
    x = means_cam[:, 0]
    y = means_cam[:, 1]
    z = means_cam[:, 2]
    valid = z > 0

    # _project_points
    u = x / z * fx + cx
    v = y / z * fy + cy
    mean2d = jnp.stack([u, v], axis=1)

    # cov_cam = R @ cov @ R^T
    cov_cam = jnp.einsum("ij,njk,lk->nil", R, covs, R)

    # _project_covariance: 2x3 perspective Jacobian
    zeros = jnp.zeros_like(z)
    J = jnp.stack(
        [
            jnp.stack([fx / z, zeros, -fx * x / (z * z)], axis=1),
            jnp.stack([zeros, fy / z, -fy * y / (z * z)], axis=1),
        ],
        axis=1,
    )  # (N, 2, 3)
    cov2d = jnp.einsum("nij,njk,nlk->nil", J, cov_cam, J)  # (N, 2, 2)

    # Sanitize behind-camera Gaussians so no NaN/Inf reaches the kernel (torch skips
    # them with `continue`; here they get a collapsed bbox + zero opacity instead).
    eye2 = jnp.eye(2, dtype=jnp.float32)
    cov2d = jnp.where(valid[:, None, None], cov2d, eye2)
    mean2d = jnp.where(valid[:, None], mean2d, 0.0)
    u = mean2d[:, 0]
    v = mean2d[:, 1]

    cov_inv = jnp.linalg.inv(cov2d)  # glue, not hot path

    # _compute_bbox via eigh of the 2x2 covariance (glue, not hot path)
    eigvals, eigvecs = jnp.linalg.eigh(cov2d)  # ascending, like torch
    size = 3.0 * jnp.sqrt(jnp.abs(eigvals))  # (N, 2)
    c1 = mean2d + size[:, 0:1] * eigvecs[:, :, 0]
    c2 = mean2d - size[:, 0:1] * eigvecs[:, :, 0]
    c3 = mean2d + size[:, 1:2] * eigvecs[:, :, 1]
    c4 = mean2d - size[:, 1:2] * eigvecs[:, :, 1]
    corners = jnp.stack([c1, c2, c3, c4], axis=1)  # (N, 4, 2)
    cmin = corners.min(axis=1)
    cmax = corners.max(axis=1)
    xmin = jnp.maximum(0.0, jnp.floor(cmin[:, 0]))
    ymin = jnp.maximum(0.0, jnp.floor(cmin[:, 1]))
    xmax = jnp.minimum(float(Wimg), jnp.ceil(cmax[:, 0]))
    ymax = jnp.minimum(float(Himg), jnp.ceil(cmax[:, 1]))

    # Collapse bboxes of invalid Gaussians -> the kernel's scalar cull skips them.
    xmin = jnp.where(valid, xmin, 0.0)
    xmax = jnp.where(valid, xmax, 0.0)
    ymin = jnp.where(valid, ymin, 0.0)
    ymax = jnp.where(valid, ymax, 0.0)

    op_eff = opacities * valid.astype(jnp.float32)

    params = jnp.stack(
        [
            u, v,
            -0.5 * cov_inv[:, 0, 0],
            -0.5 * (cov_inv[:, 0, 1] + cov_inv[:, 1, 0]),
            -0.5 * cov_inv[:, 1, 1],
            op_eff,
            colors[:, 0], colors[:, 1], colors[:, 2],
            xmin, xmax, ymin, ymax,
        ],
        axis=0,
    ).astype(jnp.float32)  # (P_DIM, N) -- long axis last for SMEM

    # torch.argsort(depths, descending=True): composite far -> near
    order = jnp.argsort(-z)
    params = params[:, order]

    n = params.shape[1]
    n_pad = -(-n // gpb) * gpb
    if n_pad != n:
        params = jnp.pad(params, ((0, 0), (0, n_pad - n)))  # zero-padded => culled
    return params


def _round_up(x, m):
    return -(-x // m) * m


def _pick_tile(dim_pad, unit, pref):
    """Largest multiple of `unit`, <= pref, that divides dim_pad (dim_pad % unit == 0)."""
    t = min(pref, dim_pad)
    t = (t // unit) * unit
    while dim_pad % t != 0:
        t -= unit
    return t


def gaussian_render(means, covariance_matrices, colors, opacities, camera,
                    *, gaussians_per_block=8):
    """JAX/Pallas equivalent of GaussianRenderer.forward. Returns (H, W, 3) float32."""
    H = int(camera["height"])
    W = int(camera["width"])

    params = _prepare_params(means, covariance_matrices, colors, opacities, camera,
                             gaussians_per_block)
    n_pad = params.shape[1]
    n_blocks = n_pad // gaussians_per_block

    # Lane-dense padded render target; cropped back to (H, W) below.
    h_pad = _round_up(H, 8)
    w_pad = _round_up(W, 128)
    th = _pick_tile(h_pad, 8, 128)
    tw = _pick_tile(w_pad, 128, 256)

    kernel = functools.partial(_render_kernel, th=th, tw=tw, gpb=gaussians_per_block)

    img_chw = pl.pallas_call(
        kernel,
        out_shape=jax.ShapeDtypeStruct((3, h_pad, w_pad), jnp.float32),
        grid=(h_pad // th, w_pad // tw, n_blocks),
        in_specs=[pl.BlockSpec(memory_space=pltpu.MemorySpace.SMEM)],
        # Same output block for every Gaussian-block step -> the tile stays resident
        # in VMEM as an accumulator across the sequential far->near loop.
        out_specs=pl.BlockSpec((3, th, tw), lambda i, j, b: (0, i, j)),
        compiler_params=pltpu.CompilerParams(
            dimension_semantics=("parallel", "parallel", "arbitrary"),
            vmem_limit_bytes=32 * 1024 * 1024,
        ),
    )(params)

    return jnp.transpose(img_chw[:, :H, :W], (1, 2, 0))  # -> (H, W, 3)


def _reference_render(params, H, W):
    """Pure-JAX reference of the masked compositing loop (same parameter table)."""
    py, px = jnp.meshgrid(
        jnp.arange(H, dtype=jnp.float32), jnp.arange(W, dtype=jnp.float32), indexing="ij"
    )
    img = jnp.zeros((H, W, 3), jnp.float32)
    for i in range(params.shape[1]):
        p = params[:, i]
        dx = px - p[0]
        dy = py - p[1]
        w = jnp.exp(p[2] * dx * dx + p[3] * dx * dy + p[4] * dy * dy)
        in_bbox = (px >= p[9]) & (px < p[10]) & (py >= p[11]) & (py < p[12])
        alpha = jnp.where(in_bbox, w * p[5], 0.0)[..., None]
        color = p[6:9][None, None, :]
        img = color * alpha + img * (1.0 - alpha)
    return img


if __name__ == "__main__":
    key = jax.random.PRNGKey(0)
    k_means, k_cov, k_col, k_op = jax.random.split(key, 4)

    N = 12
    H, W = 40, 48  # exercises lane padding (W -> 128) and cropping

    means = jax.random.uniform(k_means, (N, 3), jnp.float32, -1.0, 1.0)
    means = means.at[0, 2].set(-8.0)  # one Gaussian behind the camera -> cull path
    A = jax.random.uniform(k_cov, (N, 3, 3), jnp.float32, -0.3, 0.3)
    covariance_matrices = jnp.einsum("nij,nkj->nik", A, A) + 0.05 * jnp.eye(3)[None]
    colors = jax.random.uniform(k_col, (N, 3), jnp.float32, 0.0, 1.0)
    opacities = jax.random.uniform(k_op, (N,), jnp.float32, 0.3, 0.9)

    theta = 0.1
    R = jnp.array(
        [
            [jnp.cos(theta), 0.0, jnp.sin(theta)],
            [0.0, 1.0, 0.0],
            [-jnp.sin(theta), 0.0, jnp.cos(theta)],
        ],
        dtype=jnp.float32,
    )
    camera = dict(
        R=R,
        t=jnp.array([0.0, 0.0, 3.0], dtype=jnp.float32),
        fx=40.0, fy=40.0, cx=W / 2.0, cy=H / 2.0,
        width=W, height=H,
    )

    out = gaussian_render(means, covariance_matrices, colors, opacities, camera)
    out = jax.block_until_ready(out)

    # Correctness check against a pure-JAX composite over identical per-Gaussian params.
    params = _prepare_params(means, covariance_matrices, colors, opacities, camera, 8)
    ref = _reference_render(params, H, W)
    assert out.shape == (H, W, 3) and out.dtype == jnp.float32
    assert bool(jnp.isfinite(out).all())
    err = float(jnp.max(jnp.abs(out - ref)))
    assert jnp.allclose(out, ref, atol=2e-3, rtol=2e-3), err

    print("KERNEL_OK")
</pallas_src>

<mosaic_0001>
module attributes {stable_mosaic.version = 11 : i64} {
  func.func @_render_kernel(%arg0: i32, %arg1: i32, %arg2: i32, %arg3: memref<13x16xf32, #tpu.memory_space<smem>>, %arg4: memref<3x40x128xf32, #tpu.memory_space<vmem>>) attributes {dimension_semantics = [#tpu.dimension_semantics<parallel>, #tpu.dimension_semantics<parallel>, #tpu.dimension_semantics<arbitrary>], iteration_bounds = array<i64: 1, 1, 2>, scalar_prefetch = 0 : i64, scratch_operands = 0 : i64, tpu.core_type = #tpu.core_type<tc>, window_params = [{transform_indices = @transform_0, window_bounds = array<i64: 13, 16>}, {transform_indices = @transform_1, window_bounds = array<i64: 3, 40, 128>}]} {
    %c0_i32 = arith.constant 0 : i32
    %0 = arith.cmpi eq, %arg2, %c0_i32 : i32
    %1 = arith.extui %0 : i1 to i32
    %c0_i32_0 = arith.constant 0 : i32
    %2 = arith.cmpi ne, %1, %c0_i32_0 : i32
    scf.if %2 {
      %cst_40 = arith.constant 0.000000e+00 : f32
      %194 = vector.broadcast %cst_40 : f32 to vector<3x40x128xf32>
      %c0 = arith.constant 0 : index
      %c0_41 = arith.constant 0 : index
      %c0_42 = arith.constant 0 : index
      %195 = vector.load %arg4[%c0, %c0_41, %c0_42] : memref<3x40x128xf32, #tpu.memory_space<vmem>>, vector<3x40x128xf32>
      tpu.vector_store %arg4[%c0, %c0_41, %c0_42], %194 {strides = array<i32>} : memref<3x40x128xf32, #tpu.memory_space<vmem>>, vector<3x40x128xf32>,
    } else {
    }
    %c40_i32 = arith.constant 40 : i32
    %3 = arith.muli %arg0, %c40_i32 : i32
    %4 = arith.sitofp %3 : i32 to f32
    %c128_i32 = arith.constant 128 : i32
    %5 = arith.muli %arg1, %c128_i32 : i32
    %6 = arith.sitofp %5 : i32 to f32
    %cst = arith.constant 4.000000e+01 : f32
    %7 = arith.addf %4, %cst : f32
    %cst_1 = arith.constant 1.280000e+02 : f32
    %8 = arith.addf %6, %cst_1 : f32
    %9 = tpu.iota {dimensions = array<i32: 0>} : vector<40x128xi32>
    %10 = arith.sitofp %9 : vector<40x128xi32> to vector<40x128xf32>
    %11 = vector.broadcast %4 : f32 to vector<40x128xf32>
    %12 = arith.addf %11, %10 : vector<40x128xf32>
    %13 = tpu.iota {dimensions = array<i32: 1>} : vector<40x128xi32>
    %14 = arith.sitofp %13 : vector<40x128xi32> to vector<40x128xf32>
    %15 = vector.broadcast %6 : f32 to vector<40x128xf32>
    %16 = arith.addf %15, %14 : vector<40x128xf32>
    %c8_i32 = arith.constant 8 : i32
    %17 = arith.muli %arg2, %c8_i32 : i32
    %c0_i32_2 = arith.constant 0 : i32
    %18 = arith.addi %17, %c0_i32_2 : i32
    %c9 = arith.constant 9 : index
    %19 = arith.index_cast %18 : i32 to index
    %20 = memref.load %arg3[%c9, %19] : memref<13x16xf32, #tpu.memory_space<smem>>
    %c10 = arith.constant 10 : index
    %21 = arith.index_cast %18 : i32 to index
    %22 = memref.load %arg3[%c10, %21] : memref<13x16xf32, #tpu.memory_space<smem>>
    %c11 = arith.constant 11 : index
    %23 = arith.index_cast %18 : i32 to index
    %24 = memref.load %arg3[%c11, %23] : memref<13x16xf32, #tpu.memory_space<smem>>
    %c12 = arith.constant 12 : index
    %25 = arith.index_cast %18 : i32 to index
    %26 = memref.load %arg3[%c12, %25] : memref<13x16xf32, #tpu.memory_space<smem>>
    %27 = arith.cmpf ogt, %22, %20 : f32
    %28 = arith.cmpf ogt, %26, %24 : f32
    %29 = arith.andi %27, %28 : i1
    %30 = arith.cmpf olt, %20, %8 : f32
    %31 = arith.andi %29, %30 : i1
    %32 = arith.cmpf ogt, %22, %6 : f32
    %33 = arith.andi %31, %32 : i1
    %34 = arith.cmpf olt, %24, %7 : f32
    %35 = arith.andi %33, %34 : i1
    %36 = arith.cmpf ogt, %26, %4 : f32
    %37 = arith.andi %35, %36 : i1
    %38 = arith.extui %37 : i1 to i32
    %c0_i32_3 = arith.constant 0 : i32
    %39 = arith.cmpi ne, %38, %c0_i32_3 : i32
    scf.if %39 {
      %c0 = arith.constant 0 : index
      %194 = arith.index_cast %18 : i32 to index
      %195 = memref.load %arg3[%c0, %194] : memref<13x16xf32, #tpu.memory_space<smem>>
      %c1 = arith.constant 1 : index
      %196 = arith.index_cast %18 : i32 to index
      %197 = memref.load %arg3[%c1, %196] : memref<13x16xf32, #tpu.memory_space<smem>>
      %c2 = arith.constant 2 : index
      %198 = arith.index_cast %18 : i32 to index
      %199 = memref.load %arg3[%c2, %198] : memref<13x16xf32, #tpu.memory_space<smem>>
      %c3 = arith.constant 3 : index
      %200 = arith.index_cast %18 : i32 to index
      %201 = memref.load %arg3[%c3, %200] : memref<13x16xf32, #tpu.memory_space<smem>>
      %c4 = arith.constant 4 : index
      %202 = arith.index_cast %18 : i32 to index
      %203 = memref.load %arg3[%c4, %202] : memref<13x16xf32, #tpu.memory_space<smem>>
      %c5 = arith.constant 5 : index
      %204 = arith.index_cast %18 : i32 to index
      %205 = memref.load %arg3[%c5, %204] : memref<13x16xf32, #tpu.memory_space<smem>>
      %c6 = arith.constant 6 : index
      %206 = arith.index_cast %18 : i32 to index
      %207 = memref.load %arg3[%c6, %206] : memref<13x16xf32, #tpu.memory_space<smem>>
      %c7 = arith.constant 7 : index
      %208 = arith.index_cast %18 : i32 to index
      %209 = memref.load %arg3[%c7, %208] : memref<13x16xf32, #tpu.memory_space<smem>>
      %c8 = arith.constant 8 : index
      %210 = arith.index_cast %18 : i32 to index
      %211 = memref.load %arg3[%c8, %210] : memref<13x16xf32, #tpu.memory_space<smem>>
      %212 = vector.broadcast %195 : f32 to vector<40x128xf32>
      %213 = arith.subf %16, %212 : vector<40x128xf32>
      %214 = vector.broadcast %197 : f32 to vector<40x128xf32>
      %215 = arith.subf %12, %214 : vector<40x128xf32>
      %216 = vector.broadcast %199 : f32 to vector<40x128xf32>
      %217 = arith.mulf %216, %213 : vector<40x128xf32>
      %218 = arith.mulf %217, %213 : vector<40x128xf32>
      %219 = vector.broadcast %201 : f32 to vector<40x128xf32>
      %220 = arith.mulf %219, %213 : vector<40x128xf32>
      %221 = arith.mulf %220, %215 : vector<40x128xf32>
      %222 = arith.addf %218, %221 : vector<40x128xf32>
      %223 = vector.broadcast %203 : f32 to vector<40x128xf32>
      %224 = arith.mulf %223, %215 : vector<40x128xf32>
      %225 = arith.mulf %224, %215 : vector<40x128xf32>
      %226 = arith.addf %222, %225 : vector<40x128xf32>
      %227 = math.exp %226 : vector<40x128xf32>
      %228 = vector.broadcast %20 : f32 to vector<40x128xf32>
      %229 = arith.cmpf oge, %16, %228 : vector<40x128xf32>
      %230 = vector.broadcast %22 : f32 to vector<40x128xf32>
      %231 = arith.cmpf olt, %16, %230 : vector<40x128xf32>
      %232 = arith.andi %229, %231 : vector<40x128xi1>
      %233 = vector.broadcast %24 : f32 to vector<40x128xf32>
      %234 = arith.cmpf oge, %12, %233 : vector<40x128xf32>
      %235 = arith.andi %232, %234 : vector<40x128xi1>
      %236 = vector.broadcast %26 : f32 to vector<40x128xf32>
      %237 = arith.cmpf olt, %12, %236 : vector<40x128xf32>
      %238 = arith.andi %235, %237 : vector<40x128xi1>
      %239 = vector.broadcast %205 : f32 to vector<40x128xf32>
      %240 = arith.mulf %227, %239 : vector<40x128xf32>
      %cst_40 = arith.constant 0.000000e+00 : f32
      %241 = vector.broadcast %cst_40 : f32 to vector<40x128xf32>
      %242 = arith.select %238, %240, %241 : vector<40x128xi1>, vector<40x128xf32>
      %cst_41 = arith.constant 1.000000e+00 : f32
      %243 = vector.broadcast %cst_41 : f32 to vector<40x128xf32>
      %244 = arith.subf %243, %242 : vector<40x128xf32>
      %c0_42 = arith.constant 0 : index
      %c0_43 = arith.constant 0 : index
      %c0_44 = arith.constant 0 : index
      %245 = vector.load %arg4[%c0_42, %c0_43, %c0_44] : memref<3x40x128xf32, #tpu.memory_space<vmem>>, vector<3x40x128xf32>
      %246 = vector.broadcast %207 : f32 to vector<40x128xf32>
      %247 = arith.mulf %246, %242 : vector<40x128xf32>
      %248 = vector.extract_strided_slice %245 {offsets = [0, 0, 0], sizes = [1, 40, 128], strides = [1, 1, 1]} : vector<3x40x128xf32> to vector<1x40x128xf32>
      %249 = vector.shape_cast %248 : vector<1x40x128xf32> to vector<40x128xf32>
      %250 = arith.mulf %249, %244 : vector<40x128xf32>
      %251 = arith.addf %247, %250 : vector<40x128xf32>
      %252 = vector.broadcast %209 : f32 to vector<40x128xf32>
      %253 = arith.mulf %252, %242 : vector<40x128xf32>
      %254 = vector.extract_strided_slice %245 {offsets = [1, 0, 0], sizes = [1, 40, 128], strides = [1, 1, 1]} : vector<3x40x128xf32> to vector<1x40x128xf32>
      %255 = vector.shape_cast %254 : vector<1x40x128xf32> to vector<40x128xf32>
      %256 = arith.mulf %255, %244 : vector<40x128xf32>
      %257 = arith.addf %253, %256 : vector<40x128xf32>
      %258 = vector.broadcast %211 : f32 to vector<40x128xf32>
      %259 = arith.mulf %258, %242 : vector<40x128xf32>
      %260 = vector.extract_strided_slice %245 {offsets = [2, 0, 0], sizes = [1, 40, 128], strides = [1, 1, 1]} : vector<3x40x128xf32> to vector<1x40x128xf32>
      %261 = vector.shape_cast %260 : vector<1x40x128xf32> to vector<40x128xf32>
      %262 = arith.mulf %261, %244 : vector<40x128xf32>
      %263 = arith.addf %259, %262 : vector<40x128xf32>
      %264 = vector.shape_cast %251 : vector<40x128xf32> to vector<1x40x128xf32>
      %265 = vector.shape_cast %257 : vector<40x128xf32> to vector<1x40x128xf32>
      %266 = vector.shape_cast %263 : vector<40x128xf32> to vector<1x40x128xf32>
      %267 = tpu.concatenate %264, %265, %266 in 0 : vector<1x40x128xf32>, vector<1x40x128xf32>, vector<1x40x128xf32> -> vector<3x40x128xf32>
      %c0_45 = arith.constant 0 : index
      %c0_46 = arith.constant 0 : index
      %c0_47 = arith.constant 0 : index
      %268 = vector.load %arg4[%c0_45, %c0_46, %c0_47] : memref<3x40x128xf32, #tpu.memory_space<vmem>>, vector<3x40x128xf32>
      tpu.vector_store %arg4[%c0_45, %c0_46, %c0_47], %267 {strides = array<i32>} : memref<3x40x128xf32, #tpu.memory_space<vmem>>, vector<3x40x128xf32>,
    } else {
    }
    %c1_i32 = arith.constant 1 : i32
    %40 = arith.addi %17, %c1_i32 : i32
    %c9_4 = arith.constant 9 : index
    %41 = arith.index_cast %40 : i32 to index
    %42 = memref.load %arg3[%c9_4, %41] : memref<13x16xf32, #tpu.memory_space<smem>>
    %c10_5 = arith.constant 10 : index
    %43 = arith.index_cast %40 : i32 to index
    %44 = memref.load %arg3[%c10_5, %43] : memref<13x16xf32, #tpu.memory_space<smem>>
    %c11_6 = arith.constant 11 : index
    %45 = arith.index_cast %40 : i32 to index
    %46 = memref.load %arg3[%c11_6, %45] : memref<13x16xf32, #tpu.memory_space<smem>>
    %c12_7 = arith.constant 12 : index
    %47 = arith.index_cast %40 : i32 to index
    %48 = memref.load %arg3[%c12_7, %47] : memref<13x16xf32, #tpu.memory_space<smem>>
    %49 = arith.cmpf ogt, %44, %42 : f32
    %50 = arith.cmpf ogt, %48, %46 : f32
    %51 = arith.andi %49, %50 : i1
    %52 = arith.cmpf olt, %42, %8 : f32
    %53 = arith.andi %51, %52 : i1
    %54 = arith.cmpf ogt, %44, %6 : f32
    %55 = arith.andi %53, %54 : i1
    %56 = arith.cmpf olt, %46, %7 : f32
    %57 = arith.andi %55, %56 : i1
    %58 = arith.cmpf ogt, %48, %4 : f32
    %59 = arith.andi %57, %58 : i1
    %60 = arith.extui %59 : i1 to i32
    %c0_i32_8 = arith.constant 0 : i32
    %61 = arith.cmpi ne, %60, %c0_i32_8 : i32
    scf.if %61 {
      %c0 = arith.constant 0 : index
      %194 = arith.index_cast %40 : i32 to index
      %195 = memref.load %arg3[%c0, %194] : memref<13x16xf32, #tpu.memory_space<smem>>
      %c1 = arith.constant 1 : index
      %196 = arith.index_cast %40 : i32 to index
      %197 = memref.load %arg3[%c1, %196] : memref<13x16xf32, #tpu.memory_space<smem>>
      %c2 = arith.constant 2 : index
      %198 = arith.index_cast %40 : i32 to index
      %199 = memref.load %arg3[%c2, %198] : memref<13x16xf32, #tpu.memory_space<smem>>
      %c3 = arith.constant 3 : index
      %200 = arith.index_cast %40 : i32 to index
      %201 = memref.load %arg3[%c3, %200] : memref<13x16xf32, #tpu.memory_space<smem>>
      %c4 = arith.constant 4 : index
      %202 = arith.index_cast %40 : i32 to index
      %203 = memref.load %arg3[%c4, %202] : memref<13x16xf32, #tpu.memory_space<smem>>
      %c5 = arith.constant 5 : index
      %204 = arith.index_cast %40 : i32 to index
      %205 = memref.load %arg3[%c5, %204] : memref<13x16xf32, #tpu.memory_space<smem>>
      %c6 = arith.constant 6 : index
      %206 = arith.index_cast %40 : i32 to index
      %207 = memref.load %arg3[%c6, %206] : memref<13x16xf32, #tpu.memory_space<smem>>
      %c7 = arith.constant 7 : index
      %208 = arith.index_cast %40 : i32 to index
      %209 = memref.load %arg3[%c7, %208] : memref<13x16xf32, #tpu.memory_space<smem>>
      %c8 = arith.constant 8 : index
      %210 = arith.index_cast %40 : i32 to index
      %211 = memref.load %arg3[%c8, %210] : memref<13x16xf32, #tpu.memory_space<smem>>
      %212 = vector.broadcast %195 : f32 to vector<40x128xf32>
      %213 = arith.subf %16, %212 : vector<40x128xf32>
      %214 = vector.broadcast %197 : f32 to vector<40x128xf32>
      %215 = arith.subf %12, %214 : vector<40x128xf32>
      %216 = vector.broadcast %199 : f32 to vector<40x128xf32>
      %217 = arith.mulf %216, %213 : vector<40x128xf32>
      %218 = arith.mulf %217, %213 : vector<40x128xf32>
      %219 = vector.broadcast %201 : f32 to vector<40x128xf32>
      %220 = arith.mulf %219, %213 : vector<40x128xf32>
      %221 = arith.mulf %220, %215 : vector<40x128xf32>
      %222 = arith.addf %218, %221 : vector<40x128xf32>
      %223 = vector.broadcast %203 : f32 to vector<40x128xf32>
      %224 = arith.mulf %223, %215 : vector<40x128xf32>
      %225 = arith.mulf %224, %215 : vector<40x128xf32>
      %226 = arith.addf %222, %225 : vector<40x128xf32>
      %227 = math.exp %226 : vector<40x128xf32>
      %228 = vector.broadcast %42 : f32 to vector<40x128xf32>
      %229 = arith.cmpf oge, %16, %228 : vector<40x128xf32>
      %230 = vector.broadcast %44 : f32 to vector<40x128xf32>
      %231 = arith.cmpf olt, %16, %230 : vector<40x128xf32>
      %232 = arith.andi %229, %231 : vector<40x128xi1>
      %233 = vector.broadcast %46 : f32 to vector<40x128xf32>
      %234 = arith.cmpf oge, %12, %233 : vector<40x128xf32>
      %235 = arith.andi %232, %234 : vector<40x128xi1>
      %236 = vector.broadcast %48 : f32 to vector<40x128xf32>
      %237 = arith.cmpf olt, %12, %236 : vector<40x128xf32>
      %238 = arith.andi %235, %237 : vector<40x128xi1>
      %239 = vector.broadcast %205 : f32 to vector<40x128xf32>
      %240 = arith.mulf %227, %239 : vector<40x128xf32>
      %cst_40 = arith.constant 0.000000e+00 : f32
      %241 = vector.broadcast %cst_40 : f32 to vector<40x128xf32>
      %242 = arith.select %238, %240, %241 : vector<40x128xi1>, vector<40x128xf32>
      %cst_41 = arith.constant 1.000000e+00 : f32
      %243 = vector.broadcast %cst_41 : f32 to vector<40x128xf32>
      %244 = arith.subf %243, %242 : vector<40x128xf32>
      %c0_42 = arith.constant 0 : index
      %c0_43 = arith.constant 0 : index
      %c0_44 = arith.constant 0 : index
      %245 = vector.load %arg4[%c0_42, %c0_43, %c0_44] : memref<3x40x128xf32, #tpu.memory_space<vmem>>, vector<3x40x128xf32>
      %246 = vector.broadcast %207 : f32 to vector<40x128xf32>
      %247 = arith.mulf %246, %242 : vector<40x128xf32>
      %248 = vector.extract_strided_slice %245 {offsets = [0, 0, 0], sizes = [1, 40, 128], strides = [1, 1, 1]} : vector<3x40x128xf32> to vector<1x40x128xf32>
      %249 = vector.shape_cast %248 : vector<1x40x128xf32> to vector<40x128xf32>
      %250 = arith.mulf %249, %244 : vector<40x128xf32>
      %251 = arith.addf %247, %250 : vector<40x128xf32>
      %252 = vector.broadcast %209 : f32 to vector<40x128xf32>
      %253 = arith.mulf %252, %242 : vector<40x128xf32>
      %254 = vector.extract_strided_slice %245 {offsets = [1, 0, 0], sizes = [1, 40, 128], strides = [1, 1, 1]} : vector<3x40x128xf32> to vector<1x40x128xf32>
      %255 = vector.shape_cast %254 : vector<1x40x128xf32> to vector<40x128xf32>
      %256 = arith.mulf %255, %244 : vector<40x128xf32>
      %257 = arith.addf %253, %256 : vector<40x128xf32>
      %258 = vector.broadcast %211 : f32 to vector<40x128xf32>
      %259 = arith.mulf %258, %242 : vector<40x128xf32>
      %260 = vector.extract_strided_slice %245 {offsets = [2, 0, 0], sizes = [1, 40, 128], strides = [1, 1, 1]} : vector<3x40x128xf32> to vector<1x40x128xf32>
      %261 = vector.shape_cast %260 : vector<1x40x128xf32> to vector<40x128xf32>
      %262 = arith.mulf %261, %244 : vector<40x128xf32>
      %263 = arith.addf %259, %262 : vector<40x128xf32>
      %264 = vector.shape_cast %251 : vector<40x128xf32> to vector<1x40x128xf32>
      %265 = vector.shape_cast %257 : vector<40x128xf32> to vector<1x40x128xf32>
      %266 = vector.shape_cast %263 : vector<40x128xf32> to vector<1x40x128xf32>
      %267 = tpu.concatenate %264, %265, %266 in 0 : vector<1x40x128xf32>, vector<1x40x128xf32>, vector<1x40x128xf32> -> vector<3x40x128xf32>
      %c0_45 = arith.constant 0 : index
      %c0_46 = arith.constant 0 : index
      %c0_47 = arith.constant 0 : index
      %268 = vector.load %arg4[%c0_45, %c0_46, %c0_47] : memref<3x40x128xf32, #tpu.memory_space<vmem>>, vector<3x40x128xf32>
      tpu.vector_store %arg4[%c0_45, %c0_46, %c0_47], %267 {strides = array<i32>} : memref<3x40x128xf32, #tpu.memory_space<vmem>>, vector<3x40x128xf32>,
    } else {
    }
    %c2_i32 = arith.constant 2 : i32
    %62 = arith.addi %17, %c2_i32 : i32
    %c9_9 = arith.constant 9 : index
    %63 = arith.index_cast %62 : i32 to index
    %64 = memref.load %arg3[%c9_9, %63] : memref<13x16xf32, #tpu.memory_space<smem>>
    %c10_10 = arith.constant 10 : index
    %65 = arith.index_cast %62 : i32 to index
    %66 = memref.load %arg3[%c10_10, %65] : memref<13x16xf32, #tpu.memory_space<smem>>
    %c11_11 = arith.constant 11 : index
    %67 = arith.index_cast %62 : i32 to index
    %68 = memref.load %arg3[%c11_11, %67] : memref<13x16xf32, #tpu.memory_space<smem>>
    %c12_12 = arith.constant 12 : index
    %69 = arith.index_cast %62 : i32 to index
    %70 = memref.load %arg3[%c12_12, %69] : memref<13x16xf32, #tpu.memory_space<smem>>
    %71 = arith.cmpf ogt, %66, %64 : f32
    %72 = arith.cmpf ogt, %70, %68 : f32
    %73 = arith.andi %71, %72 : i1
    %74 = arith.cmpf olt, %64, %8 : f32
    %75 = arith.andi %73, %74 : i1
    %76 = arith.cmpf ogt, %66, %6 : f32
    %77 = arith.andi %75, %76 : i1
    %78 = arith.cmpf olt, %68, %7 : f32
    %79 = arith.andi %77, %78 : i1
    %80 = arith.cmpf ogt, %70, %4 : f32
    %81 = arith.andi %79, %80 : i1
    %82 = arith.extui %81 : i1 to i32
    %c0_i32_13 = arith.constant 0 : i32
    %83 = arith.cmpi ne, %82, %c0_i32_13 : i32
    scf.if %83 {
      %c0 = arith.constant 0 : index
      %194 = arith.index_cast %62 : i32 to index
      %195 = memref.load %arg3[%c0, %194] : memref<13x16xf32, #tpu.memory_space<smem>>
      %c1 = arith.constant 1 : index
      %196 = arith.index_cast %62 : i32 to index
      %197 = memref.load %arg3[%c1, %196] : memref<13x16xf32, #tpu.memory_space<smem>>
      %c2 = arith.constant 2 : index
      %198 = arith.index_cast %62 : i32 to index
      %199 = memref.load %arg3[%c2, %198] : memref<13x16xf32, #tpu.memory_space<smem>>
      %c3 = arith.constant 3 : index
      %200 = arith.index_cast %62 : i32 to index
      %201 = memref.load %arg3[%c3, %200] : memref<13x16xf32, #tpu.memory_space<smem>>
      %c4 = arith.constant 4 : index
      %202 = arith.index_cast %62 : i32 to index
      %203 = memref.load %arg3[%c4, %202] : memref<13x16xf32, #tpu.memory_space<smem>>
      %c5 = arith.constant 5 : index
      %204 = arith.index_cast %62 : i32 to index
      %205 = memref.load %arg3[%c5, %204] : memref<13x16xf32, #tpu.memory_space<smem>>
      %c6 = arith.constant 6 : index
      %206 = arith.index_cast %62 : i32 to index
      %207 = memref.load %arg3[%c6, %206] : memref<13x16xf32, #tpu.memory_space<smem>>
      %c7 = arith.constant 7 : index
      %208 = arith.index_cast %62 : i32 to index
      %209 = memref.load %arg3[%c7, %208] : memref<13x16xf32, #tpu.memory_space<smem>>
      %c8 = arith.constant 8 : index
      %210 = arith.index_cast %62 : i32 to index
      %211 = memref.load %arg3[%c8, %210] : memref<13x16xf32, #tpu.memory_space<smem>>
      %212 = vector.broadcast %195 : f32 to vector<40x128xf32>
      %213 = arith.subf %16, %212 : vector<40x128xf32>
      %214 = vector.broadcast %197 : f32 to vector<40x128xf32>
      %215 = arith.subf %12, %214 : vector<40x128xf32>
      %216 = vector.broadcast %199 : f32 to vector<40x128xf32>
      %217 = arith.mulf %216, %213 : vector<40x128xf32>
      %218 = arith.mulf %217, %213 : vector<40x128xf32>
      %219 = vector.broadcast %201 : f32 to vector<40x128xf32>
      %220 = arith.mulf %219, %213 : vector<40x128xf32>
      %221 = arith.mulf %220, %215 : vector<40x128xf32>
      %222 = arith.addf %218, %221 : vector<40x128xf32>
      %223 = vector.broadcast %203 : f32 to vector<40x128xf32>
      %224 = arith.mulf %223, %215 : vector<40x128xf32>
      %225 = arith.mulf %224, %215 : vector<40x128xf32>
      %226 = arith.addf %222, %225 : vector<40x128xf32>
      %227 = math.exp %226 : vector<40x128xf32>
      %228 = vector.broadcast %64 : f32 to vector<40x128xf32>
      %229 = arith.cmpf oge, %16, %228 : vector<40x128xf32>
      %230 = vector.broadcast %66 : f32 to vector<40x128xf32>
      %231 = arith.cmpf olt, %16, %230 : vector<40x128xf32>
      %232 = arith.andi %229, %231 : vector<40x128xi1>
      %233 = vector.broadcast %68 : f32 to vector<40x128xf32>
      %234 = arith.cmpf oge, %12, %233 : vector<40x128xf32>
      %235 = arith.andi %232, %234 : vector<40x128xi1>
      %236 = vector.broadcast %70 : f32 to vector<40x128xf32>
      %237 = arith.cmpf olt, %12, %236 : vector<40x128xf32>
      %238 = arith.andi %235, %237 : vector<40x128xi1>
      %239 = vector.broadcast %205 : f32 to vector<40x128xf32>
      %240 = arith.mulf %227, %239 : vector<40x128xf32>
      %cst_40 = arith.constant 0.000000e+00 : f32
      %241 = vector.broadcast %cst_40 : f32 to vector<40x128xf32>
      %242 = arith.select %238, %240, %241 : vector<40x128xi1>, vector<40x128xf32>
      %cst_41 = arith.constant 1.000000e+00 : f32
      %243 = vector.broadcast %cst_41 : f32 to vector<40x128xf32>
      %244 = arith.subf %243, %242 : vector<40x128xf32>
      %c0_42 = arith.constant 0 : index
      %c0_43 = arith.constant 0 : index
      %c0_44 = arith.constant 0 : index
      %245 = vector.load %arg4[%c0_42, %c0_43, %c0_44] : memref<3x40x128xf32, #tpu.memory_space<vmem>>, vector<3x40x128xf32>
      %246 = vector.broadcast %207 : f32 to vector<40x128xf32>
      %247 = arith.mulf %246, %242 : vector<40x128xf32>
      %248 = vector.extract_strided_slice %245 {offsets = [0, 0, 0], sizes = [1, 40, 128], strides = [1, 1, 1]} : vector<3x40x128xf32> to vector<1x40x128xf32>
      %249 = vector.shape_cast %248 : vector<1x40x128xf32> to vector<40x128xf32>
      %250 = arith.mulf %249, %244 : vector<40x128xf32>
      %251 = arith.addf %247, %250 : vector<40x128xf32>
      %252 = vector.broadcast %209 : f32 to vector<40x128xf32>
      %253 = arith.mulf %252, %242 : vector<40x128xf32>
      %254 = vector.extract_strided_slice %245 {offsets = [1, 0, 0], sizes = [1, 40, 128], strides = [1, 1, 1]} : vector<3x40x128xf32> to vector<1x40x128xf32>
      %255 = vector.shape_cast %254 : vector<1x40x128xf32> to vector<40x128xf32>
      %256 = arith.mulf %255, %244 : vector<40x128xf32>
      %257 = arith.addf %253, %256 : vector<40x128xf32>
      %258 = vector.broadcast %211 : f32 to vector<40x128xf32>
      %259 = arith.mulf %258, %242 : vector<40x128xf32>
      %260 = vector.extract_strided_slice %245 {offsets = [2, 0, 0], sizes = [1, 40, 128], strides = [1, 1, 1]} : vector<3x40x128xf32> to vector<1x40x128xf32>
      %261 = vector.shape_cast %260 : vector<1x40x128xf32> to vector<40x128xf32>
      %262 = arith.mulf %261, %244 : vector<40x128xf32>
      %263 = arith.addf %259, %262 : vector<40x128xf32>
      %264 = vector.shape_cast %251 : vector<40x128xf32> to vector<1x40x128xf32>
      %265 = vector.shape_cast %257 : vector<40x128xf32> to vector<1x40x128xf32>
      %266 = vector.shape_cast %263 : vector<40x128xf32> to vector<1x40x128xf32>
      %267 = tpu.concatenate %264, %265, %266 in 0 : vector<1x40x128xf32>, vector<1x40x128xf32>, vector<1x40x128xf32> -> vector<3x40x128xf32>
      %c0_45 = arith.constant 0 : index
      %c0_46 = arith.constant 0 : index
      %c0_47 = arith.constant 0 : index
      %268 = vector.load %arg4[%c0_45, %c0_46, %c0_47] : memref<3x40x128xf32, #tpu.memory_space<vmem>>, vector<3x40x128xf32>
      tpu.vector_store %arg4[%c0_45, %c0_46, %c0_47], %267 {strides = array<i32>} : memref<3x40x128xf32, #tpu.memory_space<vmem>>, vector<3x40x128xf32>,
    } else {
    }
    %c3_i32 = arith.constant 3 : i32
    %84 = arith.addi %17, %c3_i32 : i32
    %c9_14 = arith.constant 9 : index
    %85 = arith.index_cast %84 : i32 to index
    %86 = memref.load %arg3[%c9_14, %85] : memref<13x16xf32, #tpu.memory_space<smem>>
    %c10_15 = arith.constant 10 : index
    %87 = arith.index_cast %84 : i32 to index
    %88 = memref.load %arg3[%c10_15, %87] : memref<13x16xf32, #tpu.memory_space<smem>>
    %c11_16 = arith.constant 11 : index
    %89 = arith.index_cast %84 : i32 to index
    %90 = memref.load %arg3[%c11_16, %89] : memref<13x16xf32, #tpu.memory_space<smem>>
    %c12_17 = arith.constant 12 : index
    %91 = arith.index_cast %84 : i32 to index
    %92 = memref.load %arg3[%c12_17, %91] : memref<13x16xf32, #tpu.memory_space<smem>>
    %93 = arith.cmpf ogt, %88, %86 : f32
    %94 = arith.cmpf ogt, %92, %90 : f32
    %95 = arith.andi %93, %94 : i1
    %96 = arith.cmpf olt, %86, %8 : f32
    %97 = arith.andi %95, %96 : i1
    %98 = arith.cmpf ogt, %88, %6 : f32
    %99 = arith.andi %97, %98 : i1
    %100 = arith.cmpf olt, %90, %7 : f32
    %101 = arith.andi %99, %100 : i1
    %102 = arith.cmpf ogt, %92, %4 : f32
    %103 = arith.andi %101, %102 : i1
    %104 = arith.extui %103 : i1 to i32
    %c0_i32_18 = arith.constant 0 : i32
    %105 = arith.cmpi ne, %104, %c0_i32_18 : i32
    scf.if %105 {
      %c0 = arith.constant 0 : index
      %194 = arith.index_cast %84 : i32 to index
      %195 = memref.load %arg3[%c0, %194] : memref<13x16xf32, #tpu.memory_space<smem>>
      %c1 = arith.constant 1 : index
      %196 = arith.index_cast %84 : i32 to index
      %197 = memref.load %arg3[%c1, %196] : memref<13x16xf32, #tpu.memory_space<smem>>
      %c2 = arith.constant 2 : index
      %198 = arith.index_cast %84 : i32 to index
      %199 = memref.load %arg3[%c2, %198] : memref<13x16xf32, #tpu.memory_space<smem>>
      %c3 = arith.constant 3 : index
      %200 = arith.index_cast %84 : i32 to index
      %201 = memref.load %arg3[%c3, %200] : memref<13x16xf32, #tpu.memory_space<smem>>
      %c4 = arith.constant 4 : index
      %202 = arith.index_cast %84 : i32 to index
      %203 = memref.load %arg3[%c4, %202] : memref<13x16xf32, #tpu.memory_space<smem>>
      %c5 = arith.constant 5 : index
      %204 = arith.index_cast %84 : i32 to index
      %205 = memref.load %arg3[%c5, %204] : memref<13x16xf32, #tpu.memory_space<smem>>
      %c6 = arith.constant 6 : index
      %206 = arith.index_cast %84 : i32 to index
      %207 = memref.load %arg3[%c6, %206] : memref<13x16xf32, #tpu.memory_space<smem>>
      %c7 = arith.constant 7 : index
      %208 = arith.index_cast %84 : i32 to index
      %209 = memref.load %arg3[%c7, %208] : memref<13x16xf32, #tpu.memory_space<smem>>
      %c8 = arith.constant 8 : index
      %210 = arith.index_cast %84 : i32 to index
      %211 = memref.load %arg3[%c8, %210] : memref<13x16xf32, #tpu.memory_space<smem>>
      %212 = vector.broadcast %195 : f32 to vector<40x128xf32>
      %213 = arith.subf %16, %212 : vector<40x128xf32>
      %214 = vector.broadcast %197 : f32 to vector<40x128xf32>
      %215 = arith.subf %12, %214 : vector<40x128xf32>
      %216 = vector.broadcast %199 : f32 to vector<40x128xf32>
      %217 = arith.mulf %216, %213 : vector<40x128xf32>
      %218 = arith.mulf %217, %213 : vector<40x128xf32>
      %219 = vector.broadcast %201 : f32 to vector<40x128xf32>
      %220 = arith.mulf %219, %213 : vector<40x128xf32>
      %221 = arith.mulf %220, %215 : vector<40x128xf32>
      %222 = arith.addf %218, %221 : vector<40x128xf32>
      %223 = vector.broadcast %203 : f32 to vector<40x128xf32>
      %224 = arith.mulf %223, %215 : vector<40x128xf32>
      %225 = arith.mulf %224, %215 : vector<40x128xf32>
      %226 = arith.addf %222, %225 : vector<40x128xf32>
      %227 = math.exp %226 : vector<40x128xf32>
      %228 = vector.broadcast %86 : f32 to vector<40x128xf32>
      %229 = arith.cmpf oge, %16, %228 : vector<40x128xf32>
      %230 = vector.broadcast %88 : f32 to vector<40x128xf32>
      %231 = arith.cmpf olt, %16, %230 : vector<40x128xf32>
      %232 = arith.andi %229, %231 : vector<40x128xi1>
      %233 = vector.broadcast %90 : f32 to vector<40x128xf32>
      %234 = arith.cmpf oge, %12, %233 : vector<40x128xf32>
      %235 = arith.andi %232, %234 : vector<40x128xi1>
      %236 = vector.broadcast %92 : f32 to vector<40x128xf32>
      %237 = arith.cmpf olt, %12, %236 : vector<40x128xf32>
      %238 = arith.andi %235, %237 : vector<40x128xi1>
      %239 = vector.broadcast %205 : f32 to vector<40x128xf32>
      %240 = arith.mulf %227, %239 : vector<40x128xf32>
      %cst_40 = arith.constant 0.000000e+00 : f32
      %241 = vector.broadcast %cst_40 : f32 to vector<40x128xf32>
      %242 = arith.select %238, %240, %241 : vector<40x128xi1>, vector<40x128xf32>
      %cst_41 = arith.constant 1.000000e+00 : f32
      %243 = vector.broadcast %cst_41 : f32 to vector<40x128xf32>
      %244 = arith.subf %243, %242 : vector<40x128xf32>
      %c0_42 = arith.constant 0 : index
      %c0_43 = arith.constant 0 : index
      %c0_44 = arith.constant 0 : index
      %245 = vector.load %arg4[%c0_42, %c0_43, %c0_44] : memref<3x40x128xf32, #tpu.memory_space<vmem>>, vector<3x40x128xf32>
      %246 = vector.broadcast %207 : f32 to vector<40x128xf32>
      %247 = arith.mulf %246, %242 : vector<40x128xf32>
      %248 = vector.extract_strided_slice %245 {offsets = [0, 0, 0], sizes = [1, 40, 128], strides = [1, 1, 1]} : vector<3x40x128xf32> to vector<1x40x128xf32>
      %249 = vector.shape_cast %248 : vector<1x40x128xf32> to vector<40x128xf32>
      %250 = arith.mulf %249, %244 : vector<40x128xf32>
      %251 = arith.addf %247, %250 : vector<40x128xf32>
      %252 = vector.broadcast %209 : f32 to vector<40x128xf32>
      %253 = arith.mulf %252, %242 : vector<40x128xf32>
      %254 = vector.extract_strided_slice %245 {offsets = [1, 0, 0], sizes = [1, 40, 128], strides = [1, 1, 1]} : vector<3x40x128xf32> to vector<1x40x128xf32>
      %255 = vector.shape_cast %254 : vector<1x40x128xf32> to vector<40x128xf32>
      %256 = arith.mulf %255, %244 : vector<40x128xf32>
      %257 = arith.addf %253, %256 : vector<40x128xf32>
      %258 = vector.broadcast %211 : f32 to vector<40x128xf32>
      %259 = arith.mulf %258, %242 : vector<40x128xf32>
      %260 = vector.extract_strided_slice %245 {offsets = [2, 0, 0], sizes = [1, 40, 128], strides = [1, 1, 1]} : vector<3x40x128xf32> to vector<1x40x128xf32>
      %261 = vector.shape_cast %260 : vector<1x40x128xf32> to vector<40x128xf32>
      %262 = arith.mulf %261, %244 : vector<40x128xf32>
      %263 = arith.addf %259, %262 : vector<40x128xf32>
      %264 = vector.shape_cast %251 : vector<40x128xf32> to vector<1x40x128xf32>
      %265 = vector.shape_cast %257 : vector<40x128xf32> to vector<1x40x128xf32>
      %266 = vector.shape_cast %263 : vector<40x128xf32> to vector<1x40x128xf32>
      %267 = tpu.concatenate %264, %265, %266 in 0 : vector<1x40x128xf32>, vector<1x40x128xf32>, vector<1x40x128xf32> -> vector<3x40x128xf32>
      %c0_45 = arith.constant 0 : index
      %c0_46 = arith.constant 0 : index
      %c0_47 = arith.constant 0 : index
      %268 = vector.load %arg4[%c0_45, %c0_46, %c0_47] : memref<3x40x128xf32, #tpu.memory_space<vmem>>, vector<3x40x128xf32>
      tpu.vector_store %arg4[%c0_45, %c0_46, %c0_47], %267 {strides = array<i32>} : memref<3x40x128xf32, #tpu.memory_space<vmem>>, vector<3x40x128xf32>,
    } else {
    }
    %c4_i32 = arith.constant 4 : i32
    %106 = arith.addi %17, %c4_i32 : i32
    %c9_19 = arith.constant 9 : index
    %107 = arith.index_cast %106 : i32 to index
    %108 = memref.load %arg3[%c9_19, %107] : memref<13x16xf32, #tpu.memory_space<smem>>
    %c10_20 = arith.constant 10 : index
    %109 = arith.index_cast %106 : i32 to index
    %110 = memref.load %arg3[%c10_20, %109] : memref<13x16xf32, #tpu.memory_space<smem>>
    %c11_21 = arith.constant 11 : index
    %111 = arith.index_cast %106 : i32 to index
    %112 = memref.load %arg3[%c11_21, %111] : memref<13x16xf32, #tpu.memory_space<smem>>
    %c12_22 = arith.constant 12 : index
    %113 = arith.index_cast %106 : i32 to index
    %114 = memref.load %arg3[%c12_22, %113] : memref<13x16xf32, #tpu.memory_space<smem>>
    %115 = arith.cmpf ogt, %110, %108 : f32
    %116 = arith.cmpf ogt, %114, %112 : f32
    %117 = arith.andi %115, %116 : i1
    %118 = arith.cmpf olt, %108, %8 : f32
    %119 = arith.andi %117, %118 : i1
    %120 = arith.cmpf ogt, %110, %6 : f32
    %121 = arith.andi %119, %120 : i1
    %122 = arith.cmpf olt, %112, %7 : f32
    %123 = arith.andi %121, %122 : i1
    %124 = arith.cmpf ogt, %114, %4 : f32
    %125 = arith.andi %123, %124 : i1
    %126 = arith.extui %125 : i1 to i32
    %c0_i32_23 = arith.constant 0 : i32
    %127 = arith.cmpi ne, %126, %c0_i32_23 : i32
    scf.if %127 {
      %c0 = arith.constant 0 : index
      %194 = arith.index_cast %106 : i32 to index
      %195 = memref.load %arg3[%c0, %194] : memref<13x16xf32, #tpu.memory_space<smem>>
      %c1 = arith.constant 1 : index
      %196 = arith.index_cast %106 : i32 to index
      %197 = memref.load %arg3[%c1, %196] : memref<13x16xf32, #tpu.memory_space<smem>>
      %c2 = arith.constant 2 : index
      %198 = arith.index_cast %106 : i32 to index
      %199 = memref.load %arg3[%c2, %198] : memref<13x16xf32, #tpu.memory_space<smem>>
      %c3 = arith.constant 3 : index
      %200 = arith.index_cast %106 : i32 to index
      %201 = memref.load %arg3[%c3, %200] : memref<13x16xf32, #tpu.memory_space<smem>>
      %c4 = arith.constant 4 : index
      %202 = arith.index_cast %106 : i32 to index
      %203 = memref.load %arg3[%c4, %202] : memref<13x16xf32, #tpu.memory_space<smem>>
      %c5 = arith.constant 5 : index
      %204 = arith.index_cast %106 : i32 to index
      %205 = memref.load %arg3[%c5, %204] : memref<13x16xf32, #tpu.memory_space<smem>>
      %c6 = arith.constant 6 : index
      %206 = arith.index_cast %106 : i32 to index
      %207 = memref.load %arg3[%c6, %206] : memref<13x16xf32, #tpu.memory_space<smem>>
      %c7 = arith.constant 7 : index
      %208 = arith.index_cast %106 : i32 to index
      %209 = memref.load %arg3[%c7, %208] : memref<13x16xf32, #tpu.memory_space<smem>>
      %c8 = arith.constant 8 : index
      %210 = arith.index_cast %106 : i32 to index
      %211 = memref.load %arg3[%c8, %210] : memref<13x16xf32, #tpu.memory_space<smem>>
      %212 = vector.broadcast %195 : f32 to vector<40x128xf32>
      %213 = arith.subf %16, %212 : vector<40x128xf32>
      %214 = vector.broadcast %197 : f32 to vector<40x128xf32>
      %215 = arith.subf %12, %214 : vector<40x128xf32>
      %216 = vector.broadcast %199 : f32 to vector<40x128xf32>
      %217 = arith.mulf %216, %213 : vector<40x128xf32>
      %218 = arith.mulf %217, %213 : vector<40x128xf32>
      %219 = vector.broadcast %201 : f32 to vector<40x128xf32>
      %220 = arith.mulf %219, %213 : vector<40x128xf32>
      %221 = arith.mulf %220, %215 : vector<40x128xf32>
      %222 = arith.addf %218, %221 : vector<40x128xf32>
      %223 = vector.broadcast %203 : f32 to vector<40x128xf32>
      %224 = arith.mulf %223, %215 : vector<40x128xf32>
      %225 = arith.mulf %224, %215 : vector<40x128xf32>
      %226 = arith.addf %222, %225 : vector<40x128xf32>
      %227 = math.exp %226 : vector<40x128xf32>
      %228 = vector.broadcast %108 : f32 to vector<40x128xf32>
      %229 = arith.cmpf oge, %16, %228 : vector<40x128xf32>
      %230 = vector.broadcast %110 : f32 to vector<40x128xf32>
      %231 = arith.cmpf olt, %16, %230 : vector<40x128xf32>
      %232 = arith.andi %229, %231 : vector<40x128xi1>
      %233 = vector.broadcast %112 : f32 to vector<40x128xf32>
      %234 = arith.cmpf oge, %12, %233 : vector<40x128xf32>
      %235 = arith.andi %232, %234 : vector<40x128xi1>
      %236 = vector.broadcast %114 : f32 to vector<40x128xf32>
      %237 = arith.cmpf olt, %12, %236 : vector<40x128xf32>
      %238 = arith.andi %235, %237 : vector<40x128xi1>
      %239 = vector.broadcast %205 : f32 to vector<40x128xf32>
      %240 = arith.mulf %227, %239 : vector<40x128xf32>
      %cst_40 = arith.constant 0.000000e+00 : f32
      %241 = vector.broadcast %cst_40 : f32 to vector<40x128xf32>
      %242 = arith.select %238, %240, %241 : vector<40x128xi1>, vector<40x128xf32>
      %cst_41 = arith.constant 1.000000e+00 : f32
      %243 = vector.broadcast %cst_41 : f32 to vector<40x128xf32>
      %244 = arith.subf %243, %242 : vector<40x128xf32>
      %c0_42 = arith.constant 0 : index
      %c0_43 = arith.constant 0 : index
      %c0_44 = arith.constant 0 : index
      %245 = vector.load %arg4[%c0_42, %c0_43, %c0_44] : memref<3x40x128xf32, #tpu.memory_space<vmem>>, vector<3x40x128xf32>
      %246 = vector.broadcast %207 : f32 to vector<40x128xf32>
      %247 = arith.mulf %246, %242 : vector<40x128xf32>
      %248 = vector.extract_strided_slice %245 {offsets = [0, 0, 0], sizes = [1, 40, 128], strides = [1, 1, 1]} : vector<3x40x128xf32> to vector<1x40x128xf32>
      %249 = vector.shape_cast %248 : vector<1x40x128xf32> to vector<40x128xf32>
      %250 = arith.mulf %249, %244 : vector<40x128xf32>
      %251 = arith.addf %247, %250 : vector<40x128xf32>
      %252 = vector.broadcast %209 : f32 to vector<40x128xf32>
      %253 = arith.mulf %252, %242 : vector<40x128xf32>
      %254 = vector.extract_strided_slice %245 {offsets = [1, 0, 0], sizes = [1, 40, 128], strides = [1, 1, 1]} : vector<3x40x128xf32> to vector<1x40x128xf32>
      %255 = vector.shape_cast %254 : vector<1x40x128xf32> to vector<40x128xf32>
      %256 = arith.mulf %255, %244 : vector<40x128xf32>
      %257 = arith.addf %253, %256 : vector<40x128xf32>
      %258 = vector.broadcast %211 : f32 to vector<40x128xf32>
      %259 = arith.mulf %258, %242 : vector<40x128xf32>
      %260 = vector.extract_strided_slice %245 {offsets = [2, 0, 0], sizes = [1, 40, 128], strides = [1, 1, 1]} : vector<3x40x128xf32> to vector<1x40x128xf32>
      %261 = vector.shape_cast %260 : vector<1x40x128xf32> to vector<40x128xf32>
      %262 = arith.mulf %261, %244 : vector<40x128xf32>
      %263 = arith.addf %259, %262 : vector<40x128xf32>
      %264 = vector.shape_cast %251 : vector<40x128xf32> to vector<1x40x128xf32>
      %265 = vector.shape_cast %257 : vector<40x128xf32> to vector<1x40x128xf32>
      %266 = vector.shape_cast %263 : vector<40x128xf32> to vector<1x40x128xf32>
      %267 = tpu.concatenate %264, %265, %266 in 0 : vector<1x40x128xf32>, vector<1x40x128xf32>, vector<1x40x128xf32> -> vector<3x40x128xf32>
      %c0_45 = arith.constant 0 : index
      %c0_46 = arith.constant 0 : index
      %c0_47 = arith.constant 0 : index
      %268 = vector.load %arg4[%c0_45, %c0_46, %c0_47] : memref<3x40x128xf32, #tpu.memory_space<vmem>>, vector<3x40x128xf32>
      tpu.vector_store %arg4[%c0_45, %c0_46, %c0_47], %267 {strides = array<i32>} : memref<3x40x128xf32, #tpu.memory_space<vmem>>, vector<3x40x128xf32>,
    } else {
    }
    %c5_i32 = arith.constant 5 : i32
    %128 = arith.addi %17, %c5_i32 : i32
    %c9_24 = arith.constant 9 : index
    %129 = arith.index_cast %128 : i32 to index
    %130 = memref.load %arg3[%c9_24, %129] : memref<13x16xf32, #tpu.memory_space<smem>>
    %c10_25 = arith.constant 10 : index
    %131 = arith.index_cast %128 : i32 to index
    %132 = memref.load %arg3[%c10_25, %131] : memref<13x16xf32, #tpu.memory_space<smem>>
    %c11_26 = arith.constant 11 : index
    %133 = arith.index_cast %128 : i32 to index
    %134 = memref.load %arg3[%c11_26, %133] : memref<13x16xf32, #tpu.memory_space<smem>>
    %c12_27 = arith.constant 12 : index
    %135 = arith.index_cast %128 : i32 to index
    %136 = memref.load %arg3[%c12_27, %135] : memref<13x16xf32, #tpu.memory_space<smem>>
    %137 = arith.cmpf ogt, %132, %130 : f32
    %138 = arith.cmpf ogt, %136, %134 : f32
    %139 = arith.andi %137, %138 : i1
    %140 = arith.cmpf olt, %130, %8 : f32
    %141 = arith.andi %139, %140 : i1
    %142 = arith.cmpf ogt, %132, %6 : f32
    %143 = arith.andi %141, %142 : i1
    %144 = arith.cmpf olt, %134, %7 : f32
    %145 = arith.andi %143, %144 : i1
    %146 = arith.cmpf ogt, %136, %4 : f32
    %147 = arith.andi %145, %146 : i1
    %148 = arith.extui %147 : i1 to i32
    %c0_i32_28 = arith.constant 0 : i32
    %149 = arith.cmpi ne, %148, %c0_i32_28 : i32
    scf.if %149 {
      %c0 = arith.constant 0 : index
      %194 = arith.index_cast %128 : i32 to index
      %195 = memref.load %arg3[%c0, %194] : memref<13x16xf32, #tpu.memory_space<smem>>
      %c1 = arith.constant 1 : index
      %196 = arith.index_cast %128 : i32 to index
      %197 = memref.load %arg3[%c1, %196] : memref<13x16xf32, #tpu.memory_space<smem>>
      %c2 = arith.constant 2 : index
      %198 = arith.index_cast %128 : i32 to index
      %199 = memref.load %arg3[%c2, %198] : memref<13x16xf32, #tpu.memory_space<smem>>
      %c3 = arith.constant 3 : index
      %200 = arith.index_cast %128 : i32 to index
      %201 = memref.load %arg3[%c3, %200] : memref<13x16xf32, #tpu.memory_space<smem>>
      %c4 = arith.constant 4 : index
      %202 = arith.index_cast %128 : i32 to index
      %203 = memref.load %arg3[%c4, %202] : memref<13x16xf32, #tpu.memory_space<smem>>
      %c5 = arith.constant 5 : index
      %204 = arith.index_cast %128 : i32 to index
      %205 = memref.load %arg3[%c5, %204] : memref<13x16xf32, #tpu.memory_space<smem>>
      %c6 = arith.constant 6 : index
      %206 = arith.index_cast %128 : i32 to index
      %207 = memref.load %arg3[%c6, %206] : memref<13x16xf32, #tpu.memory_space<smem>>
      %c7 = arith.constant 7 : index
      %208 = arith.index_cast %128 : i32 to index
      %209 = memref.load %arg3[%c7, %208] : memref<13x16xf32, #tpu.memory_space<smem>>
      %c8 = arith.constant 8 : index
      %210 = arith.index_cast %128 : i32 to index
      %211 = memref.load %arg3[%c8, %210] : memref<13x16xf32, #tpu.memory_space<smem>>
      %212 = vector.broadcast %195 : f32 to vector<40x128xf32>
      %213 = arith.subf %16, %212 : vector<40x128xf32>
      %214 = vector.broadcast %197 : f32 to vector<40x128xf32>
      %215 = arith.subf %12, %214 : vector<40x128xf32>
      %216 = vector.broadcast %199 : f32 to vector<40x128xf32>
      %217 = arith.mulf %216, %213 : vector<40x128xf32>
      %218 = arith.mulf %217, %213 : vector<40x128xf32>
      %219 = vector.broadcast %201 : f32 to vector<40x128xf32>
      %220 = arith.mulf %219, %213 : vector<40x128xf32>
      %221 = arith.mulf %220, %215 : vector<40x128xf32>
      %222 = arith.addf %218, %221 : vector<40x128xf32>
      %223 = vector.broadcast %203 : f32 to vector<40x128xf32>
      %224 = arith.mulf %223, %215 : vector<40x128xf32>
      %225 = arith.mulf %224, %215 : vector<40x128xf32>
      %226 = arith.addf %222, %225 : vector<40x128xf32>
      %227 = math.exp %226 : vector<40x128xf32>
      %228 = vector.broadcast %130 : f32 to vector<40x128xf32>
      %229 = arith.cmpf oge, %16, %228 : vector<40x128xf32>
      %230 = vector.broadcast %132 : f32 to vector<40x128xf32>
      %231 = arith.cmpf olt, %16, %230 : vector<40x128xf32>
      %232 = arith.andi %229, %231 : vector<40x128xi1>
      %233 = vector.broadcast %134 : f32 to vector<40x128xf32>
      %234 = arith.cmpf oge, %12, %233 : vector<40x128xf32>
      %235 = arith.andi %232, %234 : vector<40x128xi1>
      %236 = vector.broadcast %136 : f32 to vector<40x128xf32>
      %237 = arith.cmpf olt, %12, %236 : vector<40x128xf32>
      %238 = arith.andi %235, %237 : vector<40x128xi1>
      %239 = vector.broadcast %205 : f32 to vector<40x128xf32>
      %240 = arith.mulf %227, %239 : vector<40x128xf32>
      %cst_40 = arith.constant 0.000000e+00 : f32
      %241 = vector.broadcast %cst_40 : f32 to vector<40x128xf32>
      %242 = arith.select %238, %240, %241 : vector<40x128xi1>, vector<40x128xf32>
      %cst_41 = arith.constant 1.000000e+00 : f32
      %243 = vector.broadcast %cst_41 : f32 to vector<40x128xf32>
      %244 = arith.subf %243, %242 : vector<40x128xf32>
      %c0_42 = arith.constant 0 : index
      %c0_43 = arith.constant 0 : index
      %c0_44 = arith.constant 0 : index
      %245 = vector.load %arg4[%c0_42, %c0_43, %c0_44] : memref<3x40x128xf32, #tpu.memory_space<vmem>>, vector<3x40x128xf32>
      %246 = vector.broadcast %207 : f32 to vector<40x128xf32>
      %247 = arith.mulf %246, %242 : vector<40x128xf32>
      %248 = vector.extract_strided_slice %245 {offsets = [0, 0, 0], sizes = [1, 40, 128], strides = [1, 1, 1]} : vector<3x40x128xf32> to vector<1x40x128xf32>
      %249 = vector.shape_cast %248 : vector<1x40x128xf32> to vector<40x128xf32>
      %250 = arith.mulf %249, %244 : vector<40x128xf32>
      %251 = arith.addf %247, %250 : vector<40x128xf32>
      %252 = vector.broadcast %209 : f32 to vector<40x128xf32>
      %253 = arith.mulf %252, %242 : vector<40x128xf32>
      %254 = vector.extract_strided_slice %245 {offsets = [1, 0, 0], sizes = [1, 40, 128], strides = [1, 1, 1]} : vector<3x40x128xf32> to vector<1x40x128xf32>
      %255 = vector.shape_cast %254 : vector<1x40x128xf32> to vector<40x128xf32>
      %256 = arith.mulf %255, %244 : vector<40x128xf32>
      %257 = arith.addf %253, %256 : vector<40x128xf32>
      %258 = vector.broadcast %211 : f32 to vector<40x128xf32>
      %259 = arith.mulf %258, %242 : vector<40x128xf32>
      %260 = vector.extract_strided_slice %245 {offsets = [2, 0, 0], sizes = [1, 40, 128], strides = [1, 1, 1]} : vector<3x40x128xf32> to vector<1x40x128xf32>
      %261 = vector.shape_cast %260 : vector<1x40x128xf32> to vector<40x128xf32>
      %262 = arith.mulf %261, %244 : vector<40x128xf32>
      %263 = arith.addf %259, %262 : vector<40x128xf32>
      %264 = vector.shape_cast %251 : vector<40x128xf32> to vector<1x40x128xf32>
      %265 = vector.shape_cast %257 : vector<40x128xf32> to vector<1x40x128xf32>
      %266 = vector.shape_cast %263 : vector<40x128xf32> to vector<1x40x128xf32>
      %267 = tpu.concatenate %264, %265, %266 in 0 : vector<1x40x128xf32>, vector<1x40x128xf32>, vector<1x40x128xf32> -> vector<3x40x128xf32>
      %c0_45 = arith.constant 0 : index
      %c0_46 = arith.constant 0 : index
      %c0_47 = arith.constant 0 : index
      %268 = vector.load %arg4[%c0_45, %c0_46, %c0_47] : memref<3x40x128xf32, #tpu.memory_space<vmem>>, vector<3x40x128xf32>
      tpu.vector_store %arg4[%c0_45, %c0_46, %c0_47], %267 {strides = array<i32>} : memref<3x40x128xf32, #tpu.memory_space<vmem>>, vector<3x40x128xf32>,
    } else {
    }
    %c6_i32 = arith.constant 6 : i32
    %150 = arith.addi %17, %c6_i32 : i32
    %c9_29 = arith.constant 9 : index
    %151 = arith.index_cast %150 : i32 to index
    %152 = memref.load %arg3[%c9_29, %151] : memref<13x16xf32, #tpu.memory_space<smem>>
    %c10_30 = arith.constant 10 : index
    %153 = arith.index_cast %150 : i32 to index
    %154 = memref.load %arg3[%c10_30, %153] : memref<13x16xf32, #tpu.memory_space<smem>>
    %c11_31 = arith.constant 11 : index
    %155 = arith.index_cast %150 : i32 to index
    %156 = memref.load %arg3[%c11_31, %155] : memref<13x16xf32, #tpu.memory_space<smem>>
    %c12_32 = arith.constant 12 : index
    %157 = arith.index_cast %150 : i32 to index
    %158 = memref.load %arg3[%c12_32, %157] : memref<13x16xf32, #tpu.memory_space<smem>>
    %159 = arith.cmpf ogt, %154, %152 : f32
    %160 = arith.cmpf ogt, %158, %156 : f32
    %161 = arith.andi %159, %160 : i1
    %162 = arith.cmpf olt, %152, %8 : f32
    %163 = arith.andi %161, %162 : i1
    %164 = arith.cmpf ogt, %154, %6 : f32
    %165 = arith.andi %163, %164 : i1
    %166 = arith.cmpf olt, %156, %7 : f32
    %167 = arith.andi %165, %166 : i1
    %168 = arith.cmpf ogt, %158, %4 : f32
    %169 = arith.andi %167, %168 : i1
    %170 = arith.extui %169 : i1 to i32
    %c0_i32_33 = arith.constant 0 : i32
    %171 = arith.cmpi ne, %170, %c0_i32_33 : i32
    scf.if %171 {
      %c0 = arith.constant 0 : index
      %194 = arith.index_cast %150 : i32 to index
      %195 = memref.load %arg3[%c0, %194] : memref<13x16xf32, #tpu.memory_space<smem>>
      %c1 = arith.constant 1 : index
      %196 = arith.index_cast %150 : i32 to index
      %197 = memref.load %arg3[%c1, %196] : memref<13x16xf32, #tpu.memory_space<smem>>
      %c2 = arith.constant 2 : index
      %198 = arith.index_cast %150 : i32 to index
      %199 = memref.load %arg3[%c2, %198] : memref<13x16xf32, #tpu.memory_space<smem>>
      %c3 = arith.constant 3 : index
      %200 = arith.index_cast %150 : i32 to index
      %201 = memref.load %arg3[%c3, %200] : memref<13x16xf32, #tpu.memory_space<smem>>
      %c4 = arith.constant 4 : index
      %202 = arith.index_cast %150 : i32 to index
      %203 = memref.load %arg3[%c4, %202] : memref<13x16xf32, #tpu.memory_space<smem>>
      %c5 = arith.constant 5 : index
      %204 = arith.index_cast %150 : i32 to index
      %205 = memref.load %arg3[%c5, %204] : memref<13x16xf32, #tpu.memory_space<smem>>
      %c6 = arith.constant 6 : index
      %206 = arith.index_cast %150 : i32 to index
      %207 = memref.load %arg3[%c6, %206] : memref<13x16xf32, #tpu.memory_space<smem>>
      %c7 = arith.constant 7 : index
      %208 = arith.index_cast %150 : i32 to index
      %209 = memref.load %arg3[%c7, %208] : memref<13x16xf32, #tpu.memory_space<smem>>
      %c8 = arith.constant 8 : index
      %210 = arith.index_cast %150 : i32 to index
      %211 = memref.load %arg3[%c8, %210] : memref<13x16xf32, #tpu.memory_space<smem>>
      %212 = vector.broadcast %195 : f32 to vector<40x128xf32>
      %213 = arith.subf %16, %212 : vector<40x128xf32>
      %214 = vector.broadcast %197 : f32 to vector<40x128xf32>
      %215 = arith.subf %12, %214 : vector<40x128xf32>
      %216 = vector.broadcast %199 : f32 to vector<40x128xf32>
      %217 = arith.mulf %216, %213 : vector<40x128xf32>
      %218 = arith.mulf %217, %213 : vector<40x128xf32>
      %219 = vector.broadcast %201 : f32 to vector<40x128xf32>
      %220 = arith.mulf %219, %213 : vector<40x128xf32>
      %221 = arith.mulf %220, %215 : vector<40x128xf32>
      %222 = arith.addf %218, %221 : vector<40x128xf32>
      %223 = vector.broadcast %203 : f32 to vector<40x128xf32>
      %224 = arith.mulf %223, %215 : vector<40x128xf32>
      %225 = arith.mulf %224, %215 : vector<40x128xf32>
      %226 = arith.addf %222, %225 : vector<40x128xf32>
      %227 = math.exp %226 : vector<40x128xf32>
      %228 = vector.broadcast %152 : f32 to vector<40x128xf32>
      %229 = arith.cmpf oge, %16, %228 : vector<40x128xf32>
      %230 = vector.broadcast %154 : f32 to vector<40x128xf32>
      %231 = arith.cmpf olt, %16, %230 : vector<40x128xf32>
      %232 = arith.andi %229, %231 : vector<40x128xi1>
      %233 = vector.broadcast %156 : f32 to vector<40x128xf32>
      %234 = arith.cmpf oge, %12, %233 : vector<40x128xf32>
      %235 = arith.andi %232, %234 : vector<40x128xi1>
      %236 = vector.broadcast %158 : f32 to vector<40x128xf32>
      %237 = arith.cmpf olt, %12, %236 : vector<40x128xf32>
      %238 = arith.andi %235, %237 : vector<40x128xi1>
      %239 = vector.broadcast %205 : f32 to vector<40x128xf32>
      %240 = arith.mulf %227, %239 : vector<40x128xf32>
      %cst_40 = arith.constant 0.000000e+00 : f32
      %241 = vector.broadcast %cst_40 : f32 to vector<40x128xf32>
      %242 = arith.select %238, %240, %241 : vector<40x128xi1>, vector<40x128xf32>
      %cst_41 = arith.constant 1.000000e+00 : f32
      %243 = vector.broadcast %cst_41 : f32 to vector<40x128xf32>
      %244 = arith.subf %243, %242 : vector<40x128xf32>
      %c0_42 = arith.constant 0 : index
      %c0_43 = arith.constant 0 : index
      %c0_44 = arith.constant 0 : index
      %245 = vector.load %arg4[%c0_42, %c0_43, %c0_44] : memref<3x40x128xf32, #tpu.memory_space<vmem>>, vector<3x40x128xf32>
      %246 = vector.broadcast %207 : f32 to vector<40x128xf32>
      %247 = arith.mulf %246, %242 : vector<40x128xf32>
      %248 = vector.extract_strided_slice %245 {offsets = [0, 0, 0], sizes = [1, 40, 128], strides = [1, 1, 1]} : vector<3x40x128xf32> to vector<1x40x128xf32>
      %249 = vector.shape_cast %248 : vector<1x40x128xf32> to vector<40x128xf32>
      %250 = arith.mulf %249, %244 : vector<40x128xf32>
      %251 = arith.addf %247, %250 : vector<40x128xf32>
      %252 = vector.broadcast %209 : f32 to vector<40x128xf32>
      %253 = arith.mulf %252, %242 : vector<40x128xf32>
      %254 = vector.extract_strided_slice %245 {offsets = [1, 0, 0], sizes = [1, 40, 128], strides = [1, 1, 1]} : vector<3x40x128xf32> to vector<1x40x128xf32>
      %255 = vector.shape_cast %254 : vector<1x40x128xf32> to vector<40x128xf32>
      %256 = arith.mulf %255, %244 : vector<40x128xf32>
      %257 = arith.addf %253, %256 : vector<40x128xf32>
      %258 = vector.broadcast %211 : f32 to vector<40x128xf32>
      %259 = arith.mulf %258, %242 : vector<40x128xf32>
      %260 = vector.extract_strided_slice %245 {offsets = [2, 0, 0], sizes = [1, 40, 128], strides = [1, 1, 1]} : vector<3x40x128xf32> to vector<1x40x128xf32>
      %261 = vector.shape_cast %260 : vector<1x40x128xf32> to vector<40x128xf32>
      %262 = arith.mulf %261, %244 : vector<40x128xf32>
      %263 = arith.addf %259, %262 : vector<40x128xf32>
      %264 = vector.shape_cast %251 : vector<40x128xf32> to vector<1x40x128xf32>
      %265 = vector.shape_cast %257 : vector<40x128xf32> to vector<1x40x128xf32>
      %266 = vector.shape_cast %263 : vector<40x128xf32> to vector<1x40x128xf32>
      %267 = tpu.concatenate %264, %265, %266 in 0 : vector<1x40x128xf32>, vector<1x40x128xf32>, vector<1x40x128xf32> -> vector<3x40x128xf32>
      %c0_45 = arith.constant 0 : index
      %c0_46 = arith.constant 0 : index
      %c0_47 = arith.constant 0 : index
      %268 = vector.load %arg4[%c0_45, %c0_46, %c0_47] : memref<3x40x128xf32, #tpu.memory_space<vmem>>, vector<3x40x128xf32>
      tpu.vector_store %arg4[%c0_45, %c0_46, %c0_47], %267 {strides = array<i32>} : memref<3x40x128xf32, #tpu.memory_space<vmem>>, vector<3x40x128xf32>,
    } else {
    }
    %c7_i32 = arith.constant 7 : i32
    %172 = arith.addi %17, %c7_i32 : i32
    %c9_34 = arith.constant 9 : index
    %173 = arith.index_cast %172 : i32 to index
    %174 = memref.load %arg3[%c9_34, %173] : memref<13x16xf32, #tpu.memory_space<smem>>
    %c10_35 = arith.constant 10 : index
    %175 = arith.index_cast %172 : i32 to index
    %176 = memref.load %arg3[%c10_35, %175] : memref<13x16xf32, #tpu.memory_space<smem>>
    %c11_36 = arith.constant 11 : index
    %177 = arith.index_cast %172 : i32 to index
    %178 = memref.load %arg3[%c11_36, %177] : memref<13x16xf32, #tpu.memory_space<smem>>
    %c12_37 = arith.constant 12 : index
    %179 = arith.index_cast %172 : i32 to index
    %180 = memref.load %arg3[%c12_37, %179] : memref<13x16xf32, #tpu.memory_space<smem>>
    %181 = arith.cmpf ogt, %176, %174 : f32
    %182 = arith.cmpf ogt, %180, %178 : f32
    %183 = arith.andi %181, %182 : i1
    %184 = arith.cmpf olt, %174, %8 : f32
    %185 = arith.andi %183, %184 : i1
    %186 = arith.cmpf ogt, %176, %6 : f32
    %187 = arith.andi %185, %186 : i1
    %188 = arith.cmpf olt, %178, %7 : f32
    %189 = arith.andi %187, %188 : i1
    %190 = arith.cmpf ogt, %180, %4 : f32
    %191 = arith.andi %189, %190 : i1
    %192 = arith.extui %191 : i1 to i32
    %c0_i32_38 = arith.constant 0 : i32
    %193 = arith.cmpi ne, %192, %c0_i32_38 : i32
    scf.if %193 {
      %c0 = arith.constant 0 : index
      %194 = arith.index_cast %172 : i32 to index
      %195 = memref.load %arg3[%c0, %194] : memref<13x16xf32, #tpu.memory_space<smem>>
      %c1 = arith.constant 1 : index
      %196 = arith.index_cast %172 : i32 to index
      %197 = memref.load %arg3[%c1, %196] : memref<13x16xf32, #tpu.memory_space<smem>>
      %c2 = arith.constant 2 : index
      %198 = arith.index_cast %172 : i32 to index
      %199 = memref.load %arg3[%c2, %198] : memref<13x16xf32, #tpu.memory_space<smem>>
      %c3 = arith.constant 3 : index
      %200 = arith.index_cast %172 : i32 to index
      %201 = memref.load %arg3[%c3, %200] : memref<13x16xf32, #tpu.memory_space<smem>>
      %c4 = arith.constant 4 : index
      %202 = arith.index_cast %172 : i32 to index
      %203 = memref.load %arg3[%c4, %202] : memref<13x16xf32, #tpu.memory_space<smem>>
      %c5 = arith.constant 5 : index
      %204 = arith.index_cast %172 : i32 to index
      %205 = memref.load %arg3[%c5, %204] : memref<13x16xf32, #tpu.memory_space<smem>>
      %c6 = arith.constant 6 : index
      %206 = arith.index_cast %172 : i32 to index
      %207 = memref.load %arg3[%c6, %206] : memref<13x16xf32, #tpu.memory_space<smem>>
      %c7 = arith.constant 7 : index
      %208 = arith.index_cast %172 : i32 to index
      %209 = memref.load %arg3[%c7, %208] : memref<13x16xf32, #tpu.memory_space<smem>>
      %c8 = arith.constant 8 : index
      %210 = arith.index_cast %172 : i32 to index
      %211 = memref.load %arg3[%c8, %210] : memref<13x16xf32, #tpu.memory_space<smem>>
      %212 = vector.broadcast %195 : f32 to vector<40x128xf32>
      %213 = arith.subf %16, %212 : vector<40x128xf32>
      %214 = vector.broadcast %197 : f32 to vector<40x128xf32>
      %215 = arith.subf %12, %214 : vector<40x128xf32>
      %216 = vector.broadcast %199 : f32 to vector<40x128xf32>
      %217 = arith.mulf %216, %213 : vector<40x128xf32>
      %218 = arith.mulf %217, %213 : vector<40x128xf32>
      %219 = vector.broadcast %201 : f32 to vector<40x128xf32>
      %220 = arith.mulf %219, %213 : vector<40x128xf32>
      %221 = arith.mulf %220, %215 : vector<40x128xf32>
      %222 = arith.addf %218, %221 : vector<40x128xf32>
      %223 = vector.broadcast %203 : f32 to vector<40x128xf32>
      %224 = arith.mulf %223, %215 : vector<40x128xf32>
      %225 = arith.mulf %224, %215 : vector<40x128xf32>
      %226 = arith.addf %222, %225 : vector<40x128xf32>
      %227 = math.exp %226 : vector<40x128xf32>
      %228 = vector.broadcast %174 : f32 to vector<40x128xf32>
      %229 = arith.cmpf oge, %16, %228 : vector<40x128xf32>
      %230 = vector.broadcast %176 : f32 to vector<40x128xf32>
      %231 = arith.cmpf olt, %16, %230 : vector<40x128xf32>
      %232 = arith.andi %229, %231 : vector<40x128xi1>
      %233 = vector.broadcast %178 : f32 to vector<40x128xf32>
      %234 = arith.cmpf oge, %12, %233 : vector<40x128xf32>
      %235 = arith.andi %232, %234 : vector<40x128xi1>
      %236 = vector.broadcast %180 : f32 to vector<40x128xf32>
      %237 = arith.cmpf olt, %12, %236 : vector<40x128xf32>
      %238 = arith.andi %235, %237 : vector<40x128xi1>
      %239 = vector.broadcast %205 : f32 to vector<40x128xf32>
      %240 = arith.mulf %227, %239 : vector<40x128xf32>
      %cst_40 = arith.constant 0.000000e+00 : f32
      %241 = vector.broadcast %cst_40 : f32 to vector<40x128xf32>
      %242 = arith.select %238, %240, %241 : vector<40x128xi1>, vector<40x128xf32>
      %cst_41 = arith.constant 1.000000e+00 : f32
      %243 = vector.broadcast %cst_41 : f32 to vector<40x128xf32>
      %244 = arith.subf %243, %242 : vector<40x128xf32>
      %c0_42 = arith.constant 0 : index
      %c0_43 = arith.constant 0 : index
      %c0_44 = arith.constant 0 : index
      %245 = vector.load %arg4[%c0_42, %c0_43, %c0_44] : memref<3x40x128xf32, #tpu.memory_space<vmem>>, vector<3x40x128xf32>
      %246 = vector.broadcast %207 : f32 to vector<40x128xf32>
      %247 = arith.mulf %246, %242 : vector<40x128xf32>
      %248 = vector.extract_strided_slice %245 {offsets = [0, 0, 0], sizes = [1, 40, 128], strides = [1, 1, 1]} : vector<3x40x128xf32> to vector<1x40x128xf32>
      %249 = vector.shape_cast %248 : vector<1x40x128xf32> to vector<40x128xf32>
      %250 = arith.mulf %249, %244 : vector<40x128xf32>
      %251 = arith.addf %247, %250 : vector<40x128xf32>
      %252 = vector.broadcast %209 : f32 to vector<40x128xf32>
      %253 = arith.mulf %252, %242 : vector<40x128xf32>
      %254 = vector.extract_strided_slice %245 {offsets = [1, 0, 0], sizes = [1, 40, 128], strides = [1, 1, 1]} : vector<3x40x128xf32> to vector<1x40x128xf32>
      %255 = vector.shape_cast %254 : vector<1x40x128xf32> to vector<40x128xf32>
      %256 = arith.mulf %255, %244 : vector<40x128xf32>
      %257 = arith.addf %253, %256 : vector<40x128xf32>
      %258 = vector.broadcast %211 : f32 to vector<40x128xf32>
      %259 = arith.mulf %258, %242 : vector<40x128xf32>
      %260 = vector.extract_strided_slice %245 {offsets = [2, 0, 0], sizes = [1, 40, 128], strides = [1, 1, 1]} : vector<3x40x128xf32> to vector<1x40x128xf32>
      %261 = vector.shape_cast %260 : vector<1x40x128xf32> to vector<40x128xf32>
      %262 = arith.mulf %261, %244 : vector<40x128xf32>
      %263 = arith.addf %259, %262 : vector<40x128xf32>
      %264 = vector.shape_cast %251 : vector<40x128xf32> to vector<1x40x128xf32>
      %265 = vector.shape_cast %257 : vector<40x128xf32> to vector<1x40x128xf32>
      %266 = vector.shape_cast %263 : vector<40x128xf32> to vector<1x40x128xf32>
      %267 = tpu.concatenate %264, %265, %266 in 0 : vector<1x40x128xf32>, vector<1x40x128xf32>, vector<1x40x128xf32> -> vector<3x40x128xf32>
      %c0_45 = arith.constant 0 : index
      %c0_46 = arith.constant 0 : index
      %c0_47 = arith.constant 0 : index
      %268 = vector.load %arg4[%c0_45, %c0_46, %c0_47] : memref<3x40x128xf32, #tpu.memory_space<vmem>>, vector<3x40x128xf32>
      tpu.vector_store %arg4[%c0_45, %c0_46, %c0_47], %267 {strides = array<i32>} : memref<3x40x128xf32, #tpu.memory_space<vmem>>, vector<3x40x128xf32>,
    } else {
    }
    %c8_i32_39 = arith.constant 8 : i32
    return
  }
  func.func @transform_0(%arg0: i32, %arg1: i32, %arg2: i32) -> (i32, i32) {
    %c0_i32 = arith.constant 0 : i32
    %c0_i32_0 = arith.constant 0 : i32
    %c0_i32_1 = arith.constant 0 : i32
    return %c0_i32, %c0_i32_0 : i32, i32
  }
  func.func @transform_1(%arg0: i32, %arg1: i32, %arg2: i32) -> (i32, i32, i32) {
    %c0_i32 = arith.constant 0 : i32
    %c0_i32_0 = arith.constant 0 : i32
    return %c0_i32, %arg0, %arg1 : i32, i32, i32
  }
}

</mosaic_0001>

<llo_original>
// kernel: tpu_custom_call.1
$region0: #{tpu_custom_call.1}
  #allocation0 [shape = 'u32[]', space=smem, size = 0x4, offset = 0x4, fixed_abs, tag = 'smem constant byte address 0x4 - core index']
  #allocation1 [shape = 'u32[144,128]{1,0:T(1,128)}', space=vmem, size = 0x12000, scoped, tag = 'internal scratch']
  %s0 = inlined_call_operand.hbm [shape: f32[13,16], index: 0, kind: input, shape index: {}]
  %s1 = inlined_call_operand.hbm [shape: f32[3,40,128], index: 1, kind: output, shape index: {}]
  %s2 = sld [smem:[#allocation0]]
  $region77: #{tpu_custom_call.1} parent=0
    _
  %s4 = ssub.s32 1, %s2
  %s5 = scalar_select 0, %s4, %s2
  $region1: #{tpu_custom_call.1} parent=0
    #allocation2 [shape = 'u8[8192]{0}', space=smem, size = 0x2000, scoped, tag = 'input window, operand 0, single buffered']
    #allocation3 [shape = 's32[2]{0}', space=sflag, size = 0x8, scoped, tag = 'scoped memory for tpu_custom_call.1']
    #allocation4 [shape = 's32[2]{0}', space=sflag, size = 0x8, scoped, tag = 'scoped memory for tpu_custom_call.1']
    #allocation5 [shape = 'u8[61440]{0}', space=vmem, size = 0xf000, scoped, tag = 'output window, operand 0, single buffered']
    %6 = vsyncpa [#allocation4], 0
    %7 = vsyncpa [#allocation3], 0
    loop: start=0, step=1, limit=4
    $region2: #{tpu_custom_call.1} parent=1 // loop_pre_header
      _
    $region3: #{tpu_custom_call.1} parent=1 // loop_header
      %s9 = sphi 0, %s13
      %p10 = scmp.ge.s32.totalorder %s9, 4
      %s16 = sphi 0, %s35
      %s17 = sphi 0, %s31
      %s18 = sphi 0, %s27
      %s19 = sphi 0, %s16
      %s20 = sphi 0, %s17
      %s21 = sphi 0, %s18
      %s22 = sphi 0, %s19
      %s23 = sphi 0, %s20
      %s24 = sphi 0, %s21
      %s36 = sphi 0, %s36
      %s38 = sphi 0, %s36
      %s39 = sphi 0, %s38
      %s53 = sphi 0, %s39
      %s61 = sphi 0, %s63
      %s64 = sphi 0, %s61
      %s65 = sphi 0, %s64
      %s81 = sphi 0, %s65
    $region4: #{tpu_custom_call.1} parent=1 // loop_header_branch
      %12 = sbr.rel (%p10) target = $region8
    $region5: #{tpu_custom_call.1} parent=1 // loop_body
      %s14 = ssub.s32 %s9, 1
      %s15 = ssub.s32 %s9, 2
      %s25 = sadd.s32 1, %s18
      %p26 = scmp.ge.s32.totalorder %s25, 2
      %s27 = scalar_select %p26, 0, %s25
      %s28 = sadd.s32 1, %s17
      %s29 = scalar_select %p26, %s28, %s17
      %p30 = scmp.ge.s32.totalorder %s29, 1
      %s31 = scalar_select %p30, 0, %s29
      %s32 = sadd.s32 1, %s16
      %s33 = scalar_select %p30, %s32, %s16
      %p34 = scmp.ge.s32.totalorder %s33, 1
      %s35 = scalar_select %p34, 0, %s33
      %s37 = sadd.s32 %s36, 1
      %p40 = scmp.eq.s32.totalorder %s9, 1
      %p41 = scmp.ne.s32.totalorder %s36, %s38
      %p42 = scmp.eq.s32.totalorder %s9, 0
      %p43 = por %p41, %p42
      %p44 = scmp.ne.s32.totalorder %s36, %s38
      %p45 = scmp.eq.s32.totalorder %s14, 1
      %p46 = por %p44, %p45
      %p47 = scmp.ne.s32.totalorder %s38, %s39
      %p48 = scmp.eq.s32.totalorder %s14, 0
      %p49 = por %p47, %p48
      %p50 = scmp.ne.s32.totalorder %s38, %s39
      %p51 = scmp.eq.s32.totalorder %s15, 1
      %p52 = por %p50, %p51
      %p54 = scmp.ne.s32.totalorder %s39, %s53
      %p55 = scmp.eq.s32.totalorder %s15, 0
      %p56 = por %p54, %p55
      %s57 = ssub.s32 %s16, %s35
      %s58 = ssub.s32 %s17, %s31
      %s59 = sor.u32 %s57, %s58
      %p60 = scmp.eq.s32.totalorder %s59, 0
      %s62 = sadd.s32 %s61, 1
      %s63 = scalar_select %p60, %s61, %s62
      %p66 = pneg %p60
      %p67 = scmp.eq.s32.totalorder %s9, 1
      %p68 = por %p66, %p67
      %p69 = scmp.ne.s32.totalorder %s61, %s64
      %p70 = scmp.eq.s32.totalorder %s9, 0
      %p71 = por %p69, %p70
      %p72 = scmp.ne.s32.totalorder %s61, %s64
      %p73 = scmp.eq.s32.totalorder %s14, 1
      %p74 = por %p72, %p73
      %p75 = scmp.ne.s32.totalorder %s64, %s65
      %p76 = scmp.eq.s32.totalorder %s14, 0
      %p77 = por %p75, %p76
      %p78 = scmp.ne.s32.totalorder %s64, %s65
      %p79 = scmp.eq.s32.totalorder %s15, 1
      %p80 = por %p78, %p79
      %p82 = scmp.ne.s32.totalorder %s65, %s81
      %p83 = scmp.eq.s32.totalorder %s15, 0
      %p84 = por %p82, %p83
      %p85 = scmp.le.s32.totalorder 1, %s9
      %p86 = scmp.lt.s32.totalorder %s9, 3
      %p87 = pnand %p85, %p86
      %p88 = pneg %p87
      // Predicated region
      $region9: #{tpu_custom_call.1} parent=5 // pred_check
        _
      $region10: #{tpu_custom_call.1} parent=5 // pred_check_branch
        %90 = sbr.rel (%p87) target = $region12
      $region11: #{tpu_custom_call.1} parent=5 // pred_region
        %s91 = ssub.s32 %s9, 1
        // Predicated region
        $region13: #{tpu_custom_call.1} parent=11 // pred_check
          %p92 = pneg %p49
        $region14: #{tpu_custom_call.1} parent=11 // pred_check_branch
          %94 = sbr.rel (%p92) target = $region16
        $region15: #{tpu_custom_call.1} parent=11 // pred_region
          %s96 = ssub.s32 256, 256
          %97 = vsyncadd [#allocation4], %s96
          %102 = dma.hbm_to_smem %s0, 256, [#allocation2], [#allocation4], 128, 128, 8
        $region16: #{tpu_custom_call.1} parent=11 // pred_fallthru
          _
      $region12: #{tpu_custom_call.1} parent=5 // pred_fallthru
        _
      %p103 = scmp.lt.s32.totalorder %s9, 2
      // Predicated region
      $region17: #{tpu_custom_call.1} parent=5 // pred_check
        %p104 = pneg %p103
      $region18: #{tpu_custom_call.1} parent=5 // pred_check_branch
        %106 = sbr.rel (%p104) target = $region20
      $region19: #{tpu_custom_call.1} parent=5 // pred_region
        _
      $region20: #{tpu_custom_call.1} parent=5 // pred_fallthru
        _
      %p107 = scmp.le.s32.totalorder 1, %s9
      %p108 = scmp.lt.s32.totalorder %s9, 3
      %p109 = pnand %p107, %p108
      %p110 = pneg %p109
      // Predicated region
      $region21: #{tpu_custom_call.1} parent=5 // pred_check
        _
      $region22: #{tpu_custom_call.1} parent=5 // pred_check_branch
        %112 = sbr.rel (%p109) target = $region24
      $region23: #{tpu_custom_call.1} parent=5 // pred_region
        %s113 = ssub.s32 %s9, 1
        // Predicated region
        $region25: #{tpu_custom_call.1} parent=23 // pred_check
          %p114 = pneg %p49
        $region26: #{tpu_custom_call.1} parent=23 // pred_check_branch
          %116 = sbr.rel (%p114) target = $region28
        $region27: #{tpu_custom_call.1} parent=23 // pred_region
          %117 = dma.done [#allocation4], 256
        $region28: #{tpu_custom_call.1} parent=23 // pred_fallthru
          _
        %118 = sfence
        %p119 = pneg %p49
        %p120 = pneg %p46
        %p121 = pneg %p77
        %p122 = pneg %p74
        %s123 = smul.u32 5, %s19
        %p124 = scmp.eq.s32.totalorder %s21, 0
        // Predicated region
        $region29: #{tpu_custom_call.1} parent=23 // pred_check
          %p125 = pneg %p124
        $region30: #{tpu_custom_call.1} parent=23 // pred_check_branch
          %127 = sbr.rel (%p125) target = $region32
        $region31: #{tpu_custom_call.1} parent=23 // pred_region
          %128 = vst [vmem:[#allocation5] sm:$0xff] 0.0
          %129 = vst [vmem:[#allocation5 + $0x8] sm:$0xff] 0.0
          %130 = vst [vmem:[#allocation5 + $0x10] sm:$0xff] 0.0
          %131 = vst [vmem:[#allocation5 + $0x18] sm:$0xff] 0.0
          %132 = vst [vmem:[#allocation5 + $0x20] sm:$0xff] 0.0
          %133 = vst [vmem:[#allocation5 + $0x28] sm:$0xff] 0.0
          %134 = vst [vmem:[#allocation5 + $0x30] sm:$0xff] 0.0
          %135 = vst [vmem:[#allocation5 + $0x38] sm:$0xff] 0.0
          %136 = vst [vmem:[#allocation5 + $0x40] sm:$0xff] 0.0
          %137 = vst [vmem:[#allocation5 + $0x48] sm:$0xff] 0.0
          %138 = vst [vmem:[#allocation5 + $0x50] sm:$0xff] 0.0
          %139 = vst [vmem:[#allocation5 + $0x58] sm:$0xff] 0.0
          %140 = vst [vmem:[#allocation5 + $0x60] sm:$0xff] 0.0
          %141 = vst [vmem:[#allocation5 + $0x68] sm:$0xff] 0.0
          %142 = vst [vmem:[#allocation5 + $0x70] sm:$0xff] 0.0
        $region32: #{tpu_custom_call.1} parent=23 // pred_fallthru
          _
        %s143 = smul.u32 %s19, 40
        %s144 = scvt.s32.f32 %s143
        %s145 = smul.u32 %s20, 128
        %s146 = scvt.s32.f32 %s145
        %s147 = sadd.f32 %s144, 40.0
        %s148 = sadd.f32 %s146, 128.0
        %v149 = vlaneseq
        %v150 = vshrl.u32 %v149, 7
        %v151 = vadd.s32 %v150, 8
        %v152 = vadd.s32 %v150, 16
        %v153 = vadd.s32 %v150, 24
        %v154 = vadd.s32 %v150, 32
        %v155 = vcvt.s32.f32 %v150
        %v156 = vcvt.s32.f32 %v151
        %v157 = vcvt.s32.f32 %v152
        %v158 = vcvt.s32.f32 %v153
        %v159 = vcvt.s32.f32 %v154
        %v160 = vstv %s144
        %v161 = vadd.f32 %v160, %v155
        %v162 = vadd.f32 %v160, %v156
        %v163 = vadd.f32 %v160, %v157
        %v164 = vadd.f32 %v160, %v158
        %v165 = vadd.f32 %v160, %v159
        %v166 = vlaneseq
        %v167 = vand.u32 %v166, 127
        %v168 = vcvt.s32.f32 %v167
        %v169 = vstv %s146
        %v170 = vadd.f32 %v169, %v168
        %s171 = smul.u32 %s21, 8
        %s172 = sshra.s32 %s171, 7
        %s173 = sand.u32 %s171, 127
        %s174 = sadd.s32 %s172, 9
        %s175 = smul.u32 %s174, 128
        %s176 = sshra.s32 %s171, 7
        %s177 = sand.u32 %s171, 127
        %s178 = sadd.s32 %s175, %s177
        %s179 = sld [smem:[#allocation2 + %s178]]
        %s180 = sadd.s32 %s172, 10
        %s181 = smul.u32 %s180, 128
        %s182 = sadd.s32 %s181, %s177
        %s183 = sld [smem:[#allocation2 + %s182]]
        %s184 = sadd.s32 %s172, 11
        %s185 = smul.u32 %s184, 128
        %s186 = sadd.s32 %s185, %s177
        %s187 = sld [smem:[#allocation2 + %s186]]
        %s188 = sadd.s32 %s172, 12
        %s189 = smul.u32 %s188, 128
        %s190 = sadd.s32 %s189, %s177
        %s191 = sld [smem:[#allocation2 + %s190]]
        %p192 = scmp.gt.f32.partialorder %s183, %s179
        %p193 = scmp.gt.f32.partialorder %s191, %s187
        %p194 = pnand %p192, %p193
        %p195 = pneg %p194
        %p196 = scmp.lt.f32.partialorder %s179, %s148
        %p197 = pnand %p195, %p196
        %p198 = pneg %p197
        %p199 = scmp.gt.f32.partialorder %s183, %s146
        %p200 = pnand %p198, %p199
        %p201 = pneg %p200
        %p202 = scmp.lt.f32.partialorder %s187, %s147
        %p203 = pnand %p201, %p202
        %p204 = pneg %p203
        %p205 = scmp.gt.f32.partialorder %s191, %s144
        %p206 = pnand %p204, %p205
        %p207 = pneg %p206
        // Predicated region
        $region33: #{tpu_custom_call.1} parent=23 // pred_check
          _
        $region34: #{tpu_custom_call.1} parent=23 // pred_check_branch
          %209 = sbr.rel (%p206) target = $region36
        $region35: #{tpu_custom_call.1} parent=23 // pred_region
          %s210 = sld [smem:[#allocation2 + %s171]]
          %s211 = sadd.s32 %s172, 1
          %s212 = smul.u32 %s211, 128
          %s213 = sadd.s32 %s212, %s177
          %s214 = sld [smem:[#allocation2 + %s213]]
          %s215 = sadd.s32 %s172, 2
          %s216 = smul.u32 %s215, 128
          %s217 = sadd.s32 %s216, %s177
          %s218 = sld [smem:[#allocation2 + %s217]]
          %s219 = sadd.s32 %s172, 3
          %s220 = smul.u32 %s219, 128
          %s221 = sadd.s32 %s220, %s177
          %s222 = sld [smem:[#allocation2 + %s221]]
          %s223 = sadd.s32 %s172, 4
          %s224 = smul.u32 %s223, 128
          %s225 = sadd.s32 %s224, %s177
          %s226 = sld [smem:[#allocation2 + %s225]]
          %s227 = sadd.s32 %s172, 5
          %s228 = smul.u32 %s227, 128
          %s229 = sadd.s32 %s228, %s177
          %s230 = sld [smem:[#allocation2 + %s229]]
          %s231 = sadd.s32 %s172, 6
          %s232 = smul.u32 %s231, 128
          %s233 = sadd.s32 %s232, %s177
          %s234 = sld [smem:[#allocation2 + %s233]]
          %s235 = sadd.s32 %s172, 7
          %s236 = smul.u32 %s235, 128
          %s237 = sadd.s32 %s236, %s177
          %s238 = sld [smem:[#allocation2 + %s237]]
          %s239 = sadd.s32 %s172, 8
          %s240 = smul.u32 %s239, 128
          %s241 = sadd.s32 %s240, %s177
          %s242 = sld [smem:[#allocation2 + %s241]]
          %v243 = vstv %s210
          %v244 = vsub.f32 %v170, %v243
          %v245 = vstv %s214
          %v246 = vsub.f32 %v161, %v245
          %v247 = vsub.f32 %v162, %v245
          %v248 = vsub.f32 %v163, %v245
          %v249 = vsub.f32 %v164, %v245
          %v250 = vsub.f32 %v165, %v245
          %v251 = vstv %s218
          %v252 = vmul.f32 %v251, %v244
          %v253 = vmul.f32 %v252, %v244
          %v254 = vstv %s222
          %v255 = vmul.f32 %v254, %v244
          %v256 = vmul.f32 %v255, %v246
          %v257 = vmul.f32 %v255, %v247
          %v258 = vmul.f32 %v255, %v248
          %v259 = vmul.f32 %v255, %v249
          %v260 = vmul.f32 %v255, %v250
          %v261 = vadd.f32 %v253, %v256
          %v262 = vadd.f32 %v253, %v257
          %v263 = vadd.f32 %v253, %v258
          %v264 = vadd.f32 %v253, %v259
          %v265 = vadd.f32 %v253, %v260
          %v266 = vstv %s226
          %v267 = vmul.f32 %v266, %v246
          %v268 = vmul.f32 %v266, %v247
          %v269 = vmul.f32 %v266, %v248
          %v270 = vmul.f32 %v266, %v249
          %v271 = vmul.f32 %v266, %v250
          %v272 = vmul.f32 %v267, %v246
          %v273 = vmul.f32 %v268, %v247
          %v274 = vmul.f32 %v269, %v248
          %v275 = vmul.f32 %v270, %v249
          %v276 = vmul.f32 %v271, %v250
          %v277 = vadd.f32 %v261, %v272
          %v278 = vadd.f32 %v262, %v273
          %v279 = vadd.f32 %v263, %v274
          %v280 = vadd.f32 %v264, %v275
          %v281 = vadd.f32 %v265, %v276
          %v282 = vmul.f32 %v277, 1.442695
          %v283 = vpow.pop %v282
          %v284 = vmul.f32 %v278, 1.442695
          %v285 = vpow.pop %v284
          %v286 = vmul.f32 %v279, 1.442695
          %v287 = vpow.pop %v286
          %v288 = vmul.f32 %v280, 1.442695
          %v289 = vpow.pop %v288
          %v290 = vmul.f32 %v281, 1.442695
          %v291 = vpow.pop %v290
          %v292 = vstv %s179
          %vm293 = vcmp.ge.f32.partialorder %v170, %v292
          %v294 = vstv %s183
          %vm295 = vcmp.lt.f32.partialorder %v170, %v294
          %vm296 = vmand %vm293, %vm295
          %v297 = vstv %s187
          %vm298 = vcmp.ge.f32.partialorder %v161, %v297
          %vm299 = vcmp.ge.f32.partialorder %v162, %v297
          %vm300 = vcmp.ge.f32.partialorder %v163, %v297
          %vm301 = vcmp.ge.f32.partialorder %v164, %v297
          %vm302 = vcmp.ge.f32.partialorder %v165, %v297
          %vm303 = vmand %vm296, %vm298
          %vm304 = vmand %vm296, %vm299
          %vm305 = vmand %vm296, %vm300
          %vm306 = vmand %vm296, %vm301
          %vm307 = vmand %vm296, %vm302
          %v308 = vstv %s191
          %vm309 = vcmp.lt.f32.partialorder %v161, %v308
          %vm310 = vcmp.lt.f32.partialorder %v162, %v308
          %vm311 = vcmp.lt.f32.partialorder %v163, %v308
          %vm312 = vcmp.lt.f32.partialorder %v164, %v308
          %vm313 = vcmp.lt.f32.partialorder %v165, %v308
          %vm314 = vmand %vm303, %vm309
          %vm315 = vmand %vm304, %vm310
          %vm316 = vmand %vm305, %vm311
          %vm317 = vmand %vm306, %vm312
          %vm318 = vmand %vm307, %vm313
          %v319 = vstv %s230
          %v320 = vmul.f32 %v283, %v319
          %v321 = vmul.f32 %v285, %v319
          %v322 = vmul.f32 %v287, %v319
          %v323 = vmul.f32 %v289, %v319
          %v324 = vmul.f32 %v291, %v319
          %v325 = vsel %vm314, %v320, 0.0
          %v326 = vsel %vm315, %v321, 0.0
          %v327 = vsel %vm316, %v322, 0.0
          %v328 = vsel %vm317, %v323, 0.0
          %v329 = vsel %vm318, %v324, 0.0
          %v330 = vsub.f32 1.0, %v325
          %v331 = vsub.f32 1.0, %v326
          %v332 = vsub.f32 1.0, %v327
          %v333 = vsub.f32 1.0, %v328
          %v334 = vsub.f32 1.0, %v329
          %v335 = vld [vmem:[#allocation5] sm:$0xff]
          %v336 = vld [vmem:[#allocation5 + $0x8] sm:$0xff]
          %v337 = vld [vmem:[#allocation5 + $0x10] sm:$0xff]
          %v338 = vld [vmem:[#allocation5 + $0x18] sm:$0xff]
          %v339 = vld [vmem:[#allocation5 + $0x20] sm:$0xff]
          %v340 = vld [vmem:[#allocation5 + $0x28] sm:$0xff]
          %v341 = vld [vmem:[#allocation5 + $0x30] sm:$0xff]
          %v342 = vld [vmem:[#allocation5 + $0x38] sm:$0xff]
          %v343 = vld [vmem:[#allocation5 + $0x40] sm:$0xff]
          %v344 = vld [vmem:[#allocation5 + $0x48] sm:$0xff]
          %v345 = vld [vmem:[#allocation5 + $0x50] sm:$0xff]
          %v346 = vld [vmem:[#allocation5 + $0x58] sm:$0xff]
          %v347 = vld [vmem:[#allocation5 + $0x60] sm:$0xff]
          %v348 = vld [vmem:[#allocation5 + $0x68] sm:$0xff]
          %v349 = vld [vmem:[#allocation5 + $0x70] sm:$0xff]
          %v350 = vstv %s234
          %v351 = vmul.f32 %v350, %v325
          %v352 = vmul.f32 %v350, %v326
          %v353 = vmul.f32 %v350, %v327
          %v354 = vmul.f32 %v350, %v328
          %v355 = vmul.f32 %v350, %v329
          %v356 = vmul.f32 %v335, %v330
          %v357 = vmul.f32 %v336, %v331
          %v358 = vmul.f32 %v337, %v332
          %v359 = vmul.f32 %v338, %v333
          %v360 = vmul.f32 %v339, %v334
          %v361 = vadd.f32 %v351, %v356
          %v362 = vadd.f32 %v352, %v357
          %v363 = vadd.f32 %v353, %v358
          %v364 = vadd.f32 %v354, %v359
          %v365 = vadd.f32 %v355, %v360
          %v366 = vstv %s238
          %v367 = vmul.f32 %v366, %v325
          %v368 = vmul.f32 %v366, %v326
          %v369 = vmul.f32 %v366, %v327
          %v370 = vmul.f32 %v366, %v328
          %v371 = vmul.f32 %v366, %v329
          %v372 = vmul.f32 %v340, %v330
          %v373 = vmul.f32 %v341, %v331
          %v374 = vmul.f32 %v342, %v332
          %v375 = vmul.f32 %v343, %v333
          %v376 = vmul.f32 %v344, %v334
          %v377 = vadd.f32 %v367, %v372
          %v378 = vadd.f32 %v368, %v373
          %v379 = vadd.f32 %v369, %v374
          %v380 = vadd.f32 %v370, %v375
          %v381 = vadd.f32 %v371, %v376
          %v382 = vstv %s242
          %v383 = vmul.f32 %v382, %v325
          %v384 = vmul.f32 %v382, %v326
          %v385 = vmul.f32 %v382, %v327
          %v386 = vmul.f32 %v382, %v328
          %v387 = vmul.f32 %v382, %v329
          %v388 = vmul.f32 %v345, %v330
          %v389 = vmul.f32 %v346, %v331
          %v390 = vmul.f32 %v347, %v332
          %v391 = vmul.f32 %v348, %v333
          %v392 = vmul.f32 %v349, %v334
          %v393 = vadd.f32 %v383, %v388
          %v394 = vadd.f32 %v384, %v389
          %v395 = vadd.f32 %v385, %v390
          %v396 = vadd.f32 %v386, %v391
          %v397 = vadd.f32 %v387, %v392
          %398 = vst [vmem:[#allocation5] sm:$0xff] %v361
          %399 = vst [vmem:[#allocation5 + $0x8] sm:$0xff] %v362
          %400 = vst [vmem:[#allocation5 + $0x10] sm:$0xff] %v363
          %401 = vst [vmem:[#allocation5 + $0x18] sm:$0xff] %v364
          %402 = vst [vmem:[#allocation5 + $0x20] sm:$0xff] %v365
          %403 = vst [vmem:[#allocation5 + $0x28] sm:$0xff] %v377
          %404 = vst [vmem:[#allocation5 + $0x30] sm:$0xff] %v378
          %405 = vst [vmem:[#allocation5 + $0x38] sm:$0xff] %v379
          %406 = vst [vmem:[#allocation5 + $0x40] sm:$0xff] %v380
          %407 = vst [vmem:[#allocation5 + $0x48] sm:$0xff] %v381
          %408 = vst [vmem:[#allocation5 + $0x50] sm:$0xff] %v393
          %409 = vst [vmem:[#allocation5 + $0x58] sm:$0xff] %v394
          %410 = vst [vmem:[#allocation5 + $0x60] sm:$0xff] %v395
          %411 = vst [vmem:[#allocation5 + $0x68] sm:$0xff] %v396
          %412 = vst [vmem:[#allocation5 + $0x70] sm:$0xff] %v397
        $region36: #{tpu_custom_call.1} parent=23 // pred_fallthru
          _
        %s413 = sadd.s32 %s171, 1
        %s414 = sshra.s32 %s413, 7
        %s415 = sand.u32 %s413, 127
        %s416 = sadd.s32 %s414, 9
        %s417 = smul.u32 %s416, 128
        %s418 = sshra.s32 %s413, 7
        %s419 = sand.u32 %s413, 127
        %s420 = sadd.s32 %s417, %s419
        %s421 = sld [smem:[#allocation2 + %s420]]
        %s422 = sadd.s32 %s414, 10
        %s423 = smul.u32 %s422, 128
        %s424 = sadd.s32 %s423, %s419
        %s425 = sld [smem:[#allocation2 + %s424]]
        %s426 = sadd.s32 %s414, 11
        %s427 = smul.u32 %s426, 128
        %s428 = sadd.s32 %s427, %s419
        %s429 = sld [smem:[#allocation2 + %s428]]
        %s430 = sadd.s32 %s414, 12
        %s431 = smul.u32 %s430, 128
        %s432 = sadd.s32 %s431, %s419
        %s433 = sld [smem:[#allocation2 + %s432]]
        %p434 = scmp.gt.f32.partialorder %s425, %s421
        %p435 = scmp.gt.f32.partialorder %s433, %s429
        %p436 = pnand %p434, %p435
        %p437 = pneg %p436
        %p438 = scmp.lt.f32.partialorder %s421, %s148
        %p439 = pnand %p437, %p438
        %p440 = pneg %p439
        %p441 = scmp.gt.f32.partialorder %s425, %s146
        %p442 = pnand %p440, %p441
        %p443 = pneg %p442
        %p444 = scmp.lt.f32.partialorder %s429, %s147
        %p445 = pnand %p443, %p444
        %p446 = pneg %p445
        %p447 = scmp.gt.f32.partialorder %s433, %s144
        %p448 = pnand %p446, %p447
        %p449 = pneg %p448
        // Predicated region
        $region37: #{tpu_custom_call.1} parent=23 // pred_check
          _
        $region38: #{tpu_custom_call.1} parent=23 // pred_check_branch
          %451 = sbr.rel (%p448) target = $region40
        $region39: #{tpu_custom_call.1} parent=23 // pred_region
          %s452 = sld [smem:[#allocation2 + %s413]]
          %s453 = sadd.s32 %s414, 1
          %s454 = smul.u32 %s453, 128
          %s455 = sadd.s32 %s454, %s419
          %s456 = sld [smem:[#allocation2 + %s455]]
          %s457 = sadd.s32 %s414, 2
          %s458 = smul.u32 %s457, 128
          %s459 = sadd.s32 %s458, %s419
          %s460 = sld [smem:[#allocation2 + %s459]]
          %s461 = sadd.s32 %s414, 3
          %s462 = smul.u32 %s461, 128
          %s463 = sadd.s32 %s462, %s419
          %s464 = sld [smem:[#allocation2 + %s463]]
          %s465 = sadd.s32 %s414, 4
          %s466 = smul.u32 %s465, 128
          %s467 = sadd.s32 %s466, %s419
          %s468 = sld [smem:[#allocation2 + %s467]]
          %s469 = sadd.s32 %s414, 5
          %s470 = smul.u32 %s469, 128
          %s471 = sadd.s32 %s470, %s419
          %s472 = sld [smem:[#allocation2 + %s471]]
          %s473 = sadd.s32 %s414, 6
          %s474 = smul.u32 %s473, 128
          %s475 = sadd.s32 %s474, %s419
          %s476 = sld [smem:[#allocation2 + %s475]]
          %s477 = sadd.s32 %s414, 7
          %s478 = smul.u32 %s477, 128
          %s479 = sadd.s32 %s478, %s419
          %s480 = sld [smem:[#allocation2 + %s479]]
          %s481 = sadd.s32 %s414, 8
          %s482 = smul.u32 %s481, 128
          %s483 = sadd.s32 %s482, %s419
          %s484 = sld [smem:[#allocation2 + %s483]]
          %v485 = vstv %s452
          %v486 = vsub.f32 %v170, %v485
          %v487 = vstv %s456
          %v488 = vsub.f32 %v161, %v487
          %v489 = vsub.f32 %v162, %v487
          %v490 = vsub.f32 %v163, %v487
          %v491 = vsub.f32 %v164, %v487
          %v492 = vsub.f32 %v165, %v487
          %v493 = vstv %s460
          %v494 = vmul.f32 %v493, %v486
          %v495 = vmul.f32 %v494, %v486
          %v496 = vstv %s464
          %v497 = vmul.f32 %v496, %v486
          %v498 = vmul.f32 %v497, %v488
          %v499 = vmul.f32 %v497, %v489
          %v500 = vmul.f32 %v497, %v490
          %v501 = vmul.f32 %v497, %v491
          %v502 = vmul.f32 %v497, %v492
          %v503 = vadd.f32 %v495, %v498
          %v504 = vadd.f32 %v495, %v499
          %v505 = vadd.f32 %v495, %v500
          %v506 = vadd.f32 %v495, %v501
          %v507 = vadd.f32 %v495, %v502
          %v508 = vstv %s468
          %v509 = vmul.f32 %v508, %v488
          %v510 = vmul.f32 %v508, %v489
          %v511 = vmul.f32 %v508, %v490
          %v512 = vmul.f32 %v508, %v491
          %v513 = vmul.f32 %v508, %v492
          %v514 = vmul.f32 %v509, %v488
          %v515 = vmul.f32 %v510, %v489
          %v516 = vmul.f32 %v511, %v490
          %v517 = vmul.f32 %v512, %v491
          %v518 = vmul.f32 %v513, %v492
          %v519 = vadd.f32 %v503, %v514
          %v520 = vadd.f32 %v504, %v515
          %v521 = vadd.f32 %v505, %v516
          %v522 = vadd.f32 %v506, %v517
          %v523 = vadd.f32 %v507, %v518
          %v524 = vmul.f32 %v519, 1.442695
          %v525 = vpow.pop %v524
          %v526 = vmul.f32 %v520, 1.442695
          %v527 = vpow.pop %v526
          %v528 = vmul.f32 %v521, 1.442695
          %v529 = vpow.pop %v528
          %v530 = vmul.f32 %v522, 1.442695
          %v531 = vpow.pop %v530
          %v532 = vmul.f32 %v523, 1.442695
          %v533 = vpow.pop %v532
          %v534 = vstv %s421
          %vm535 = vcmp.ge.f32.partialorder %v170, %v534
          %v536 = vstv %s425
          %vm537 = vcmp.lt.f32.partialorder %v170, %v536
          %vm538 = vmand %vm535, %vm537
          %v539 = vstv %s429
          %vm540 = vcmp.ge.f32.partialorder %v161, %v539
          %vm541 = vcmp.ge.f32.partialorder %v162, %v539
          %vm542 = vcmp.ge.f32.partialorder %v163, %v539
          %vm543 = vcmp.ge.f32.partialorder %v164, %v539
          %vm544 = vcmp.ge.f32.partialorder %v165, %v539
          %vm545 = vmand %vm538, %vm540
          %vm546 = vmand %vm538, %vm541
          %vm547 = vmand %vm538, %vm542
          %vm548 = vmand %vm538, %vm543
          %vm549 = vmand %vm538, %vm544
          %v550 = vstv %s433
          %vm551 = vcmp.lt.f32.partialorder %v161, %v550
          %vm552 = vcmp.lt.f32.partialorder %v162, %v550
          %vm553 = vcmp.lt.f32.partialorder %v163, %v550
          %vm554 = vcmp.lt.f32.partialorder %v164, %v550
          %vm555 = vcmp.lt.f32.partialorder %v165, %v550
          %vm556 = vmand %vm545, %vm551
          %vm557 = vmand %vm546, %vm552
          %vm558 = vmand %vm547, %vm553
          %vm559 = vmand %vm548, %vm554
          %vm560 = vmand %vm549, %vm555
          %v561 = vstv %s472
          %v562 = vmul.f32 %v525, %v561
          %v563 = vmul.f32 %v527, %v561
          %v564 = vmul.f32 %v529, %v561
          %v565 = vmul.f32 %v531, %v561
          %v566 = vmul.f32 %v533, %v561
          %v567 = vsel %vm556, %v562, 0.0
          %v568 = vsel %vm557, %v563, 0.0
          %v569 = vsel %vm558, %v564, 0.0
          %v570 = vsel %vm559, %v565, 0.0
          %v571 = vsel %vm560, %v566, 0.0
          %v572 = vsub.f32 1.0, %v567
          %v573 = vsub.f32 1.0, %v568
          %v574 = vsub.f32 1.0, %v569
          %v575 = vsub.f32 1.0, %v570
          %v576 = vsub.f32 1.0, %v571
          %v577 = vld [vmem:[#allocation5] sm:$0xff]
          %v578 = vld [vmem:[#allocation5 + $0x8] sm:$0xff]
          %v579 = vld [vmem:[#allocation5 + $0x10] sm:$0xff]
          %v580 = vld [vmem:[#allocation5 + $0x18] sm:$0xff]
          %v581 = vld [vmem:[#allocation5 + $0x20] sm:$0xff]
          %v582 = vld [vmem:[#allocation5 + $0x28] sm:$0xff]
          %v583 = vld [vmem:[#allocation5 + $0x30] sm:$0xff]
          %v584 = vld [vmem:[#allocation5 + $0x38] sm:$0xff]
          %v585 = vld [vmem:[#allocation5 + $0x40] sm:$0xff]
          %v586 = vld [vmem:[#allocation5 + $0x48] sm:$0xff]
          %v587 = vld [vmem:[#allocation5 + $0x50] sm:$0xff]
          %v588 = vld [vmem:[#allocation5 + $0x58] sm:$0xff]
          %v589 = vld [vmem:[#allocation5 + $0x60] sm:$0xff]
          %v590 = vld [vmem:[#allocation5 + $0x68] sm:$0xff]
          %v591 = vld [vmem:[#allocation5 + $0x70] sm:$0xff]
          %v592 = vstv %s476
          %v593 = vmul.f32 %v592, %v567
          %v594 = vmul.f32 %v592, %v568
          %v595 = vmul.f32 %v592, %v569
          %v596 = vmul.f32 %v592, %v570
          %v597 = vmul.f32 %v592, %v571
          %v598 = vmul.f32 %v577, %v572
          %v599 = vmul.f32 %v578, %v573
          %v600 = vmul.f32 %v579, %v574
          %v601 = vmul.f32 %v580, %v575
          %v602 = vmul.f32 %v581, %v576
          %v603 = vadd.f32 %v593, %v598
          %v604 = vadd.f32 %v594, %v599
          %v605 = vadd.f32 %v595, %v600
          %v606 = vadd.f32 %v596, %v601
          %v607 = vadd.f32 %v597, %v602
          %v608 = vstv %s480
          %v609 = vmul.f32 %v608, %v567
          %v610 = vmul.f32 %v608, %v568
          %v611 = vmul.f32 %v608, %v569
          %v612 = vmul.f32 %v608, %v570
          %v613 = vmul.f32 %v608, %v571
          %v614 = vmul.f32 %v582, %v572
          %v615 = vmul.f32 %v583, %v573
          %v616 = vmul.f32 %v584, %v574
          %v617 = vmul.f32 %v585, %v575
          %v618 = vmul.f32 %v586, %v576
          %v619 = vadd.f32 %v609, %v614
          %v620 = vadd.f32 %v610, %v615
          %v621 = vadd.f32 %v611, %v616
          %v622 = vadd.f32 %v612, %v617
          %v623 = vadd.f32 %v613, %v618
          %v624 = vstv %s484
          %v625 = vmul.f32 %v624, %v567
          %v626 = vmul.f32 %v624, %v568
          %v627 = vmul.f32 %v624, %v569
          %v628 = vmul.f32 %v624, %v570
          %v629 = vmul.f32 %v624, %v571
          %v630 = vmul.f32 %v587, %v572
          %v631 = vmul.f32 %v588, %v573
          %v632 = vmul.f32 %v589, %v574
          %v633 = vmul.f32 %v590, %v575
          %v634 = vmul.f32 %v591, %v576
          %v635 = vadd.f32 %v625, %v630
          %v636 = vadd.f32 %v626, %v631
          %v637 = vadd.f32 %v627, %v632
          %v638 = vadd.f32 %v628, %v633
          %v639 = vadd.f32 %v629, %v634
          %640 = vst [vmem:[#allocation5] sm:$0xff] %v603
          %641 = vst [vmem:[#allocation5 + $0x8] sm:$0xff] %v604
          %642 = vst [vmem:[#allocation5 + $0x10] sm:$0xff] %v605
          %643 = vst [vmem:[#allocation5 + $0x18] sm:$0xff] %v606
          %644 = vst [vmem:[#allocation5 + $0x20] sm:$0xff] %v607
          %645 = vst [vmem:[#allocation5 + $0x28] sm:$0xff] %v619
          %646 = vst [vmem:[#allocation5 + $0x30] sm:$0xff] %v620
          %647 = vst [vmem:[#allocation5 + $0x38] sm:$0xff] %v621
          %648 = vst [vmem:[#allocation5 + $0x40] sm:$0xff] %v622
          %649 = vst [vmem:[#allocation5 + $0x48] sm:$0xff] %v623
          %650 = vst [vmem:[#allocation5 + $0x50] sm:$0xff] %v635
          %651 = vst [vmem:[#allocation5 + $0x58] sm:$0xff] %v636
          %652 = vst [vmem:[#allocation5 + $0x60] sm:$0xff] %v637
          %653 = vst [vmem:[#allocation5 + $0x68] sm:$0xff] %v638
          %654 = vst [vmem:[#allocation5 + $0x70] sm:$0xff] %v639
        $region40: #{tpu_custom_call.1} parent=23 // pred_fallthru
          _
        %s655 = sadd.s32 %s171, 2
        %s656 = sshra.s32 %s655, 7
        %s657 = sand.u32 %s655, 127
        %s658 = sadd.s32 %s656, 9
        %s659 = smul.u32 %s658, 128
        %s660 = sshra.s32 %s655, 7
        %s661 = sand.u32 %s655, 127
        %s662 = sadd.s32 %s659, %s661
        %s663 = sld [smem:[#allocation2 + %s662]]
        %s664 = sadd.s32 %s656, 10
        %s665 = smul.u32 %s664, 128
        %s666 = sadd.s32 %s665, %s661
        %s667 = sld [smem:[#allocation2 + %s666]]
        %s668 = sadd.s32 %s656, 11
        %s669 = smul.u32 %s668, 128
        %s670 = sadd.s32 %s669, %s661
        %s671 = sld [smem:[#allocation2 + %s670]]
        %s672 = sadd.s32 %s656, 12
        %s673 = smul.u32 %s672, 128
        %s674 = sadd.s32 %s673, %s661
        %s675 = sld [smem:[#allocation2 + %s674]]
        %p676 = scmp.gt.f32.partialorder %s667, %s663
        %p677 = scmp.gt.f32.partialorder %s675, %s671
        %p678 = pnand %p676, %p677
        %p679 = pneg %p678
        %p680 = scmp.lt.f32.partialorder %s663, %s148
        %p681 = pnand %p679, %p680
        %p682 = pneg %p681
        %p683 = scmp.gt.f32.partialorder %s667, %s146
        %p684 = pnand %p682, %p683
        %p685 = pneg %p684
        %p686 = scmp.lt.f32.partialorder %s671, %s147
        %p687 = pnand %p685, %p686
        %p688 = pneg %p687
        %p689 = scmp.gt.f32.partialorder %s675, %s144
        %p690 = pnand %p688, %p689
        %p691 = pneg %p690
        // Predicated region
        $region41: #{tpu_custom_call.1} parent=23 // pred_check
          _
        $region42: #{tpu_custom_call.1} parent=23 // pred_check_branch
          %693 = sbr.rel (%p690) target = $region44
        $region43: #{tpu_custom_call.1} parent=23 // pred_region
          %s694 = sld [smem:[#allocation2 + %s655]]
          %s695 = sadd.s32 %s656, 1
          %s696 = smul.u32 %s695, 128
          %s697 = sadd.s32 %s696, %s661
          %s698 = sld [smem:[#allocation2 + %s697]]
          %s699 = sadd.s32 %s656, 2
          %s700 = smul.u32 %s699, 128
          %s701 = sadd.s32 %s700, %s661
          %s702 = sld [smem:[#allocation2 + %s701]]
          %s703 = sadd.s32 %s656, 3
          %s704 = smul.u32 %s703, 128
          %s705 = sadd.s32 %s704, %s661
          %s706 = sld [smem:[#allocation2 + %s705]]
          %s707 = sadd.s32 %s656, 4
          %s708 = smul.u32 %s707, 128
          %s709 = sadd.s32 %s708, %s661
          %s710 = sld [smem:[#allocation2 + %s709]]
          %s711 = sadd.s32 %s656, 5
          %s712 = smul.u32 %s711, 128
          %s713 = sadd.s32 %s712, %s661
          %s714 = sld [smem:[#allocation2 + %s713]]
          %s715 = sadd.s32 %s656, 6
          %s716 = smul.u32 %s715, 128
          %s717 = sadd.s32 %s716, %s661
          %s718 = sld [smem:[#allocation2 + %s717]]
          %s719 = sadd.s32 %s656, 7
          %s720 = smul.u32 %s719, 128
          %s721 = sadd.s32 %s720, %s661
          %s722 = sld [smem:[#allocation2 + %s721]]
          %s723 = sadd.s32 %s656, 8
          %s724 = smul.u32 %s723, 128
          %s725 = sadd.s32 %s724, %s661
          %s726 = sld [smem:[#allocation2 + %s725]]
          %v727 = vstv %s694
          %v728 = vsub.f32 %v170, %v727
          %v729 = vstv %s698
          %v730 = vsub.f32 %v161, %v729
          %v731 = vsub.f32 %v162, %v729
          %v732 = vsub.f32 %v163, %v729
          %v733 = vsub.f32 %v164, %v729
          %v734 = vsub.f32 %v165, %v729
          %v735 = vstv %s702
          %v736 = vmul.f32 %v735, %v728
          %v737 = vmul.f32 %v736, %v728
          %v738 = vstv %s706
          %v739 = vmul.f32 %v738, %v728
          %v740 = vmul.f32 %v739, %v730
          %v741 = vmul.f32 %v739, %v731
          %v742 = vmul.f32 %v739, %v732
          %v743 = vmul.f32 %v739, %v733
          %v744 = vmul.f32 %v739, %v734
          %v745 = vadd.f32 %v737, %v740
          %v746 = vadd.f32 %v737, %v741
          %v747 = vadd.f32 %v737, %v742
          %v748 = vadd.f32 %v737, %v743
          %v749 = vadd.f32 %v737, %v744
          %v750 = vstv %s710
          %v751 = vmul.f32 %v750, %v730
          %v752 = vmul.f32 %v750, %v731
          %v753 = vmul.f32 %v750, %v732
          %v754 = vmul.f32 %v750, %v733
          %v755 = vmul.f32 %v750, %v734
          %v756 = vmul.f32 %v751, %v730
          %v757 = vmul.f32 %v752, %v731
          %v758 = vmul.f32 %v753, %v732
          %v759 = vmul.f32 %v754, %v733
          %v760 = vmul.f32 %v755, %v734
          %v761 = vadd.f32 %v745, %v756
          %v762 = vadd.f32 %v746, %v757
          %v763 = vadd.f32 %v747, %v758
          %v764 = vadd.f32 %v748, %v759
          %v765 = vadd.f32 %v749, %v760
          %v766 = vmul.f32 %v761, 1.442695
          %v767 = vpow.pop %v766
          %v768 = vmul.f32 %v762, 1.442695
          %v769 = vpow.pop %v768
          %v770 = vmul.f32 %v763, 1.442695
          %v771 = vpow.pop %v770
          %v772 = vmul.f32 %v764, 1.442695
          %v773 = vpow.pop %v772
          %v774 = vmul.f32 %v765, 1.442695
          %v775 = vpow.pop %v774
          %v776 = vstv %s663
          %vm777 = vcmp.ge.f32.partialorder %v170, %v776
          %v778 = vstv %s667
          %vm779 = vcmp.lt.f32.partialorder %v170, %v778
          %vm780 = vmand %vm777, %vm779
          %v781 = vstv %s671
          %vm782 = vcmp.ge.f32.partialorder %v161, %v781
          %vm783 = vcmp.ge.f32.partialorder %v162, %v781
          %vm784 = vcmp.ge.f32.partialorder %v163, %v781
          %vm785 = vcmp.ge.f32.partialorder %v164, %v781
          %vm786 = vcmp.ge.f32.partialorder %v165, %v781
          %vm787 = vmand %vm780, %vm782
          %vm788 = vmand %vm780, %vm783
          %vm789 = vmand %vm780, %vm784
          %vm790 = vmand %vm780, %vm785
          %vm791 = vmand %vm780, %vm786
          %v792 = vstv %s675
          %vm793 = vcmp.lt.f32.partialorder %v161, %v792
          %vm794 = vcmp.lt.f32.partialorder %v162, %v792
          %vm795 = vcmp.lt.f32.partialorder %v163, %v792
          %vm796 = vcmp.lt.f32.partialorder %v164, %v792
          %vm797 = vcmp.lt.f32.partialorder %v165, %v792
          %vm798 = vmand %vm787, %vm793
          %vm799 = vmand %vm788, %vm794
          %vm800 = vmand %vm789, %vm795
          %vm801 = vmand %vm790, %vm796
          %vm802 = vmand %vm791, %vm797
          %v803 = vstv %s714
          %v804 = vmul.f32 %v767, %v803
          %v805 = vmul.f32 %v769, %v803
          %v806 = vmul.f32 %v771, %v803
          %v807 = vmul.f32 %v773, %v803
          %v808 = vmul.f32 %v775, %v803
          %v809 = vsel %vm798, %v804, 0.0
          %v810 = vsel %vm799, %v805, 0.0
          %v811 = vsel %vm800, %v806, 0.0
          %v812 = vsel %vm801, %v807, 0.0
          %v813 = vsel %vm802, %v808, 0.0
          %v814 = vsub.f32 1.0, %v809
          %v815 = vsub.f32 1.0, %v810
          %v816 = vsub.f32 1.0, %v811
          %v817 = vsub.f32 1.0, %v812
          %v818 = vsub.f32 1.0, %v813
          %v819 = vld [vmem:[#allocation5] sm:$0xff]
          %v820 = vld [vmem:[#allocation5 + $0x8] sm:$0xff]
          %v821 = vld [vmem:[#allocation5 + $0x10] sm:$0xff]
          %v822 = vld [vmem:[#allocation5 + $0x18] sm:$0xff]
          %v823 = vld [vmem:[#allocation5 + $0x20] sm:$0xff]
          %v824 = vld [vmem:[#allocation5 + $0x28] sm:$0xff]
          %v825 = vld [vmem:[#allocation5 + $0x30] sm:$0xff]
          %v826 = vld [vmem:[#allocation5 + $0x38] sm:$0xff]
          %v827 = vld [vmem:[#allocation5 + $0x40] sm:$0xff]
          %v828 = vld [vmem:[#allocation5 + $0x48] sm:$0xff]
          %v829 = vld [vmem:[#allocation5 + $0x50] sm:$0xff]
          %v830 = vld [vmem:[#allocation5 + $0x58] sm:$0xff]
          %v831 = vld [vmem:[#allocation5 + $0x60] sm:$0xff]
          %v832 = vld [vmem:[#allocation5 + $0x68] sm:$0xff]
          %v833 = vld [vmem:[#allocation5 + $0x70] sm:$0xff]
          %v834 = vstv %s718
          %v835 = vmul.f32 %v834, %v809
          %v836 = vmul.f32 %v834, %v810
          %v837 = vmul.f32 %v834, %v811
          %v838 = vmul.f32 %v834, %v812
          %v839 = vmul.f32 %v834, %v813
          %v840 = vmul.f32 %v819, %v814
          %v841 = vmul.f32 %v820, %v815
          %v842 = vmul.f32 %v821, %v816
          %v843 = vmul.f32 %v822, %v817
          %v844 = vmul.f32 %v823, %v818
          %v845 = vadd.f32 %v835, %v840
          %v846 = vadd.f32 %v836, %v841
          %v847 = vadd.f32 %v837, %v842
          %v848 = vadd.f32 %v838, %v843
          %v849 = vadd.f32 %v839, %v844
          %v850 = vstv %s722
          %v851 = vmul.f32 %v850, %v809
          %v852 = vmul.f32 %v850, %v810
          %v853 = vmul.f32 %v850, %v811
          %v854 = vmul.f32 %v850, %v812
          %v855 = vmul.f32 %v850, %v813
          %v856 = vmul.f32 %v824, %v814
          %v857 = vmul.f32 %v825, %v815
          %v858 = vmul.f32 %v826, %v816
          %v859 = vmul.f32 %v827, %v817
          %v860 = vmul.f32 %v828, %v818
          %v861 = vadd.f32 %v851, %v856
          %v862 = vadd.f32 %v852, %v857
          %v863 = vadd.f32 %v853, %v858
          %v864 = vadd.f32 %v854, %v859
          %v865 = vadd.f32 %v855, %v860
          %v866 = vstv %s726
          %v867 = vmul.f32 %v866, %v809
          %v868 = vmul.f32 %v866, %v810
          %v869 = vmul.f32 %v866, %v811
          %v870 = vmul.f32 %v866, %v812
          %v871 = vmul.f32 %v866, %v813
          %v872 = vmul.f32 %v829, %v814
          %v873 = vmul.f32 %v830, %v815
          %v874 = vmul.f32 %v831, %v816
          %v875 = vmul.f32 %v832, %v817
          %v876 = vmul.f32 %v833, %v818
          %v877 = vadd.f32 %v867, %v872
          %v878 = vadd.f32 %v868, %v873
          %v879 = vadd.f32 %v869, %v874
          %v880 = vadd.f32 %v870, %v875
          %v881 = vadd.f32 %v871, %v876
          %882 = vst [vmem:[#allocation5] sm:$0xff] %v845
          %883 = vst [vmem:[#allocation5 + $0x8] sm:$0xff] %v846
          %884 = vst [vmem:[#allocation5 + $0x10] sm:$0xff] %v847
          %885 = vst [vmem:[#allocation5 + $0x18] sm:$0xff] %v848
          %886 = vst [vmem:[#allocation5 + $0x20] sm:$0xff] %v849
          %887 = vst [vmem:[#allocation5 + $0x28] sm:$0xff] %v861
          %888 = vst [vmem:[#allocation5 + $0x30] sm:$0xff] %v862
          %889 = vst [vmem:[#allocation5 + $0x38] sm:$0xff] %v863
          %890 = vst [vmem:[#allocation5 + $0x40] sm:$0xff] %v864
          %891 = vst [vmem:[#allocation5 + $0x48] sm:$0xff] %v865
          %892 = vst [vmem:[#allocation5 + $0x50] sm:$0xff] %v877
          %893 = vst [vmem:[#allocation5 + $0x58] sm:$0xff] %v878
          %894 = vst [vmem:[#allocation5 + $0x60] sm:$0xff] %v879
          %895 = vst [vmem:[#allocation5 + $0x68] sm:$0xff] %v880
          %896 = vst [vmem:[#allocation5 + $0x70] sm:$0xff] %v881
        $region44: #{tpu_custom_call.1} parent=23 // pred_fallthru
          _
        %s897 = sadd.s32 %s171, 3
        %s898 = sshra.s32 %s897, 7
        %s899 = sand.u32 %s897, 127
        %s900 = sadd.s32 %s898, 9
        %s901 = smul.u32 %s900, 128
        %s902 = sshra.s32 %s897, 7
        %s903 = sand.u32 %s897, 127
        %s904 = sadd.s32 %s901, %s903
        %s905 = sld [smem:[#allocation2 + %s904]]
        %s906 = sadd.s32 %s898, 10
        %s907 = smul.u32 %s906, 128
        %s908 = sadd.s32 %s907, %s903
        %s909 = sld [smem:[#allocation2 + %s908]]
        %s910 = sadd.s32 %s898, 11
        %s911 = smul.u32 %s910, 128
        %s912 = sadd.s32 %s911, %s903
        %s913 = sld [smem:[#allocation2 + %s912]]
        %s914 = sadd.s32 %s898, 12
        %s915 = smul.u32 %s914, 128
        %s916 = sadd.s32 %s915, %s903
        %s917 = sld [smem:[#allocation2 + %s916]]
        %p918 = scmp.gt.f32.partialorder %s909, %s905
        %p919 = scmp.gt.f32.partialorder %s917, %s913
        %p920 = pnand %p918, %p919
        %p921 = pneg %p920
        %p922 = scmp.lt.f32.partialorder %s905, %s148
        %p923 = pnand %p921, %p922
        %p924 = pneg %p923
        %p925 = scmp.gt.f32.partialorder %s909, %s146
        %p926 = pnand %p924, %p925
        %p927 = pneg %p926
        %p928 = scmp.lt.f32.partialorder %s913, %s147
        %p929 = pnand %p927, %p928
        %p930 = pneg %p929
        %p931 = scmp.gt.f32.partialorder %s917, %s144
        %p932 = pnand %p930, %p931
        %p933 = pneg %p932
        // Predicated region
        $region45: #{tpu_custom_call.1} parent=23 // pred_check
          _
        $region46: #{tpu_custom_call.1} parent=23 // pred_check_branch
          %935 = sbr.rel (%p932) target = $region48
        $region47: #{tpu_custom_call.1} parent=23 // pred_region
          %s936 = sld [smem:[#allocation2 + %s897]]
          %s937 = sadd.s32 %s898, 1
          %s938 = smul.u32 %s937, 128
          %s939 = sadd.s32 %s938, %s903
          %s940 = sld [smem:[#allocation2 + %s939]]
          %s941 = sadd.s32 %s898, 2
          %s942 = smul.u32 %s941, 128
          %s943 = sadd.s32 %s942, %s903
          %s944 = sld [smem:[#allocation2 + %s943]]
          %s945 = sadd.s32 %s898, 3
          %s946 = smul.u32 %s945, 128
          %s947 = sadd.s32 %s946, %s903
          %s948 = sld [smem:[#allocation2 + %s947]]
          %s949 = sadd.s32 %s898, 4
          %s950 = smul.u32 %s949, 128
          %s951 = sadd.s32 %s950, %s903
          %s952 = sld [smem:[#allocation2 + %s951]]
          %s953 = sadd.s32 %s898, 5
          %s954 = smul.u32 %s953, 128
          %s955 = sadd.s32 %s954, %s903
          %s956 = sld [smem:[#allocation2 + %s955]]
          %s957 = sadd.s32 %s898, 6
          %s958 = smul.u32 %s957, 128
          %s959 = sadd.s32 %s958, %s903
          %s960 = sld [smem:[#allocation2 + %s959]]
          %s961 = sadd.s32 %s898, 7
          %s962 = smul.u32 %s961, 128
          %s963 = sadd.s32 %s962, %s903
          %s964 = sld [smem:[#allocation2 + %s963]]
          %s965 = sadd.s32 %s898, 8
          %s966 = smul.u32 %s965, 128
          %s967 = sadd.s32 %s966, %s903
          %s968 = sld [smem:[#allocation2 + %s967]]
          %v969 = vstv %s936
          %v970 = vsub.f32 %v170, %v969
          %v971 = vstv %s940
          %v972 = vsub.f32 %v161, %v971
          %v973 = vsub.f32 %v162, %v971
          %v974 = vsub.f32 %v163, %v971
          %v975 = vsub.f32 %v164, %v971
          %v976 = vsub.f32 %v165, %v971
          %v977 = vstv %s944
          %v978 = vmul.f32 %v977, %v970
          %v979 = vmul.f32 %v978, %v970
          %v980 = vstv %s948
          %v981 = vmul.f32 %v980, %v970
          %v982 = vmul.f32 %v981, %v972
          %v983 = vmul.f32 %v981, %v973
          %v984 = vmul.f32 %v981, %v974
          %v985 = vmul.f32 %v981, %v975
          %v986 = vmul.f32 %v981, %v976
          %v987 = vadd.f32 %v979, %v982
          %v988 = vadd.f32 %v979, %v983
          %v989 = vadd.f32 %v979, %v984
          %v990 = vadd.f32 %v979, %v985
          %v991 = vadd.f32 %v979, %v986
          %v992 = vstv %s952
          %v993 = vmul.f32 %v992, %v972
          %v994 = vmul.f32 %v992, %v973
          %v995 = vmul.f32 %v992, %v974
          %v996 = vmul.f32 %v992, %v975
          %v997 = vmul.f32 %v992, %v976
          %v998 = vmul.f32 %v993, %v972
          %v999 = vmul.f32 %v994, %v973
          %v1000 = vmul.f32 %v995, %v974
          %v1001 = vmul.f32 %v996, %v975
          %v1002 = vmul.f32 %v997, %v976
          %v1003 = vadd.f32 %v987, %v998
          %v1004 = vadd.f32 %v988, %v999
          %v1005 = vadd.f32 %v989, %v1000
          %v1006 = vadd.f32 %v990, %v1001
          %v1007 = vadd.f32 %v991, %v1002
          %v1008 = vmul.f32 %v1003, 1.442695
          %v1009 = vpow.pop %v1008
          %v1010 = vmul.f32 %v1004, 1.442695
          %v1011 = vpow.pop %v1010
          %v1012 = vmul.f32 %v1005, 1.442695
          %v1013 = vpow.pop %v1012
          %v1014 = vmul.f32 %v1006, 1.442695
          %v1015 = vpow.pop %v1014
          %v1016 = vmul.f32 %v1007, 1.442695
          %v1017 = vpow.pop %v1016
          %v1018 = vstv %s905
          %vm1019 = vcmp.ge.f32.partialorder %v170, %v1018
          %v1020 = vstv %s909
          %vm1021 = vcmp.lt.f32.partialorder %v170, %v1020
          %vm1022 = vmand %vm1019, %vm1021
          %v1023 = vstv %s913
          %vm1024 = vcmp.ge.f32.partialorder %v161, %v1023
          %vm1025 = vcmp.ge.f32.partialorder %v162, %v1023
          %vm1026 = vcmp.ge.f32.partialorder %v163, %v1023
          %vm1027 = vcmp.ge.f32.partialorder %v164, %v1023
          %vm1028 = vcmp.ge.f32.partialorder %v165, %v1023
          %vm1029 = vmand %vm1022, %vm1024
          %vm1030 = vmand %vm1022, %vm1025
          %vm1031 = vmand %vm1022, %vm1026
          %vm1032 = vmand %vm1022, %vm1027
          %vm1033 = vmand %vm1022, %vm1028
          %v1034 = vstv %s917
          %vm1035 = vcmp.lt.f32.partialorder %v161, %v1034
          %vm1036 = vcmp.lt.f32.partialorder %v162, %v1034
          %vm1037 = vcmp.lt.f32.partialorder %v163, %v1034
          %vm1038 = vcmp.lt.f32.partialorder %v164, %v1034
          %vm1039 = vcmp.lt.f32.partialorder %v165, %v1034
          %vm1040 = vmand %vm1029, %vm1035
          %vm1041 = vmand %vm1030, %vm1036
          %vm1042 = vmand %vm1031, %vm1037
          %vm1043 = vmand %vm1032, %vm1038
          %vm1044 = vmand %vm1033, %vm1039
          %v1045 = vstv %s956
          %v1046 = vmul.f32 %v1009, %v1045
          %v1047 = vmul.f32 %v1011, %v1045
          %v1048 = vmul.f32 %v1013, %v1045
          %v1049 = vmul.f32 %v1015, %v1045
          %v1050 = vmul.f32 %v1017, %v1045
          %v1051 = vsel %vm1040, %v1046, 0.0
          %v1052 = vsel %vm1041, %v1047, 0.0
          %v1053 = vsel %vm1042, %v1048, 0.0
          %v1054 = vsel %vm1043, %v1049, 0.0
          %v1055 = vsel %vm1044, %v1050, 0.0
          %v1056 = vsub.f32 1.0, %v1051
          %v1057 = vsub.f32 1.0, %v1052
          %v1058 = vsub.f32 1.0, %v1053
          %v1059 = vsub.f32 1.0, %v1054
          %v1060 = vsub.f32 1.0, %v1055
          %v1061 = vld [vmem:[#allocation5] sm:$0xff]
          %v1062 = vld [vmem:[#allocation5 + $0x8] sm:$0xff]
          %v1063 = vld [vmem:[#allocation5 + $0x10] sm:$0xff]
          %v1064 = vld [vmem:[#allocation5 + $0x18] sm:$0xff]
          %v1065 = vld [vmem:[#allocation5 + $0x20] sm:$0xff]
          %v1066 = vld [vmem:[#allocation5 + $0x28] sm:$0xff]
          %v1067 = vld [vmem:[#allocation5 + $0x30] sm:$0xff]
          %v1068 = vld [vmem:[#allocation5 + $0x38] sm:$0xff]
          %v1069 = vld [vmem:[#allocation5 + $0x40] sm:$0xff]
          %v1070 = vld [vmem:[#allocation5 + $0x48] sm:$0xff]
          %v1071 = vld [vmem:[#allocation5 + $0x50] sm:$0xff]
          %v1072 = vld [vmem:[#allocation5 + $0x58] sm:$0xff]
          %v1073 = vld [vmem:[#allocation5 + $0x60] sm:$0xff]
          %v1074 = vld [vmem:[#allocation5 + $0x68] sm:$0xff]
          %v1075 = vld [vmem:[#allocation5 + $0x70] sm:$0xff]
          %v1076 = vstv %s960
          %v1077 = vmul.f32 %v1076, %v1051
          %v1078 = vmul.f32 %v1076, %v1052
          %v1079 = vmul.f32 %v1076, %v1053
          %v1080 = vmul.f32 %v1076, %v1054
          %v1081 = vmul.f32 %v1076, %v1055
          %v1082 = vmul.f32 %v1061, %v1056
          %v1083 = vmul.f32 %v1062, %v1057
          %v1084 = vmul.f32 %v1063, %v1058
          %v1085 = vmul.f32 %v1064, %v1059
          %v1086 = vmul.f32 %v1065, %v1060
          %v1087 = vadd.f32 %v1077, %v1082
          %v1088 = vadd.f32 %v1078, %v1083
          %v1089 = vadd.f32 %v1079, %v1084
          %v1090 = vadd.f32 %v1080, %v1085
          %v1091 = vadd.f32 %v1081, %v1086
          %v1092 = vstv %s964
          %v1093 = vmul.f32 %v1092, %v1051
          %v1094 = vmul.f32 %v1092, %v1052
          %v1095 = vmul.f32 %v1092, %v1053
          %v1096 = vmul.f32 %v1092, %v1054
          %v1097 = vmul.f32 %v1092, %v1055
          %v1098 = vmul.f32 %v1066, %v1056
          %v1099 = vmul.f32 %v1067, %v1057
          %v1100 = vmul.f32 %v1068, %v1058
          %v1101 = vmul.f32 %v1069, %v1059
          %v1102 = vmul.f32 %v1070, %v1060
          %v1103 = vadd.f32 %v1093, %v1098
          %v1104 = vadd.f32 %v1094, %v1099
          %v1105 = vadd.f32 %v1095, %v1100
          %v1106 = vadd.f32 %v1096, %v1101
          %v1107 = vadd.f32 %v1097, %v1102
          %v1108 = vstv %s968
          %v1109 = vmul.f32 %v1108, %v1051
          %v1110 = vmul.f32 %v1108, %v1052
          %v1111 = vmul.f32 %v1108, %v1053
          %v1112 = vmul.f32 %v1108, %v1054
          %v1113 = vmul.f32 %v1108, %v1055
          %v1114 = vmul.f32 %v1071, %v1056
          %v1115 = vmul.f32 %v1072, %v1057
          %v1116 = vmul.f32 %v1073, %v1058
          %v1117 = vmul.f32 %v1074, %v1059
          %v1118 = vmul.f32 %v1075, %v1060
          %v1119 = vadd.f32 %v1109, %v1114
          %v1120 = vadd.f32 %v1110, %v1115
          %v1121 = vadd.f32 %v1111, %v1116
          %v1122 = vadd.f32 %v1112, %v1117
          %v1123 = vadd.f32 %v1113, %v1118
          %1124 = vst [vmem:[#allocation5] sm:$0xff] %v1087
          %1125 = vst [vmem:[#allocation5 + $0x8] sm:$0xff] %v1088
          %1126 = vst [vmem:[#allocation5 + $0x10] sm:$0xff] %v1089
          %1127 = vst [vmem:[#allocation5 + $0x18] sm:$0xff] %v1090
          %1128 = vst [vmem:[#allocation5 + $0x20] sm:$0xff] %v1091
          %1129 = vst [vmem:[#allocation5 + $0x28] sm:$0xff] %v1103
          %1130 = vst [vmem:[#allocation5 + $0x30] sm:$0xff] %v1104
          %1131 = vst [vmem:[#allocation5 + $0x38] sm:$0xff] %v1105
          %1132 = vst [vmem:[#allocation5 + $0x40] sm:$0xff] %v1106
          %1133 = vst [vmem:[#allocation5 + $0x48] sm:$0xff] %v1107
          %1134 = vst [vmem:[#allocation5 + $0x50] sm:$0xff] %v1119
          %1135 = vst [vmem:[#allocation5 + $0x58] sm:$0xff] %v1120
          %1136 = vst [vmem:[#allocation5 + $0x60] sm:$0xff] %v1121
          %1137 = vst [vmem:[#allocation5 + $0x68] sm:$0xff] %v1122
          %1138 = vst [vmem:[#allocation5 + $0x70] sm:$0xff] %v1123
        $region48: #{tpu_custom_call.1} parent=23 // pred_fallthru
          _
        %s1139 = sadd.s32 %s171, 4
        %s1140 = sshra.s32 %s1139, 7
        %s1141 = sand.u32 %s1139, 127
        %s1142 = sadd.s32 %s1140, 9
        %s1143 = smul.u32 %s1142, 128
        %s1144 = sshra.s32 %s1139, 7
        %s1145 = sand.u32 %s1139, 127
        %s1146 = sadd.s32 %s1143, %s1145
        %s1147 = sld [smem:[#allocation2 + %s1146]]
        %s1148 = sadd.s32 %s1140, 10
        %s1149 = smul.u32 %s1148, 128
        %s1150 = sadd.s32 %s1149, %s1145
        %s1151 = sld [smem:[#allocation2 + %s1150]]
        %s1152 = sadd.s32 %s1140, 11
        %s1153 = smul.u32 %s1152, 128
        %s1154 = sadd.s32 %s1153, %s1145
        %s1155 = sld [smem:[#allocation2 + %s1154]]
        %s1156 = sadd.s32 %s1140, 12
        %s1157 = smul.u32 %s1156, 128
        %s1158 = sadd.s32 %s1157, %s1145
        %s1159 = sld [smem:[#allocation2 + %s1158]]
        %p1160 = scmp.gt.f32.partialorder %s1151, %s1147
        %p1161 = scmp.gt.f32.partialorder %s1159, %s1155
        %p1162 = pnand %p1160, %p1161
        %p1163 = pneg %p1162
        %p1164 = scmp.lt.f32.partialorder %s1147, %s148
        %p1165 = pnand %p1163, %p1164
        %p1166 = pneg %p1165
        %p1167 = scmp.gt.f32.partialorder %s1151, %s146
        %p1168 = pnand %p1166, %p1167
        %p1169 = pneg %p1168
        %p1170 = scmp.lt.f32.partialorder %s1155, %s147
        %p1171 = pnand %p1169, %p1170
        %p1172 = pneg %p1171
        %p1173 = scmp.gt.f32.partialorder %s1159, %s144
        %p1174 = pnand %p1172, %p1173
        %p1175 = pneg %p1174
        // Predicated region
        $region49: #{tpu_custom_call.1} parent=23 // pred_check
          _
        $region50: #{tpu_custom_call.1} parent=23 // pred_check_branch
          %1177 = sbr.rel (%p1174) target = $region52
        $region51: #{tpu_custom_call.1} parent=23 // pred_region
          %s1178 = sld [smem:[#allocation2 + %s1139]]
          %s1179 = sadd.s32 %s1140, 1
          %s1180 = smul.u32 %s1179, 128
          %s1181 = sadd.s32 %s1180, %s1145
          %s1182 = sld [smem:[#allocation2 + %s1181]]
          %s1183 = sadd.s32 %s1140, 2
          %s1184 = smul.u32 %s1183, 128
          %s1185 = sadd.s32 %s1184, %s1145
          %s1186 = sld [smem:[#allocation2 + %s1185]]
          %s1187 = sadd.s32 %s1140, 3
          %s1188 = smul.u32 %s1187, 128
          %s1189 = sadd.s32 %s1188, %s1145
          %s1190 = sld [smem:[#allocation2 + %s1189]]
          %s1191 = sadd.s32 %s1140, 4
          %s1192 = smul.u32 %s1191, 128
          %s1193 = sadd.s32 %s1192, %s1145
          %s1194 = sld [smem:[#allocation2 + %s1193]]
          %s1195 = sadd.s32 %s1140, 5
          %s1196 = smul.u32 %s1195, 128
          %s1197 = sadd.s32 %s1196, %s1145
          %s1198 = sld [smem:[#allocation2 + %s1197]]
          %s1199 = sadd.s32 %s1140, 6
          %s1200 = smul.u32 %s1199, 128
          %s1201 = sadd.s32 %s1200, %s1145
          %s1202 = sld [smem:[#allocation2 + %s1201]]
          %s1203 = sadd.s32 %s1140, 7
          %s1204 = smul.u32 %s1203, 128
          %s1205 = sadd.s32 %s1204, %s1145
          %s1206 = sld [smem:[#allocation2 + %s1205]]
          %s1207 = sadd.s32 %s1140, 8
          %s1208 = smul.u32 %s1207, 128
          %s1209 = sadd.s32 %s1208, %s1145
          %s1210 = sld [smem:[#allocation2 + %s1209]]
          %v1211 = vstv %s1178
          %v1212 = vsub.f32 %v170, %v1211
          %v1213 = vstv %s1182
          %v1214 = vsub.f32 %v161, %v1213
          %v1215 = vsub.f32 %v162, %v1213
          %v1216 = vsub.f32 %v163, %v1213
          %v1217 = vsub.f32 %v164, %v1213
          %v1218 = vsub.f32 %v165, %v1213
          %v1219 = vstv %s1186
          %v1220 = vmul.f32 %v1219, %v1212
          %v1221 = vmul.f32 %v1220, %v1212
          %v1222 = vstv %s1190
          %v1223 = vmul.f32 %v1222, %v1212
          %v1224 = vmul.f32 %v1223, %v1214
          %v1225 = vmul.f32 %v1223, %v1215
          %v1226 = vmul.f32 %v1223, %v1216
          %v1227 = vmul.f32 %v1223, %v1217
          %v1228 = vmul.f32 %v1223, %v1218
          %v1229 = vadd.f32 %v1221, %v1224
          %v1230 = vadd.f32 %v1221, %v1225
          %v1231 = vadd.f32 %v1221, %v1226
          %v1232 = vadd.f32 %v1221, %v1227
          %v1233 = vadd.f32 %v1221, %v1228
          %v1234 = vstv %s1194
          %v1235 = vmul.f32 %v1234, %v1214
          %v1236 = vmul.f32 %v1234, %v1215
          %v1237 = vmul.f32 %v1234, %v1216
          %v1238 = vmul.f32 %v1234, %v1217
          %v1239 = vmul.f32 %v1234, %v1218
          %v1240 = vmul.f32 %v1235, %v1214
          %v1241 = vmul.f32 %v1236, %v1215
          %v1242 = vmul.f32 %v1237, %v1216
          %v1243 = vmul.f32 %v1238, %v1217
          %v1244 = vmul.f32 %v1239, %v1218
          %v1245 = vadd.f32 %v1229, %v1240
          %v1246 = vadd.f32 %v1230, %v1241
          %v1247 = vadd.f32 %v1231, %v1242
          %v1248 = vadd.f32 %v1232, %v1243
          %v1249 = vadd.f32 %v1233, %v1244
          %v1250 = vmul.f32 %v1245, 1.442695
          %v1251 = vpow.pop %v1250
          %v1252 = vmul.f32 %v1246, 1.442695
          %v1253 = vpow.pop %v1252
          %v1254 = vmul.f32 %v1247, 1.442695
          %v1255 = vpow.pop %v1254
          %v1256 = vmul.f32 %v1248, 1.442695
          %v1257 = vpow.pop %v1256
          %v1258 = vmul.f32 %v1249, 1.442695
          %v1259 = vpow.pop %v1258
          %v1260 = vstv %s1147
          %vm1261 = vcmp.ge.f32.partialorder %v170, %v1260
          %v1262 = vstv %s1151
          %vm1263 = vcmp.lt.f32.partialorder %v170, %v1262
          %vm1264 = vmand %vm1261, %vm1263
          %v1265 = vstv %s1155
          %vm1266 = vcmp.ge.f32.partialorder %v161, %v1265
          %vm1267 = vcmp.ge.f32.partialorder %v162, %v1265
          %vm1268 = vcmp.ge.f32.partialorder %v163, %v1265
          %vm1269 = vcmp.ge.f32.partialorder %v164, %v1265
          %vm1270 = vcmp.ge.f32.partialorder %v165, %v1265
          %vm1271 = vmand %vm1264, %vm1266
          %vm1272 = vmand %vm1264, %vm1267
          %vm1273 = vmand %vm1264, %vm1268
          %vm1274 = vmand %vm1264, %vm1269
          %vm1275 = vmand %vm1264, %vm1270
          %v1276 = vstv %s1159
          %vm1277 = vcmp.lt.f32.partialorder %v161, %v1276
          %vm1278 = vcmp.lt.f32.partialorder %v162, %v1276
          %vm1279 = vcmp.lt.f32.partialorder %v163, %v1276
          %vm1280 = vcmp.lt.f32.partialorder %v164, %v1276
          %vm1281 = vcmp.lt.f32.partialorder %v165, %v1276
          %vm1282 = vmand %vm1271, %vm1277
          %vm1283 = vmand %vm1272, %vm1278
          %vm1284 = vmand %vm1273, %vm1279
          %vm1285 = vmand %vm1274, %vm1280
          %vm1286 = vmand %vm1275, %vm1281
          %v1287 = vstv %s1198
          %v1288 = vmul.f32 %v1251, %v1287
          %v1289 = vmul.f32 %v1253, %v1287
          %v1290 = vmul.f32 %v1255, %v1287
          %v1291 = vmul.f32 %v1257, %v1287
          %v1292 = vmul.f32 %v1259, %v1287
          %v1293 = vsel %vm1282, %v1288, 0.0
          %v1294 = vsel %vm1283, %v1289, 0.0
          %v1295 = vsel %vm1284, %v1290, 0.0
          %v1296 = vsel %vm1285, %v1291, 0.0
          %v1297 = vsel %vm1286, %v1292, 0.0
          %v1298 = vsub.f32 1.0, %v1293
          %v1299 = vsub.f32 1.0, %v1294
          %v1300 = vsub.f32 1.0, %v1295
          %v1301 = vsub.f32 1.0, %v1296
          %v1302 = vsub.f32 1.0, %v1297
          %v1303 = vld [vmem:[#allocation5] sm:$0xff]
          %v1304 = vld [vmem:[#allocation5 + $0x8] sm:$0xff]
          %v1305 = vld [vmem:[#allocation5 + $0x10] sm:$0xff]
          %v1306 = vld [vmem:[#allocation5 + $0x18] sm:$0xff]
          %v1307 = vld [vmem:[#allocation5 + $0x20] sm:$0xff]
          %v1308 = vld [vmem:[#allocation5 + $0x28] sm:$0xff]
          %v1309 = vld [vmem:[#allocation5 + $0x30] sm:$0xff]
          %v1310 = vld [vmem:[#allocation5 + $0x38] sm:$0xff]
          %v1311 = vld [vmem:[#allocation5 + $0x40] sm:$0xff]
          %v1312 = vld [vmem:[#allocation5 + $0x48] sm:$0xff]
          %v1313 = vld [vmem:[#allocation5 + $0x50] sm:$0xff]
          %v1314 = vld [vmem:[#allocation5 + $0x58] sm:$0xff]
          %v1315 = vld [vmem:[#allocation5 + $0x60] sm:$0xff]
          %v1316 = vld [vmem:[#allocation5 + $0x68] sm:$0xff]
          %v1317 = vld [vmem:[#allocation5 + $0x70] sm:$0xff]
          %v1318 = vstv %s1202
          %v1319 = vmul.f32 %v1318, %v1293
          %v1320 = vmul.f32 %v1318, %v1294
          %v1321 = vmul.f32 %v1318, %v1295
          %v1322 = vmul.f32 %v1318, %v1296
          %v1323 = vmul.f32 %v1318, %v1297
          %v1324 = vmul.f32 %v1303, %v1298
          %v1325 = vmul.f32 %v1304, %v1299
          %v1326 = vmul.f32 %v1305, %v1300
          %v1327 = vmul.f32 %v1306, %v1301
          %v1328 = vmul.f32 %v1307, %v1302
          %v1329 = vadd.f32 %v1319, %v1324
          %v1330 = vadd.f32 %v1320, %v1325
          %v1331 = vadd.f32 %v1321, %v1326
          %v1332 = vadd.f32 %v1322, %v1327
          %v1333 = vadd.f32 %v1323, %v1328
          %v1334 = vstv %s1206
          %v1335 = vmul.f32 %v1334, %v1293
          %v1336 = vmul.f32 %v1334, %v1294
          %v1337 = vmul.f32 %v1334, %v1295
          %v1338 = vmul.f32 %v1334, %v1296
          %v1339 = vmul.f32 %v1334, %v1297
          %v1340 = vmul.f32 %v1308, %v1298
          %v1341 = vmul.f32 %v1309, %v1299
          %v1342 = vmul.f32 %v1310, %v1300
          %v1343 = vmul.f32 %v1311, %v1301
          %v1344 = vmul.f32 %v1312, %v1302
          %v1345 = vadd.f32 %v1335, %v1340
          %v1346 = vadd.f32 %v1336, %v1341
          %v1347 = vadd.f32 %v1337, %v1342
          %v1348 = vadd.f32 %v1338, %v1343
          %v1349 = vadd.f32 %v1339, %v1344
          %v1350 = vstv %s1210
          %v1351 = vmul.f32 %v1350, %v1293
          %v1352 = vmul.f32 %v1350, %v1294
          %v1353 = vmul.f32 %v1350, %v1295
          %v1354 = vmul.f32 %v1350, %v1296
          %v1355 = vmul.f32 %v1350, %v1297
          %v1356 = vmul.f32 %v1313, %v1298
          %v1357 = vmul.f32 %v1314, %v1299
          %v1358 = vmul.f32 %v1315, %v1300
          %v1359 = vmul.f32 %v1316, %v1301
          %v1360 = vmul.f32 %v1317, %v1302
          %v1361 = vadd.f32 %v1351, %v1356
          %v1362 = vadd.f32 %v1352, %v1357
          %v1363 = vadd.f32 %v1353, %v1358
          %v1364 = vadd.f32 %v1354, %v1359
          %v1365 = vadd.f32 %v1355, %v1360
          %1366 = vst [vmem:[#allocation5] sm:$0xff] %v1329
          %1367 = vst [vmem:[#allocation5 + $0x8] sm:$0xff] %v1330
          %1368 = vst [vmem:[#allocation5 + $0x10] sm:$0xff] %v1331
          %1369 = vst [vmem:[#allocation5 + $0x18] sm:$0xff] %v1332
          %1370 = vst [vmem:[#allocation5 + $0x20] sm:$0xff] %v1333
          %1371 = vst [vmem:[#allocation5 + $0x28] sm:$0xff] %v1345
          %1372 = vst [vmem:[#allocation5 + $0x30] sm:$0xff] %v1346
          %1373 = vst [vmem:[#allocation5 + $0x38] sm:$0xff] %v1347
          %1374 = vst [vmem:[#allocation5 + $0x40] sm:$0xff] %v1348
          %1375 = vst [vmem:[#allocation5 + $0x48] sm:$0xff] %v1349
          %1376 = vst [vmem:[#allocation5 + $0x50] sm:$0xff] %v1361
          %1377 = vst [vmem:[#allocation5 + $0x58] sm:$0xff] %v1362
          %1378 = vst [vmem:[#allocation5 + $0x60] sm:$0xff] %v1363
          %1379 = vst [vmem:[#allocation5 + $0x68] sm:$0xff] %v1364
          %1380 = vst [vmem:[#allocation5 + $0x70] sm:$0xff] %v1365
        $region52: #{tpu_custom_call.1} parent=23 // pred_fallthru
          _
        %s1381 = sadd.s32 %s171, 5
        %s1382 = sshra.s32 %s1381, 7
        %s1383 = sand.u32 %s1381, 127
        %s1384 = sadd.s32 %s1382, 9
        %s1385 = smul.u32 %s1384, 128
        %s1386 = sshra.s32 %s1381, 7
        %s1387 = sand.u32 %s1381, 127
        %s1388 = sadd.s32 %s1385, %s1387
        %s1389 = sld [smem:[#allocation2 + %s1388]]
        %s1390 = sadd.s32 %s1382, 10
        %s1391 = smul.u32 %s1390, 128
        %s1392 = sadd.s32 %s1391, %s1387
        %s1393 = sld [smem:[#allocation2 + %s1392]]
        %s1394 = sadd.s32 %s1382, 11
        %s1395 = smul.u32 %s1394, 128
        %s1396 = sadd.s32 %s1395, %s1387
        %s1397 = sld [smem:[#allocation2 + %s1396]]
        %s1398 = sadd.s32 %s1382, 12
        %s1399 = smul.u32 %s1398, 128
        %s1400 = sadd.s32 %s1399, %s1387
        %s1401 = sld [smem:[#allocation2 + %s1400]]
        %p1402 = scmp.gt.f32.partialorder %s1393, %s1389
        %p1403 = scmp.gt.f32.partialorder %s1401, %s1397
        %p1404 = pnand %p1402, %p1403
        %p1405 = pneg %p1404
        %p1406 = scmp.lt.f32.partialorder %s1389, %s148
        %p1407 = pnand %p1405, %p1406
        %p1408 = pneg %p1407
        %p1409 = scmp.gt.f32.partialorder %s1393, %s146
        %p1410 = pnand %p1408, %p1409
        %p1411 = pneg %p1410
        %p1412 = scmp.lt.f32.partialorder %s1397, %s147
        %p1413 = pnand %p1411, %p1412
        %p1414 = pneg %p1413
        %p1415 = scmp.gt.f32.partialorder %s1401, %s144
        %p1416 = pnand %p1414, %p1415
        %p1417 = pneg %p1416
        // Predicated region
        $region53: #{tpu_custom_call.1} parent=23 // pred_check
          _
        $region54: #{tpu_custom_call.1} parent=23 // pred_check_branch
          %1419 = sbr.rel (%p1416) target = $region56
        $region55: #{tpu_custom_call.1} parent=23 // pred_region
          %s1420 = sld [smem:[#allocation2 + %s1381]]
          %s1421 = sadd.s32 %s1382, 1
          %s1422 = smul.u32 %s1421, 128
          %s1423 = sadd.s32 %s1422, %s1387
          %s1424 = sld [smem:[#allocation2 + %s1423]]
          %s1425 = sadd.s32 %s1382, 2
          %s1426 = smul.u32 %s1425, 128
          %s1427 = sadd.s32 %s1426, %s1387
          %s1428 = sld [smem:[#allocation2 + %s1427]]
          %s1429 = sadd.s32 %s1382, 3
          %s1430 = smul.u32 %s1429, 128
          %s1431 = sadd.s32 %s1430, %s1387
          %s1432 = sld [smem:[#allocation2 + %s1431]]
          %s1433 = sadd.s32 %s1382, 4
          %s1434 = smul.u32 %s1433, 128
          %s1435 = sadd.s32 %s1434, %s1387
          %s1436 = sld [smem:[#allocation2 + %s1435]]
          %s1437 = sadd.s32 %s1382, 5
          %s1438 = smul.u32 %s1437, 128
          %s1439 = sadd.s32 %s1438, %s1387
          %s1440 = sld [smem:[#allocation2 + %s1439]]
          %s1441 = sadd.s32 %s1382, 6
          %s1442 = smul.u32 %s1441, 128
          %s1443 = sadd.s32 %s1442, %s1387
          %s1444 = sld [smem:[#allocation2 + %s1443]]
          %s1445 = sadd.s32 %s1382, 7
          %s1446 = smul.u32 %s1445, 128
          %s1447 = sadd.s32 %s1446, %s1387
          %s1448 = sld [smem:[#allocation2 + %s1447]]
          %s1449 = sadd.s32 %s1382, 8
          %s1450 = smul.u32 %s1449, 128
          %s1451 = sadd.s32 %s1450, %s1387
          %s1452 = sld [smem:[#allocation2 + %s1451]]
          %v1453 = vstv %s1420
          %v1454 = vsub.f32 %v170, %v1453
          %v1455 = vstv %s1424
          %v1456 = vsub.f32 %v161, %v1455
          %v1457 = vsub.f32 %v162, %v1455
          %v1458 = vsub.f32 %v163, %v1455
          %v1459 = vsub.f32 %v164, %v1455
          %v1460 = vsub.f32 %v165, %v1455
          %v1461 = vstv %s1428
          %v1462 = vmul.f32 %v1461, %v1454
          %v1463 = vmul.f32 %v1462, %v1454
          %v1464 = vstv %s1432
          %v1465 = vmul.f32 %v1464, %v1454
          %v1466 = vmul.f32 %v1465, %v1456
          %v1467 = vmul.f32 %v1465, %v1457
          %v1468 = vmul.f32 %v1465, %v1458
          %v1469 = vmul.f32 %v1465, %v1459
          %v1470 = vmul.f32 %v1465, %v1460
          %v1471 = vadd.f32 %v1463, %v1466
          %v1472 = vadd.f32 %v1463, %v1467
          %v1473 = vadd.f32 %v1463, %v1468
          %v1474 = vadd.f32 %v1463, %v1469
          %v1475 = vadd.f32 %v1463, %v1470
          %v1476 = vstv %s1436
          %v1477 = vmul.f32 %v1476, %v1456
          %v1478 = vmul.f32 %v1476, %v1457
          %v1479 = vmul.f32 %v1476, %v1458
          %v1480 = vmul.f32 %v1476, %v1459
          %v1481 = vmul.f32 %v1476, %v1460
          %v1482 = vmul.f32 %v1477, %v1456
          %v1483 = vmul.f32 %v1478, %v1457
          %v1484 = vmul.f32 %v1479, %v1458
          %v1485 = vmul.f32 %v1480, %v1459
          %v1486 = vmul.f32 %v1481, %v1460
          %v1487 = vadd.f32 %v1471, %v1482
          %v1488 = vadd.f32 %v1472, %v1483
          %v1489 = vadd.f32 %v1473, %v1484
          %v1490 = vadd.f32 %v1474, %v1485
          %v1491 = vadd.f32 %v1475, %v1486
          %v1492 = vmul.f32 %v1487, 1.442695
          %v1493 = vpow.pop %v1492
          %v1494 = vmul.f32 %v1488, 1.442695
          %v1495 = vpow.pop %v1494
          %v1496 = vmul.f32 %v1489, 1.442695
          %v1497 = vpow.pop %v1496
          %v1498 = vmul.f32 %v1490, 1.442695
          %v1499 = vpow.pop %v1498
          %v1500 = vmul.f32 %v1491, 1.442695
          %v1501 = vpow.pop %v1500
          %v1502 = vstv %s1389
          %vm1503 = vcmp.ge.f32.partialorder %v170, %v1502
          %v1504 = vstv %s1393
          %vm1505 = vcmp.lt.f32.partialorder %v170, %v1504
          %vm1506 = vmand %vm1503, %vm1505
          %v1507 = vstv %s1397
          %vm1508 = vcmp.ge.f32.partialorder %v161, %v1507
          %vm1509 = vcmp.ge.f32.partialorder %v162, %v1507
          %vm1510 = vcmp.ge.f32.partialorder %v163, %v1507
          %vm1511 = vcmp.ge.f32.partialorder %v164, %v1507
          %vm1512 = vcmp.ge.f32.partialorder %v165, %v1507
          %vm1513 = vmand %vm1506, %vm1508
          %vm1514 = vmand %vm1506, %vm1509
          %vm1515 = vmand %vm1506, %vm1510
          %vm1516 = vmand %vm1506, %vm1511
          %vm1517 = vmand %vm1506, %vm1512
          %v1518 = vstv %s1401
          %vm1519 = vcmp.lt.f32.partialorder %v161, %v1518
          %vm1520 = vcmp.lt.f32.partialorder %v162, %v1518
          %vm1521 = vcmp.lt.f32.partialorder %v163, %v1518
          %vm1522 = vcmp.lt.f32.partialorder %v164, %v1518
          %vm1523 = vcmp.lt.f32.partialorder %v165, %v1518
          %vm1524 = vmand %vm1513, %vm1519
          %vm1525 = vmand %vm1514, %vm1520
          %vm1526 = vmand %vm1515, %vm1521
          %vm1527 = vmand %vm1516, %vm1522
          %vm1528 = vmand %vm1517, %vm1523
          %v1529 = vstv %s1440
          %v1530 = vmul.f32 %v1493, %v1529
          %v1531 = vmul.f32 %v1495, %v1529
          %v1532 = vmul.f32 %v1497, %v1529
          %v1533 = vmul.f32 %v1499, %v1529
          %v1534 = vmul.f32 %v1501, %v1529
          %v1535 = vsel %vm1524, %v1530, 0.0
          %v1536 = vsel %vm1525, %v1531, 0.0
          %v1537 = vsel %vm1526, %v1532, 0.0
          %v1538 = vsel %vm1527, %v1533, 0.0
          %v1539 = vsel %vm1528, %v1534, 0.0
          %v1540 = vsub.f32 1.0, %v1535
          %v1541 = vsub.f32 1.0, %v1536
          %v1542 = vsub.f32 1.0, %v1537
          %v1543 = vsub.f32 1.0, %v1538
          %v1544 = vsub.f32 1.0, %v1539
          %v1545 = vld [vmem:[#allocation5] sm:$0xff]
          %v1546 = vld [vmem:[#allocation5 + $0x8] sm:$0xff]
          %v1547 = vld [vmem:[#allocation5 + $0x10] sm:$0xff]
          %v1548 = vld [vmem:[#allocation5 + $0x18] sm:$0xff]
          %v1549 = vld [vmem:[#allocation5 + $0x20] sm:$0xff]
          %v1550 = vld [vmem:[#allocation5 + $0x28] sm:$0xff]
          %v1551 = vld [vmem:[#allocation5 + $0x30] sm:$0xff]
          %v1552 = vld [vmem:[#allocation5 + $0x38] sm:$0xff]
          %v1553 = vld [vmem:[#allocation5 + $0x40] sm:$0xff]
          %v1554 = vld [vmem:[#allocation5 + $0x48] sm:$0xff]
          %v1555 = vld [vmem:[#allocation5 + $0x50] sm:$0xff]
          %v1556 = vld [vmem:[#allocation5 + $0x58] sm:$0xff]
          %v1557 = vld [vmem:[#allocation5 + $0x60] sm:$0xff]
          %v1558 = vld [vmem:[#allocation5 + $0x68] sm:$0xff]
          %v1559 = vld [vmem:[#allocation5 + $0x70] sm:$0xff]
          %v1560 = vstv %s1444
          %v1561 = vmul.f32 %v1560, %v1535
          %v1562 = vmul.f32 %v1560, %v1536
          %v1563 = vmul.f32 %v1560, %v1537
          %v1564 = vmul.f32 %v1560, %v1538
          %v1565 = vmul.f32 %v1560, %v1539
          %v1566 = vmul.f32 %v1545, %v1540
          %v1567 = vmul.f32 %v1546, %v1541
          %v1568 = vmul.f32 %v1547, %v1542
          %v1569 = vmul.f32 %v1548, %v1543
          %v1570 = vmul.f32 %v1549, %v1544
          %v1571 = vadd.f32 %v1561, %v1566
          %v1572 = vadd.f32 %v1562, %v1567
          %v1573 = vadd.f32 %v1563, %v1568
          %v1574 = vadd.f32 %v1564, %v1569
          %v1575 = vadd.f32 %v1565, %v1570
          %v1576 = vstv %s1448
          %v1577 = vmul.f32 %v1576, %v1535
          %v1578 = vmul.f32 %v1576, %v1536
          %v1579 = vmul.f32 %v1576, %v1537
          %v1580 = vmul.f32 %v1576, %v1538
          %v1581 = vmul.f32 %v1576, %v1539
          %v1582 = vmul.f32 %v1550, %v1540
          %v1583 = vmul.f32 %v1551, %v1541
          %v1584 = vmul.f32 %v1552, %v1542
          %v1585 = vmul.f32 %v1553, %v1543
          %v1586 = vmul.f32 %v1554, %v1544
          %v1587 = vadd.f32 %v1577, %v1582
          %v1588 = vadd.f32 %v1578, %v1583
          %v1589 = vadd.f32 %v1579, %v1584
          %v1590 = vadd.f32 %v1580, %v1585
          %v1591 = vadd.f32 %v1581, %v1586
          %v1592 = vstv %s1452
          %v1593 = vmul.f32 %v1592, %v1535
          %v1594 = vmul.f32 %v1592, %v1536
          %v1595 = vmul.f32 %v1592, %v1537
          %v1596 = vmul.f32 %v1592, %v1538
          %v1597 = vmul.f32 %v1592, %v1539
          %v1598 = vmul.f32 %v1555, %v1540
          %v1599 = vmul.f32 %v1556, %v1541
          %v1600 = vmul.f32 %v1557, %v1542
          %v1601 = vmul.f32 %v1558, %v1543
          %v1602 = vmul.f32 %v1559, %v1544
          %v1603 = vadd.f32 %v1593, %v1598
          %v1604 = vadd.f32 %v1594, %v1599
          %v1605 = vadd.f32 %v1595, %v1600
          %v1606 = vadd.f32 %v1596, %v1601
          %v1607 = vadd.f32 %v1597, %v1602
          %1608 = vst [vmem:[#allocation5] sm:$0xff] %v1571
          %1609 = vst [vmem:[#allocation5 + $0x8] sm:$0xff] %v1572
          %1610 = vst [vmem:[#allocation5 + $0x10] sm:$0xff] %v1573
          %1611 = vst [vmem:[#allocation5 + $0x18] sm:$0xff] %v1574
          %1612 = vst [vmem:[#allocation5 + $0x20] sm:$0xff] %v1575
          %1613 = vst [vmem:[#allocation5 + $0x28] sm:$0xff] %v1587
          %1614 = vst [vmem:[#allocation5 + $0x30] sm:$0xff] %v1588
          %1615 = vst [vmem:[#allocation5 + $0x38] sm:$0xff] %v1589
          %1616 = vst [vmem:[#allocation5 + $0x40] sm:$0xff] %v1590
          %1617 = vst [vmem:[#allocation5 + $0x48] sm:$0xff] %v1591
          %1618 = vst [vmem:[#allocation5 + $0x50] sm:$0xff] %v1603
          %1619 = vst [vmem:[#allocation5 + $0x58] sm:$0xff] %v1604
          %1620 = vst [vmem:[#allocation5 + $0x60] sm:$0xff] %v1605
          %1621 = vst [vmem:[#allocation5 + $0x68] sm:$0xff] %v1606
          %1622 = vst [vmem:[#allocation5 + $0x70] sm:$0xff] %v1607
        $region56: #{tpu_custom_call.1} parent=23 // pred_fallthru
          _
        %s1623 = sadd.s32 %s171, 6
        %s1624 = sshra.s32 %s1623, 7
        %s1625 = sand.u32 %s1623, 127
        %s1626 = sadd.s32 %s1624, 9
        %s1627 = smul.u32 %s1626, 128
        %s1628 = sshra.s32 %s1623, 7
        %s1629 = sand.u32 %s1623, 127
        %s1630 = sadd.s32 %s1627, %s1629
        %s1631 = sld [smem:[#allocation2 + %s1630]]
        %s1632 = sadd.s32 %s1624, 10
        %s1633 = smul.u32 %s1632, 128
        %s1634 = sadd.s32 %s1633, %s1629
        %s1635 = sld [smem:[#allocation2 + %s1634]]
        %s1636 = sadd.s32 %s1624, 11
        %s1637 = smul.u32 %s1636, 128
        %s1638 = sadd.s32 %s1637, %s1629
        %s1639 = sld [smem:[#allocation2 + %s1638]]
        %s1640 = sadd.s32 %s1624, 12
        %s1641 = smul.u32 %s1640, 128
        %s1642 = sadd.s32 %s1641, %s1629
        %s1643 = sld [smem:[#allocation2 + %s1642]]
        %p1644 = scmp.gt.f32.partialorder %s1635, %s1631
        %p1645 = scmp.gt.f32.partialorder %s1643, %s1639
        %p1646 = pnand %p1644, %p1645
        %p1647 = pneg %p1646
        %p1648 = scmp.lt.f32.partialorder %s1631, %s148
        %p1649 = pnand %p1647, %p1648
        %p1650 = pneg %p1649
        %p1651 = scmp.gt.f32.partialorder %s1635, %s146
        %p1652 = pnand %p1650, %p1651
        %p1653 = pneg %p1652
        %p1654 = scmp.lt.f32.partialorder %s1639, %s147
        %p1655 = pnand %p1653, %p1654
        %p1656 = pneg %p1655
        %p1657 = scmp.gt.f32.partialorder %s1643, %s144
        %p1658 = pnand %p1656, %p1657
        %p1659 = pneg %p1658
        // Predicated region
        $region57: #{tpu_custom_call.1} parent=23 // pred_check
          _
        $region58: #{tpu_custom_call.1} parent=23 // pred_check_branch
          %1661 = sbr.rel (%p1658) target = $region60
        $region59: #{tpu_custom_call.1} parent=23 // pred_region
          %s1662 = sld [smem:[#allocation2 + %s1623]]
          %s1663 = sadd.s32 %s1624, 1
          %s1664 = smul.u32 %s1663, 128
          %s1665 = sadd.s32 %s1664, %s1629
          %s1666 = sld [smem:[#allocation2 + %s1665]]
          %s1667 = sadd.s32 %s1624, 2
          %s1668 = smul.u32 %s1667, 128
          %s1669 = sadd.s32 %s1668, %s1629
          %s1670 = sld [smem:[#allocation2 + %s1669]]
          %s1671 = sadd.s32 %s1624, 3
          %s1672 = smul.u32 %s1671, 128
          %s1673 = sadd.s32 %s1672, %s1629
          %s1674 = sld [smem:[#allocation2 + %s1673]]
          %s1675 = sadd.s32 %s1624, 4
          %s1676 = smul.u32 %s1675, 128
          %s1677 = sadd.s32 %s1676, %s1629
          %s1678 = sld [smem:[#allocation2 + %s1677]]
          %s1679 = sadd.s32 %s1624, 5
          %s1680 = smul.u32 %s1679, 128
          %s1681 = sadd.s32 %s1680, %s1629
          %s1682 = sld [smem:[#allocation2 + %s1681]]
          %s1683 = sadd.s32 %s1624, 6
          %s1684 = smul.u32 %s1683, 128
          %s1685 = sadd.s32 %s1684, %s1629
          %s1686 = sld [smem:[#allocation2 + %s1685]]
          %s1687 = sadd.s32 %s1624, 7
          %s1688 = smul.u32 %s1687, 128
          %s1689 = sadd.s32 %s1688, %s1629
          %s1690 = sld [smem:[#allocation2 + %s1689]]
          %s1691 = sadd.s32 %s1624, 8
          %s1692 = smul.u32 %s1691, 128
          %s1693 = sadd.s32 %s1692, %s1629
          %s1694 = sld [smem:[#allocation2 + %s1693]]
          %v1695 = vstv %s1662
          %v1696 = vsub.f32 %v170, %v1695
          %v1697 = vstv %s1666
          %v1698 = vsub.f32 %v161, %v1697
          %v1699 = vsub.f32 %v162, %v1697
          %v1700 = vsub.f32 %v163, %v1697
          %v1701 = vsub.f32 %v164, %v1697
          %v1702 = vsub.f32 %v165, %v1697
          %v1703 = vstv %s1670
          %v1704 = vmul.f32 %v1703, %v1696
          %v1705 = vmul.f32 %v1704, %v1696
          %v1706 = vstv %s1674
          %v1707 = vmul.f32 %v1706, %v1696
          %v1708 = vmul.f32 %v1707, %v1698
          %v1709 = vmul.f32 %v1707, %v1699
          %v1710 = vmul.f32 %v1707, %v1700
          %v1711 = vmul.f32 %v1707, %v1701
          %v1712 = vmul.f32 %v1707, %v1702
          %v1713 = vadd.f32 %v1705, %v1708
          %v1714 = vadd.f32 %v1705, %v1709
          %v1715 = vadd.f32 %v1705, %v1710
          %v1716 = vadd.f32 %v1705, %v1711
          %v1717 = vadd.f32 %v1705, %v1712
          %v1718 = vstv %s1678
          %v1719 = vmul.f32 %v1718, %v1698
          %v1720 = vmul.f32 %v1718, %v1699
          %v1721 = vmul.f32 %v1718, %v1700
          %v1722 = vmul.f32 %v1718, %v1701
          %v1723 = vmul.f32 %v1718, %v1702
          %v1724 = vmul.f32 %v1719, %v1698
          %v1725 = vmul.f32 %v1720, %v1699
          %v1726 = vmul.f32 %v1721, %v1700
          %v1727 = vmul.f32 %v1722, %v1701
          %v1728 = vmul.f32 %v1723, %v1702
          %v1729 = vadd.f32 %v1713, %v1724
          %v1730 = vadd.f32 %v1714, %v1725
          %v1731 = vadd.f32 %v1715, %v1726
          %v1732 = vadd.f32 %v1716, %v1727
          %v1733 = vadd.f32 %v1717, %v1728
          %v1734 = vmul.f32 %v1729, 1.442695
          %v1735 = vpow.pop %v1734
          %v1736 = vmul.f32 %v1730, 1.442695
          %v1737 = vpow.pop %v1736
          %v1738 = vmul.f32 %v1731, 1.442695
          %v1739 = vpow.pop %v1738
          %v1740 = vmul.f32 %v1732, 1.442695
          %v1741 = vpow.pop %v1740
          %v1742 = vmul.f32 %v1733, 1.442695
          %v1743 = vpow.pop %v1742
          %v1744 = vstv %s1631
          %vm1745 = vcmp.ge.f32.partialorder %v170, %v1744
          %v1746 = vstv %s1635
          %vm1747 = vcmp.lt.f32.partialorder %v170, %v1746
          %vm1748 = vmand %vm1745, %vm1747
          %v1749 = vstv %s1639
          %vm1750 = vcmp.ge.f32.partialorder %v161, %v1749
          %vm1751 = vcmp.ge.f32.partialorder %v162, %v1749
          %vm1752 = vcmp.ge.f32.partialorder %v163, %v1749
          %vm1753 = vcmp.ge.f32.partialorder %v164, %v1749
          %vm1754 = vcmp.ge.f32.partialorder %v165, %v1749
          %vm1755 = vmand %vm1748, %vm1750
          %vm1756 = vmand %vm1748, %vm1751
          %vm1757 = vmand %vm1748, %vm1752
          %vm1758 = vmand %vm1748, %vm1753
          %vm1759 = vmand %vm1748, %vm1754
          %v1760 = vstv %s1643
          %vm1761 = vcmp.lt.f32.partialorder %v161, %v1760
          %vm1762 = vcmp.lt.f32.partialorder %v162, %v1760
          %vm1763 = vcmp.lt.f32.partialorder %v163, %v1760
          %vm1764 = vcmp.lt.f32.partialorder %v164, %v1760
          %vm1765 = vcmp.lt.f32.partialorder %v165, %v1760
          %vm1766 = vmand %vm1755, %vm1761
          %vm1767 = vmand %vm1756, %vm1762
          %vm1768 = vmand %vm1757, %vm1763
          %vm1769 = vmand %vm1758, %vm1764
          %vm1770 = vmand %vm1759, %vm1765
          %v1771 = vstv %s1682
          %v1772 = vmul.f32 %v1735, %v1771
          %v1773 = vmul.f32 %v1737, %v1771
          %v1774 = vmul.f32 %v1739, %v1771
          %v1775 = vmul.f32 %v1741, %v1771
          %v1776 = vmul.f32 %v1743, %v1771
          %v1777 = vsel %vm1766, %v1772, 0.0
          %v1778 = vsel %vm1767, %v1773, 0.0
          %v1779 = vsel %vm1768, %v1774, 0.0
          %v1780 = vsel %vm1769, %v1775, 0.0
          %v1781 = vsel %vm1770, %v1776, 0.0
          %v1782 = vsub.f32 1.0, %v1777
          %v1783 = vsub.f32 1.0, %v1778
          %v1784 = vsub.f32 1.0, %v1779
          %v1785 = vsub.f32 1.0, %v1780
          %v1786 = vsub.f32 1.0, %v1781
          %v1787 = vld [vmem:[#allocation5] sm:$0xff]
          %v1788 = vld [vmem:[#allocation5 + $0x8] sm:$0xff]
          %v1789 = vld [vmem:[#allocation5 + $0x10] sm:$0xff]
          %v1790 = vld [vmem:[#allocation5 + $0x18] sm:$0xff]
          %v1791 = vld [vmem:[#allocation5 + $0x20] sm:$0xff]
          %v1792 = vld [vmem:[#allocation5 + $0x28] sm:$0xff]
          %v1793 = vld [vmem:[#allocation5 + $0x30] sm:$0xff]
          %v1794 = vld [vmem:[#allocation5 + $0x38] sm:$0xff]
          %v1795 = vld [vmem:[#allocation5 + $0x40] sm:$0xff]
          %v1796 = vld [vmem:[#allocation5 + $0x48] sm:$0xff]
          %v1797 = vld [vmem:[#allocation5 + $0x50] sm:$0xff]
          %v1798 = vld [vmem:[#allocation5 + $0x58] sm:$0xff]
          %v1799 = vld [vmem:[#allocation5 + $0x60] sm:$0xff]
          %v1800 = vld [vmem:[#allocation5 + $0x68] sm:$0xff]
          %v1801 = vld [vmem:[#allocation5 + $0x70] sm:$0xff]
          %v1802 = vstv %s1686
          %v1803 = vmul.f32 %v1802, %v1777
          %v1804 = vmul.f32 %v1802, %v1778
          %v1805 = vmul.f32 %v1802, %v1779
          %v1806 = vmul.f32 %v1802, %v1780
          %v1807 = vmul.f32 %v1802, %v1781
          %v1808 = vmul.f32 %v1787, %v1782
          %v1809 = vmul.f32 %v1788, %v1783
          %v1810 = vmul.f32 %v1789, %v1784
          %v1811 = vmul.f32 %v1790, %v1785
          %v1812 = vmul.f32 %v1791, %v1786
          %v1813 = vadd.f32 %v1803, %v1808
          %v1814 = vadd.f32 %v1804, %v1809
          %v1815 = vadd.f32 %v1805, %v1810
          %v1816 = vadd.f32 %v1806, %v1811
          %v1817 = vadd.f32 %v1807, %v1812
          %v1818 = vstv %s1690
          %v1819 = vmul.f32 %v1818, %v1777
          %v1820 = vmul.f32 %v1818, %v1778
          %v1821 = vmul.f32 %v1818, %v1779
          %v1822 = vmul.f32 %v1818, %v1780
          %v1823 = vmul.f32 %v1818, %v1781
          %v1824 = vmul.f32 %v1792, %v1782
          %v1825 = vmul.f32 %v1793, %v1783
          %v1826 = vmul.f32 %v1794, %v1784
          %v1827 = vmul.f32 %v1795, %v1785
          %v1828 = vmul.f32 %v1796, %v1786
          %v1829 = vadd.f32 %v1819, %v1824
          %v1830 = vadd.f32 %v1820, %v1825
          %v1831 = vadd.f32 %v1821, %v1826
          %v1832 = vadd.f32 %v1822, %v1827
          %v1833 = vadd.f32 %v1823, %v1828
          %v1834 = vstv %s1694
          %v1835 = vmul.f32 %v1834, %v1777
          %v1836 = vmul.f32 %v1834, %v1778
          %v1837 = vmul.f32 %v1834, %v1779
          %v1838 = vmul.f32 %v1834, %v1780
          %v1839 = vmul.f32 %v1834, %v1781
          %v1840 = vmul.f32 %v1797, %v1782
          %v1841 = vmul.f32 %v1798, %v1783
          %v1842 = vmul.f32 %v1799, %v1784
          %v1843 = vmul.f32 %v1800, %v1785
          %v1844 = vmul.f32 %v1801, %v1786
          %v1845 = vadd.f32 %v1835, %v1840
          %v1846 = vadd.f32 %v1836, %v1841
          %v1847 = vadd.f32 %v1837, %v1842
          %v1848 = vadd.f32 %v1838, %v1843
          %v1849 = vadd.f32 %v1839, %v1844
          %1850 = vst [vmem:[#allocation5] sm:$0xff] %v1813
          %1851 = vst [vmem:[#allocation5 + $0x8] sm:$0xff] %v1814
          %1852 = vst [vmem:[#allocation5 + $0x10] sm:$0xff] %v1815
          %1853 = vst [vmem:[#allocation5 + $0x18] sm:$0xff] %v1816
          %1854 = vst [vmem:[#allocation5 + $0x20] sm:$0xff] %v1817
          %1855 = vst [vmem:[#allocation5 + $0x28] sm:$0xff] %v1829
          %1856 = vst [vmem:[#allocation5 + $0x30] sm:$0xff] %v1830
          %1857 = vst [vmem:[#allocation5 + $0x38] sm:$0xff] %v1831
          %1858 = vst [vmem:[#allocation5 + $0x40] sm:$0xff] %v1832
          %1859 = vst [vmem:[#allocation5 + $0x48] sm:$0xff] %v1833
          %1860 = vst [vmem:[#allocation5 + $0x50] sm:$0xff] %v1845
          %1861 = vst [vmem:[#allocation5 + $0x58] sm:$0xff] %v1846
          %1862 = vst [vmem:[#allocation5 + $0x60] sm:$0xff] %v1847
          %1863 = vst [vmem:[#allocation5 + $0x68] sm:$0xff] %v1848
          %1864 = vst [vmem:[#allocation5 + $0x70] sm:$0xff] %v1849
        $region60: #{tpu_custom_call.1} parent=23 // pred_fallthru
          _
        %s1865 = sadd.s32 %s171, 7
        %s1866 = sshra.s32 %s1865, 7
        %s1867 = sand.u32 %s1865, 127
        %s1868 = sadd.s32 %s1866, 9
        %s1869 = smul.u32 %s1868, 128
        %s1870 = sshra.s32 %s1865, 7
        %s1871 = sand.u32 %s1865, 127
        %s1872 = sadd.s32 %s1869, %s1871
        %s1873 = sld [smem:[#allocation2 + %s1872]]
        %s1874 = sadd.s32 %s1866, 10
        %s1875 = smul.u32 %s1874, 128
        %s1876 = sadd.s32 %s1875, %s1871
        %s1877 = sld [smem:[#allocation2 + %s1876]]
        %s1878 = sadd.s32 %s1866, 11
        %s1879 = smul.u32 %s1878, 128
        %s1880 = sadd.s32 %s1879, %s1871
        %s1881 = sld [smem:[#allocation2 + %s1880]]
        %s1882 = sadd.s32 %s1866, 12
        %s1883 = smul.u32 %s1882, 128
        %s1884 = sadd.s32 %s1883, %s1871
        %s1885 = sld [smem:[#allocation2 + %s1884]]
        %p1886 = scmp.gt.f32.partialorder %s1877, %s1873
        %p1887 = scmp.gt.f32.partialorder %s1885, %s1881
        %p1888 = pnand %p1886, %p1887
        %p1889 = pneg %p1888
        %p1890 = scmp.lt.f32.partialorder %s1873, %s148
        %p1891 = pnand %p1889, %p1890
        %p1892 = pneg %p1891
        %p1893 = scmp.gt.f32.partialorder %s1877, %s146
        %p1894 = pnand %p1892, %p1893
        %p1895 = pneg %p1894
        %p1896 = scmp.lt.f32.partialorder %s1881, %s147
        %p1897 = pnand %p1895, %p1896
        %p1898 = pneg %p1897
        %p1899 = scmp.gt.f32.partialorder %s1885, %s144
        %p1900 = pnand %p1898, %p1899
        %p1901 = pneg %p1900
        // Predicated region
        $region61: #{tpu_custom_call.1} parent=23 // pred_check
          _
        $region62: #{tpu_custom_call.1} parent=23 // pred_check_branch
          %1903 = sbr.rel (%p1900) target = $region64
        $region63: #{tpu_custom_call.1} parent=23 // pred_region
          %s1904 = sld [smem:[#allocation2 + %s1865]]
          %s1905 = sadd.s32 %s1866, 1
          %s1906 = smul.u32 %s1905, 128
          %s1907 = sadd.s32 %s1906, %s1871
          %s1908 = sld [smem:[#allocation2 + %s1907]]
          %s1909 = sadd.s32 %s1866, 2
          %s1910 = smul.u32 %s1909, 128
          %s1911 = sadd.s32 %s1910, %s1871
          %s1912 = sld [smem:[#allocation2 + %s1911]]
          %s1913 = sadd.s32 %s1866, 3
          %s1914 = smul.u32 %s1913, 128
          %s1915 = sadd.s32 %s1914, %s1871
          %s1916 = sld [smem:[#allocation2 + %s1915]]
          %s1917 = sadd.s32 %s1866, 4
          %s1918 = smul.u32 %s1917, 128
          %s1919 = sadd.s32 %s1918, %s1871
          %s1920 = sld [smem:[#allocation2 + %s1919]]
          %s1921 = sadd.s32 %s1866, 5
          %s1922 = smul.u32 %s1921, 128
          %s1923 = sadd.s32 %s1922, %s1871
          %s1924 = sld [smem:[#allocation2 + %s1923]]
          %s1925 = sadd.s32 %s1866, 6
          %s1926 = smul.u32 %s1925, 128
          %s1927 = sadd.s32 %s1926, %s1871
          %s1928 = sld [smem:[#allocation2 + %s1927]]
          %s1929 = sadd.s32 %s1866, 7
          %s1930 = smul.u32 %s1929, 128
          %s1931 = sadd.s32 %s1930, %s1871
          %s1932 = sld [smem:[#allocation2 + %s1931]]
          %s1933 = sadd.s32 %s1866, 8
          %s1934 = smul.u32 %s1933, 128
          %s1935 = sadd.s32 %s1934, %s1871
          %s1936 = sld [smem:[#allocation2 + %s1935]]
          %v1937 = vstv %s1904
          %v1938 = vsub.f32 %v170, %v1937
          %v1939 = vstv %s1908
          %v1940 = vsub.f32 %v161, %v1939
          %v1941 = vsub.f32 %v162, %v1939
          %v1942 = vsub.f32 %v163, %v1939
          %v1943 = vsub.f32 %v164, %v1939
          %v1944 = vsub.f32 %v165, %v1939
          %v1945 = vstv %s1912
          %v1946 = vmul.f32 %v1945, %v1938
          %v1947 = vmul.f32 %v1946, %v1938
          %v1948 = vstv %s1916
          %v1949 = vmul.f32 %v1948, %v1938
          %v1950 = vmul.f32 %v1949, %v1940
          %v1951 = vmul.f32 %v1949, %v1941
          %v1952 = vmul.f32 %v1949, %v1942
          %v1953 = vmul.f32 %v1949, %v1943
          %v1954 = vmul.f32 %v1949, %v1944
          %v1955 = vadd.f32 %v1947, %v1950
          %v1956 = vadd.f32 %v1947, %v1951
          %v1957 = vadd.f32 %v1947, %v1952
          %v1958 = vadd.f32 %v1947, %v1953
          %v1959 = vadd.f32 %v1947, %v1954
          %v1960 = vstv %s1920
          %v1961 = vmul.f32 %v1960, %v1940
          %v1962 = vmul.f32 %v1960, %v1941
          %v1963 = vmul.f32 %v1960, %v1942
          %v1964 = vmul.f32 %v1960, %v1943
          %v1965 = vmul.f32 %v1960, %v1944
          %v1966 = vmul.f32 %v1961, %v1940
          %v1967 = vmul.f32 %v1962, %v1941
          %v1968 = vmul.f32 %v1963, %v1942
          %v1969 = vmul.f32 %v1964, %v1943
          %v1970 = vmul.f32 %v1965, %v1944
          %v1971 = vadd.f32 %v1955, %v1966
          %v1972 = vadd.f32 %v1956, %v1967
          %v1973 = vadd.f32 %v1957, %v1968
          %v1974 = vadd.f32 %v1958, %v1969
          %v1975 = vadd.f32 %v1959, %v1970
          %v1976 = vmul.f32 %v1971, 1.442695
          %v1977 = vpow.pop %v1976
          %v1978 = vmul.f32 %v1972, 1.442695
          %v1979 = vpow.pop %v1978
          %v1980 = vmul.f32 %v1973, 1.442695
          %v1981 = vpow.pop %v1980
          %v1982 = vmul.f32 %v1974, 1.442695
          %v1983 = vpow.pop %v1982
          %v1984 = vmul.f32 %v1975, 1.442695
          %v1985 = vpow.pop %v1984
          %v1986 = vstv %s1873
          %vm1987 = vcmp.ge.f32.partialorder %v170, %v1986
          %v1988 = vstv %s1877
          %vm1989 = vcmp.lt.f32.partialorder %v170, %v1988
          %vm1990 = vmand %vm1987, %vm1989
          %v1991 = vstv %s1881
          %vm1992 = vcmp.ge.f32.partialorder %v161, %v1991
          %vm1993 = vcmp.ge.f32.partialorder %v162, %v1991
          %vm1994 = vcmp.ge.f32.partialorder %v163, %v1991
          %vm1995 = vcmp.ge.f32.partialorder %v164, %v1991
          %vm1996 = vcmp.ge.f32.partialorder %v165, %v1991
          %vm1997 = vmand %vm1990, %vm1992
          %vm1998 = vmand %vm1990, %vm1993
          %vm1999 = vmand %vm1990, %vm1994
          %vm2000 = vmand %vm1990, %vm1995
          %vm2001 = vmand %vm1990, %vm1996
          %v2002 = vstv %s1885
          %vm2003 = vcmp.lt.f32.partialorder %v161, %v2002
          %vm2004 = vcmp.lt.f32.partialorder %v162, %v2002
          %vm2005 = vcmp.lt.f32.partialorder %v163, %v2002
          %vm2006 = vcmp.lt.f32.partialorder %v164, %v2002
          %vm2007 = vcmp.lt.f32.partialorder %v165, %v2002
          %vm2008 = vmand %vm1997, %vm2003
          %vm2009 = vmand %vm1998, %vm2004
          %vm2010 = vmand %vm1999, %vm2005
          %vm2011 = vmand %vm2000, %vm2006
          %vm2012 = vmand %vm2001, %vm2007
          %v2013 = vstv %s1924
          %v2014 = vmul.f32 %v1977, %v2013
          %v2015 = vmul.f32 %v1979, %v2013
          %v2016 = vmul.f32 %v1981, %v2013
          %v2017 = vmul.f32 %v1983, %v2013
          %v2018 = vmul.f32 %v1985, %v2013
          %v2019 = vsel %vm2008, %v2014, 0.0
          %v2020 = vsel %vm2009, %v2015, 0.0
          %v2021 = vsel %vm2010, %v2016, 0.0
          %v2022 = vsel %vm2011, %v2017, 0.0
          %v2023 = vsel %vm2012, %v2018, 0.0
          %v2024 = vsub.f32 1.0, %v2019
          %v2025 = vsub.f32 1.0, %v2020
          %v2026 = vsub.f32 1.0, %v2021
          %v2027 = vsub.f32 1.0, %v2022
          %v2028 = vsub.f32 1.0, %v2023
          %v2029 = vld [vmem:[#allocation5] sm:$0xff]
          %v2030 = vld [vmem:[#allocation5 + $0x8] sm:$0xff]
          %v2031 = vld [vmem:[#allocation5 + $0x10] sm:$0xff]
          %v2032 = vld [vmem:[#allocation5 + $0x18] sm:$0xff]
          %v2033 = vld [vmem:[#allocation5 + $0x20] sm:$0xff]
          %v2034 = vld [vmem:[#allocation5 + $0x28] sm:$0xff]
          %v2035 = vld [vmem:[#allocation5 + $0x30] sm:$0xff]
          %v2036 = vld [vmem:[#allocation5 + $0x38] sm:$0xff]
          %v2037 = vld [vmem:[#allocation5 + $0x40] sm:$0xff]
          %v2038 = vld [vmem:[#allocation5 + $0x48] sm:$0xff]
          %v2039 = vld [vmem:[#allocation5 + $0x50] sm:$0xff]
          %v2040 = vld [vmem:[#allocation5 + $0x58] sm:$0xff]
          %v2041 = vld [vmem:[#allocation5 + $0x60] sm:$0xff]
          %v2042 = vld [vmem:[#allocation5 + $0x68] sm:$0xff]
          %v2043 = vld [vmem:[#allocation5 + $0x70] sm:$0xff]
          %v2044 = vstv %s1928
          %v2045 = vmul.f32 %v2044, %v2019
          %v2046 = vmul.f32 %v2044, %v2020
          %v2047 = vmul.f32 %v2044, %v2021
          %v2048 = vmul.f32 %v2044, %v2022
          %v2049 = vmul.f32 %v2044, %v2023
          %v2050 = vmul.f32 %v2029, %v2024
          %v2051 = vmul.f32 %v2030, %v2025
          %v2052 = vmul.f32 %v2031, %v2026
          %v2053 = vmul.f32 %v2032, %v2027
          %v2054 = vmul.f32 %v2033, %v2028
          %v2055 = vadd.f32 %v2045, %v2050
          %v2056 = vadd.f32 %v2046, %v2051
          %v2057 = vadd.f32 %v2047, %v2052
          %v2058 = vadd.f32 %v2048, %v2053
          %v2059 = vadd.f32 %v2049, %v2054
          %v2060 = vstv %s1932
          %v2061 = vmul.f32 %v2060, %v2019
          %v2062 = vmul.f32 %v2060, %v2020
          %v2063 = vmul.f32 %v2060, %v2021
          %v2064 = vmul.f32 %v2060, %v2022
          %v2065 = vmul.f32 %v2060, %v2023
          %v2066 = vmul.f32 %v2034, %v2024
          %v2067 = vmul.f32 %v2035, %v2025
          %v2068 = vmul.f32 %v2036, %v2026
          %v2069 = vmul.f32 %v2037, %v2027
          %v2070 = vmul.f32 %v2038, %v2028
          %v2071 = vadd.f32 %v2061, %v2066
          %v2072 = vadd.f32 %v2062, %v2067
          %v2073 = vadd.f32 %v2063, %v2068
          %v2074 = vadd.f32 %v2064, %v2069
          %v2075 = vadd.f32 %v2065, %v2070
          %v2076 = vstv %s1936
          %v2077 = vmul.f32 %v2076, %v2019
          %v2078 = vmul.f32 %v2076, %v2020
          %v2079 = vmul.f32 %v2076, %v2021
          %v2080 = vmul.f32 %v2076, %v2022
          %v2081 = vmul.f32 %v2076, %v2023
          %v2082 = vmul.f32 %v2039, %v2024
          %v2083 = vmul.f32 %v2040, %v2025
          %v2084 = vmul.f32 %v2041, %v2026
          %v2085 = vmul.f32 %v2042, %v2027
          %v2086 = vmul.f32 %v2043, %v2028
          %v2087 = vadd.f32 %v2077, %v2082
          %v2088 = vadd.f32 %v2078, %v2083
          %v2089 = vadd.f32 %v2079, %v2084
          %v2090 = vadd.f32 %v2080, %v2085
          %v2091 = vadd.f32 %v2081, %v2086
          %2092 = vst [vmem:[#allocation5] sm:$0xff] %v2055
          %2093 = vst [vmem:[#allocation5 + $0x8] sm:$0xff] %v2056
          %2094 = vst [vmem:[#allocation5 + $0x10] sm:$0xff] %v2057
          %2095 = vst [vmem:[#allocation5 + $0x18] sm:$0xff] %v2058
          %2096 = vst [vmem:[#allocation5 + $0x20] sm:$0xff] %v2059
          %2097 = vst [vmem:[#allocation5 + $0x28] sm:$0xff] %v2071
          %2098 = vst [vmem:[#allocation5 + $0x30] sm:$0xff] %v2072
          %2099 = vst [vmem:[#allocation5 + $0x38] sm:$0xff] %v2073
          %2100 = vst [vmem:[#allocation5 + $0x40] sm:$0xff] %v2074
          %2101 = vst [vmem:[#allocation5 + $0x48] sm:$0xff] %v2075
          %2102 = vst [vmem:[#allocation5 + $0x50] sm:$0xff] %v2087
          %2103 = vst [vmem:[#allocation5 + $0x58] sm:$0xff] %v2088
          %2104 = vst [vmem:[#allocation5 + $0x60] sm:$0xff] %v2089
          %2105 = vst [vmem:[#allocation5 + $0x68] sm:$0xff] %v2090
          %2106 = vst [vmem:[#allocation5 + $0x70] sm:$0xff] %v2091
        $region64: #{tpu_custom_call.1} parent=23 // pred_fallthru
          _
        // Predicated region
        $region65: #{tpu_custom_call.1} parent=23 // pred_check
          %p2107 = pneg %p74
        $region66: #{tpu_custom_call.1} parent=23 // pred_check_branch
          %2109 = sbr.rel (%p2107) target = $region68
        $region67: #{tpu_custom_call.1} parent=23 // pred_region
          %s2110 = smul.u32 5, %s19
          %s2112 = ssub.s32 1920, 1920
          %2113 = vsyncadd [#allocation3], %s2112
          %s2114 = sadd.s32 %s20, %s2110
          %s2115 = smul.addr %s2114, 128
          %s2116 = scalar_lea.hbm %s1, %s2115
          %s2117 = sshll.u32 [#allocation5], 4
          %s2118 = int_to_ptr.vmem [resolvable:$true] %s2117
          %2123 = dma.vmem_to_hbm [thread:$0]  %s2118, 1920, %s2116, [#allocation3], 128, 128, 8
        $region68: #{tpu_custom_call.1} parent=23 // pred_fallthru
          _
        // Predicated region
        $region69: #{tpu_custom_call.1} parent=23 // pred_check
          %p2124 = pneg %p74
        $region70: #{tpu_custom_call.1} parent=23 // pred_check_branch
          %2126 = sbr.rel (%p2124) target = $region72
        $region71: #{tpu_custom_call.1} parent=23 // pred_region
          %2127 = dma.done [#allocation3], 1920
        $region72: #{tpu_custom_call.1} parent=23 // pred_fallthru
          _
      $region24: #{tpu_custom_call.1} parent=5 // pred_fallthru
        _
      %p2128 = scmp.le.s32.totalorder 2, %s9
      // Predicated region
      $region73: #{tpu_custom_call.1} parent=5 // pred_check
        %p2129 = pneg %p2128
      $region74: #{tpu_custom_call.1} parent=5 // pred_check_branch
        %2131 = sbr.rel (%p2129) target = $region76
      $region75: #{tpu_custom_call.1} parent=5 // pred_region
        %s2132 = ssub.s32 %s9, 2
      $region76: #{tpu_custom_call.1} parent=5 // pred_fallthru
        _
    $region6: #{tpu_custom_call.1} parent=1 // loop_footer
      %s13 = sadd.s32 1, %s9
    $region7: #{tpu_custom_call.1} parent=1 // loop_footer_branch
      %8 = sbr.rel target = $region3
    $region8: #{tpu_custom_call.1} parent=1 // loop_exit
      _
    %2133 = vsyncpa [#allocation3], 1
    %s2134 = scalar_lea.sflag [#allocation3], 1
    %2135 = vsyncpa %s2134, 1
    %2136 = vsyncpa [#allocation4], 1
    %s2137 = scalar_lea.sflag [#allocation4], 1
    %2138 = vsyncpa %s2137, 1

</llo_original>
